<compile_context>
chip_gen: v7x
topology: tpu7x:2x2x1
jax: 0.10.0
libtpu: 0.0.40
codegen_flags: <defaults>
</compile_context>

<pallas_src>
import jax
import jax.numpy as jnp
from jax.experimental import pallas as pl
from jax.experimental.pallas import tpu as pltpu


# ----------------------------------------------------------------------------
# Fused ConvResBlock kernel
# ----------------------------------------------------------------------------
def _make_block_kernel(B, H, W, C):
    HW = H * W
    M = B * HW
    PAD = W + 1                      # max |flat-index shift| of any 3x3 tap

    def conv_bn_relu(a, w_ref, scale, bias, col_first, col_last):
        # a: (B, HW, C) f32.  Zero padding=1 is realized exactly by:
        #   * masking the never-valid wrap column of the dx=-1 / dx=+1 taps, and
        #   * zero-filling PAD rows above/below each image (vertical halo),
        # then reading each tap as a static row-offset slice of the padded value.
        zrow = jnp.zeros((B, PAD, C), jnp.bfloat16)

        def pad_rows(v_f32):          # one bf16 cast per (already masked) variant
            return jnp.concatenate([zrow, v_f32.astype(jnp.bfloat16), zrow], axis=1)

        src = {
            -1: pad_rows(jnp.where(col_last, 0.0, a)),    # source col w-1: col W-1 never valid
            0: pad_rows(a),
            1: pad_rows(jnp.where(col_first, 0.0, a)),    # source col w+1: col 0 never valid
        }

        # im2col: tap k = dy*3+dx reads per-image flat shift s = (dy-1)*W + (dx-1).
        taps = []
        for k in range(9):            # static unroll; slices, no new zero-concats
            dy, dx = divmod(k, 3)
            s = (dy - 1) * W + (dx - 1)
            taps.append(src[dx - 1][:, PAD + s:PAD + s + HW, :])
        lhs = jnp.concatenate(taps, axis=-1).reshape(M, 9 * C)       # (M, 9C) bf16

        # Single concat-K matmul on the MXU, f32 accumulation.
        acc = jnp.dot(lhs, w_ref[...], preferred_element_type=jnp.float32)  # (M, C)
        return jnp.maximum(acc * scale + bias, 0.0).reshape(B, HW, C)       # BN affine + ReLU

    def kernel(x_ref, w1_ref, s1_ref, b1_ref, w2_ref, s2_ref, b2_ref, o_ref):
        col = jax.lax.broadcasted_iota(jnp.int32, (HW, 1), 0) % W    # pixel column idx
        col_first = col == 0
        col_last = col == W - 1
        x_in = x_ref[...]                                            # (B, HW, C) f32
        a1 = conv_bn_relu(x_in, w1_ref, s1_ref[...], b1_ref[...], col_first, col_last)
        a2 = conv_bn_relu(a1, w2_ref, s2_ref[...], b2_ref[...], col_first, col_last)
        o_ref[...] = (a2 + x_in).astype(o_ref.dtype)                 # residual add

    return kernel


def _pick_block_batch(N, HW, max_m=1024):
    # Largest per-step image count B such that:
    #  * B divides N (static grid),
    #  * per-step matmul M = B*HW stays <= max_m (keeps VMEM tiny, also on v7x),
    #  * at least 2 grid steps remain when N >= 2, so the "parallel" batch axis
    #    can shard across v7x's two TensorCores.
    cap = N if N < 2 else max(1, N // 2)
    best = 1
    for b in range(1, cap + 1):
        if N % b == 0 and b * HW <= max_m:
            best = b
    return best


def conv_res_block_flat(x, params, H, W, *, batch_per_step=None):
    """x: (N, H*W, C) float32 (channels on lanes) -> (N, H*W, C) float32."""
    N, HW, C = x.shape
    assert HW == H * W
    B = batch_per_step if batch_per_step is not None else _pick_block_batch(N, HW)
    assert N % B == 0, f"batch {N} must be divisible by per-step batch {B}"
    w1, s1, b1 = params["c1"]
    w2, s2, b2 = params["c2"]

    return pl.pallas_call(
        _make_block_kernel(B, H, W, C),
        out_shape=jax.ShapeDtypeStruct((N, HW, C), jnp.float32),
        grid_spec=pltpu.PrefetchScalarGridSpec(
            num_scalar_prefetch=0,
            grid=(N // B,),
            in_specs=[
                pl.BlockSpec((B, HW, C), lambda n: (n, 0, 0)),    # B images per step
                pl.BlockSpec((9 * C, C), lambda n: (0, 0)),       # conv1 weights (9C, C) bf16
                pl.BlockSpec((1, C), lambda n: (0, 0)),           # BN1 scale
                pl.BlockSpec((1, C), lambda n: (0, 0)),           # BN1 bias (+conv bias)
                pl.BlockSpec((9 * C, C), lambda n: (0, 0)),       # conv2 weights (9C, C) bf16
                pl.BlockSpec((1, C), lambda n: (0, 0)),           # BN2 scale
                pl.BlockSpec((1, C), lambda n: (0, 0)),           # BN2 bias
            ],
            out_specs=pl.BlockSpec((B, HW, C), lambda n: (n, 0, 0)),
        ),
        compiler_params=pltpu.CompilerParams(dimension_semantics=("parallel",)),
    )(x, w1, s1, b1, w2, s2, b2)


def conv_res_block(x_nchw, params, *, batch_per_step=None):
    """PyTorch-layout shim: (N, C, H, W) f32 -> (N, C, H, W) f32 (ConvResBlock fwd).

    For multi-block nets, call conv_res_block_flat directly and keep activations
    in (N, H*W, C) between blocks to avoid these layout round trips.
    """
    N, C, H, W = x_nchw.shape
    x = jnp.transpose(x_nchw, (0, 2, 3, 1)).reshape(N, H * W, C)
    out = conv_res_block_flat(x, params, H, W, batch_per_step=batch_per_step)
    return jnp.transpose(out.reshape(N, H, W, C), (0, 3, 1, 2))


# ----------------------------------------------------------------------------
# Deterministic parameter init (Conv2d(chan, chan, 3, padding=1) + BatchNorm2d(chan))
# ----------------------------------------------------------------------------
def init_conv_bn(key, chan, eps=1e-5):
    k1, k2, k3, k4, k5, k6 = jax.random.split(key, 6)
    w = jax.random.normal(k1, (3, 3, chan, chan), jnp.float32) / jnp.sqrt(9.0 * chan)
    conv_b = 0.01 * jax.random.normal(k2, (chan,), jnp.float32)
    gamma = 1.0 + 0.1 * jax.random.normal(k3, (chan,), jnp.float32)
    beta = 0.1 * jax.random.normal(k4, (chan,), jnp.float32)
    rmean = 0.1 * jax.random.normal(k5, (chan,), jnp.float32)
    rvar = 1.0 + 0.1 * jax.random.uniform(k6, (chan,), jnp.float32)
    scale = gamma / jnp.sqrt(rvar + eps)               # BN folded to affine (eval mode)
    bias = (conv_b - rmean) * scale + beta             # conv bias folded in too
    # Concat-K layout: row block k = dy*3+dx holds W[dy, dx] of shape (Cin, Cout).
    w_flat = w.reshape(9 * chan, chan).astype(jnp.bfloat16)
    return w_flat, scale.reshape(1, chan), bias.reshape(1, chan)


# ----------------------------------------------------------------------------
# Pure-JAX reference (same folded params) for a correctness check
# ----------------------------------------------------------------------------
def conv_res_block_ref(x_nchw, params):
    x = jnp.transpose(x_nchw, (0, 2, 3, 1))            # NHWC
    C = x.shape[-1]

    def cbr(a, w_flat, scale, bias):
        w = w_flat.astype(jnp.float32).reshape(3, 3, C, C)  # HWIO
        y = jax.lax.conv_general_dilated(
            a, w, window_strides=(1, 1), padding="SAME",
            dimension_numbers=("NHWC", "HWIO", "NHWC"),
            precision=jax.lax.Precision.HIGHEST)
        return jnp.maximum(y * scale.reshape(1, 1, 1, -1) + bias.reshape(1, 1, 1, -1), 0.0)

    y = cbr(x, *params["c1"])
    y = cbr(y, *params["c2"])
    y = y + x
    return jnp.transpose(y, (0, 3, 1, 2))


if __name__ == "__main__":
    key = jax.random.PRNGKey(0)
    kp1, kp2, kx = jax.random.split(key, 3)
    # ConvResBlock(128) at 8x8 spatial (as used inside Res9Net), batch 8, NCHW.
    C, H, W, N = 128, 8, 8, 8
    params = {"c1": init_conv_bn(kp1, C), "c2": init_conv_bn(kp2, C)}
    x = jax.random.normal(kx, (N, C, H, W), jnp.float32)

    fwd = jax.jit(conv_res_block)
    y = fwd(x, params)
    jax.block_until_ready(y)
    assert y.shape == x.shape and y.dtype == jnp.float32

    y_ref = conv_res_block_ref(x, params)
    err = float(jnp.max(jnp.abs(y - y_ref)) / (jnp.max(jnp.abs(y_ref)) + 1e-6))
    assert err < 2e-2, f"mismatch vs reference: rel-max err {err}"
    print("KERNEL_OK")
</pallas_src>

<mosaic_0001>
module attributes {stable_mosaic.version = 11 : i64} {
  func.func @kernel(%arg0: i32, %arg1: memref<4x64x128xf32, #tpu.memory_space<vmem>>, %arg2: memref<1152x128xbf16, #tpu.memory_space<vmem>>, %arg3: memref<1x128xf32, #tpu.memory_space<vmem>>, %arg4: memref<1x128xf32, #tpu.memory_space<vmem>>, %arg5: memref<1152x128xbf16, #tpu.memory_space<vmem>>, %arg6: memref<1x128xf32, #tpu.memory_space<vmem>>, %arg7: memref<1x128xf32, #tpu.memory_space<vmem>>, %arg8: memref<4x64x128xf32, #tpu.memory_space<vmem>>) attributes {dimension_semantics = [#tpu.dimension_semantics<parallel>], iteration_bounds = array<i64: 2>, scalar_prefetch = 0 : i64, scratch_operands = 0 : i64, tpu.core_type = #tpu.core_type<tc>, window_params = [{transform_indices = @transform_0, window_bounds = array<i64: 4, 64, 128>}, {pipeline_mode = #tpu.pipeline_mode<synchronous>, transform_indices = @transform_1, window_bounds = array<i64: 1152, 128>}, {pipeline_mode = #tpu.pipeline_mode<synchronous>, transform_indices = @transform_2, window_bounds = array<i64: 1, 128>}, {pipeline_mode = #tpu.pipeline_mode<synchronous>, transform_indices = @transform_3, window_bounds = array<i64: 1, 128>}, {pipeline_mode = #tpu.pipeline_mode<synchronous>, transform_indices = @transform_4, window_bounds = array<i64: 1152, 128>}, {pipeline_mode = #tpu.pipeline_mode<synchronous>, transform_indices = @transform_5, window_bounds = array<i64: 1, 128>}, {pipeline_mode = #tpu.pipeline_mode<synchronous>, transform_indices = @transform_6, window_bounds = array<i64: 1, 128>}, {transform_indices = @transform_7, window_bounds = array<i64: 4, 64, 128>}]} {
    %0 = tpu.iota {dimensions = array<i32: 0>} : vector<64x1xi32>
    %c8_i32 = arith.constant 8 : i32
    %c0_i32 = arith.constant 0 : i32
    %1 = arith.cmpi eq, %c8_i32, %c0_i32 : i32
    %c1_i32 = arith.constant 1 : i32
    %2 = arith.select %1, %c1_i32, %c8_i32 : i32
    %3 = vector.broadcast %2 : i32 to vector<64x1xi32>
    %4 = arith.remsi %0, %3 : vector<64x1xi32>
    %c0_i32_0 = arith.constant 0 : i32
    %5 = vector.broadcast %c0_i32_0 : i32 to vector<64x1xi32>
    %6 = arith.cmpi ne, %4, %5 : vector<64x1xi32>
    %c0_i32_1 = arith.constant 0 : i32
    %7 = vector.broadcast %c0_i32_1 : i32 to vector<64x1xi32>
    %8 = arith.cmpi slt, %4, %7 : vector<64x1xi32>
    %c0_i32_2 = arith.constant 0 : i32
    %9 = arith.cmpi slt, %2, %c0_i32_2 : i32
    %10 = vector.broadcast %9 : i1 to vector<64x1xi1>
    %11 = vector.broadcast %10 : vector<64x1xi1> to vector<64x1xi1>
    %12 = arith.xori %8, %11 : vector<64x1xi1>
    %13 = arith.andi %12, %6 : vector<64x1xi1>
    %14 = vector.broadcast %2 : i32 to vector<64x1xi32>
    %15 = arith.addi %4, %14 : vector<64x1xi32>
    %16 = arith.select %13, %15, %4 : vector<64x1xi1>, vector<64x1xi32>
    %c0_i32_3 = arith.constant 0 : i32
    %17 = vector.broadcast %c0_i32_3 : i32 to vector<64x1xi32>
    %18 = arith.cmpi eq, %16, %17 : vector<64x1xi32>
    %c7_i32 = arith.constant 7 : i32
    %19 = vector.broadcast %c7_i32 : i32 to vector<64x1xi32>
    %20 = arith.cmpi eq, %16, %19 : vector<64x1xi32>
    %c0 = arith.constant 0 : index
    %c0_4 = arith.constant 0 : index
    %c0_5 = arith.constant 0 : index
    %21 = vector.load %arg1[%c0, %c0_4, %c0_5] : memref<4x64x128xf32, #tpu.memory_space<vmem>>, vector<4x64x128xf32>
    %c0_6 = arith.constant 0 : index
    %c0_7 = arith.constant 0 : index
    %22 = vector.load %arg3[%c0_6, %c0_7] : memref<1x128xf32, #tpu.memory_space<vmem>>, vector<1x128xf32>
    %c0_8 = arith.constant 0 : index
    %c0_9 = arith.constant 0 : index
    %23 = vector.load %arg4[%c0_8, %c0_9] : memref<1x128xf32, #tpu.memory_space<vmem>>, vector<1x128xf32>
    %cst = arith.constant 0.000000e+00 : bf16
    %24 = vector.broadcast %cst : bf16 to vector<4x9x128xbf16>
    %cst_10 = arith.constant 0.000000e+00 : f32
    %25 = vector.shape_cast %20 : vector<64x1xi1> to vector<1x64x1xi1>
    %26 = vector.broadcast %25 : vector<1x64x1xi1> to vector<4x64x128xi1>
    %27 = vector.broadcast %cst_10 : f32 to vector<4x64x128xf32>
    %28 = arith.select %26, %27, %21 : vector<4x64x128xi1>, vector<4x64x128xf32>
    %29 = arith.truncf %28 : vector<4x64x128xf32> to vector<4x64x128xbf16>
    %30 = tpu.concatenate %24, %29, %24 in 1 : vector<4x9x128xbf16>, vector<4x64x128xbf16>, vector<4x9x128xbf16> -> vector<4x82x128xbf16>
    %31 = arith.truncf %21 : vector<4x64x128xf32> to vector<4x64x128xbf16>
    %32 = tpu.concatenate %24, %31, %24 in 1 : vector<4x9x128xbf16>, vector<4x64x128xbf16>, vector<4x9x128xbf16> -> vector<4x82x128xbf16>
    %cst_11 = arith.constant 0.000000e+00 : f32
    %33 = vector.shape_cast %18 : vector<64x1xi1> to vector<1x64x1xi1>
    %34 = vector.broadcast %33 : vector<1x64x1xi1> to vector<4x64x128xi1>
    %35 = vector.broadcast %cst_11 : f32 to vector<4x64x128xf32>
    %36 = arith.select %34, %35, %21 : vector<4x64x128xi1>, vector<4x64x128xf32>
    %37 = arith.truncf %36 : vector<4x64x128xf32> to vector<4x64x128xbf16>
    %38 = tpu.concatenate %24, %37, %24 in 1 : vector<4x9x128xbf16>, vector<4x64x128xbf16>, vector<4x9x128xbf16> -> vector<4x82x128xbf16>
    %39 = vector.extract_strided_slice %30 {offsets = [0, 0, 0], sizes = [4, 64, 128], strides = [1, 1, 1]} : vector<4x82x128xbf16> to vector<4x64x128xbf16>
    %40 = vector.extract_strided_slice %32 {offsets = [0, 1, 0], sizes = [4, 64, 128], strides = [1, 1, 1]} : vector<4x82x128xbf16> to vector<4x64x128xbf16>
    %41 = vector.extract_strided_slice %38 {offsets = [0, 2, 0], sizes = [4, 64, 128], strides = [1, 1, 1]} : vector<4x82x128xbf16> to vector<4x64x128xbf16>
    %42 = vector.extract_strided_slice %30 {offsets = [0, 8, 0], sizes = [4, 64, 128], strides = [1, 1, 1]} : vector<4x82x128xbf16> to vector<4x64x128xbf16>
    %43 = vector.extract_strided_slice %32 {offsets = [0, 9, 0], sizes = [4, 64, 128], strides = [1, 1, 1]} : vector<4x82x128xbf16> to vector<4x64x128xbf16>
    %44 = vector.extract_strided_slice %38 {offsets = [0, 10, 0], sizes = [4, 64, 128], strides = [1, 1, 1]} : vector<4x82x128xbf16> to vector<4x64x128xbf16>
    %45 = vector.extract_strided_slice %30 {offsets = [0, 16, 0], sizes = [4, 64, 128], strides = [1, 1, 1]} : vector<4x82x128xbf16> to vector<4x64x128xbf16>
    %46 = vector.extract_strided_slice %32 {offsets = [0, 17, 0], sizes = [4, 64, 128], strides = [1, 1, 1]} : vector<4x82x128xbf16> to vector<4x64x128xbf16>
    %47 = vector.extract_strided_slice %38 {offsets = [0, 18, 0], sizes = [4, 64, 128], strides = [1, 1, 1]} : vector<4x82x128xbf16> to vector<4x64x128xbf16>
    %48 = tpu.concatenate %39, %40, %41, %42, %43, %44, %45, %46, %47 in 2 : vector<4x64x128xbf16>, vector<4x64x128xbf16>, vector<4x64x128xbf16>, vector<4x64x128xbf16>, vector<4x64x128xbf16>, vector<4x64x128xbf16>, vector<4x64x128xbf16>, vector<4x64x128xbf16>, vector<4x64x128xbf16> -> vector<4x64x1152xbf16>
    %49 = vector.shape_cast %48 : vector<4x64x1152xbf16> to vector<256x1152xbf16>
    %c0_12 = arith.constant 0 : index
    %c0_13 = arith.constant 0 : index
    %50 = vector.load %arg2[%c0_12, %c0_13] : memref<1152x128xbf16, #tpu.memory_space<vmem>>, vector<1152x128xbf16>
    %cst_14 = arith.constant dense<0.000000e+00> : vector<256x128xf32>
    %51 = tpu.matmul %49, %50, %cst_14 {dimension_numbers = #tpu.dot_dimension_numbers<[1], [0], [0], [1], [0, 0, 1, 1], [], []>} : vector<256x1152xbf16>, vector<1152x128xbf16>, vector<256x128xf32> -> vector<256x128xf32>
    %52 = vector.broadcast %22 : vector<1x128xf32> to vector<256x128xf32>
    %53 = arith.mulf %51, %52 : vector<256x128xf32>
    %54 = vector.broadcast %23 : vector<1x128xf32> to vector<256x128xf32>
    %55 = arith.addf %53, %54 : vector<256x128xf32>
    %cst_15 = arith.constant 0.000000e+00 : f32
    %56 = vector.broadcast %cst_15 : f32 to vector<256x128xf32>
    %57 = arith.maximumf %55, %56 : vector<256x128xf32>
    %58 = vector.shape_cast %57 : vector<256x128xf32> to vector<4x64x128xf32>
    %c0_16 = arith.constant 0 : index
    %c0_17 = arith.constant 0 : index
    %59 = vector.load %arg6[%c0_16, %c0_17] : memref<1x128xf32, #tpu.memory_space<vmem>>, vector<1x128xf32>
    %c0_18 = arith.constant 0 : index
    %c0_19 = arith.constant 0 : index
    %60 = vector.load %arg7[%c0_18, %c0_19] : memref<1x128xf32, #tpu.memory_space<vmem>>, vector<1x128xf32>
    %cst_20 = arith.constant 0.000000e+00 : bf16
    %61 = vector.broadcast %cst_20 : bf16 to vector<4x9x128xbf16>
    %cst_21 = arith.constant 0.000000e+00 : f32
    %62 = vector.shape_cast %20 : vector<64x1xi1> to vector<1x64x1xi1>
    %63 = vector.broadcast %62 : vector<1x64x1xi1> to vector<4x64x128xi1>
    %64 = vector.broadcast %cst_21 : f32 to vector<4x64x128xf32>
    %65 = arith.select %63, %64, %58 : vector<4x64x128xi1>, vector<4x64x128xf32>
    %66 = arith.truncf %65 : vector<4x64x128xf32> to vector<4x64x128xbf16>
    %67 = tpu.concatenate %61, %66, %61 in 1 : vector<4x9x128xbf16>, vector<4x64x128xbf16>, vector<4x9x128xbf16> -> vector<4x82x128xbf16>
    %68 = arith.truncf %58 : vector<4x64x128xf32> to vector<4x64x128xbf16>
    %69 = tpu.concatenate %61, %68, %61 in 1 : vector<4x9x128xbf16>, vector<4x64x128xbf16>, vector<4x9x128xbf16> -> vector<4x82x128xbf16>
    %cst_22 = arith.constant 0.000000e+00 : f32
    %70 = vector.shape_cast %18 : vector<64x1xi1> to vector<1x64x1xi1>
    %71 = vector.broadcast %70 : vector<1x64x1xi1> to vector<4x64x128xi1>
    %72 = vector.broadcast %cst_22 : f32 to vector<4x64x128xf32>
    %73 = arith.select %71, %72, %58 : vector<4x64x128xi1>, vector<4x64x128xf32>
    %74 = arith.truncf %73 : vector<4x64x128xf32> to vector<4x64x128xbf16>
    %75 = tpu.concatenate %61, %74, %61 in 1 : vector<4x9x128xbf16>, vector<4x64x128xbf16>, vector<4x9x128xbf16> -> vector<4x82x128xbf16>
    %76 = vector.extract_strided_slice %67 {offsets = [0, 0, 0], sizes = [4, 64, 128], strides = [1, 1, 1]} : vector<4x82x128xbf16> to vector<4x64x128xbf16>
    %77 = vector.extract_strided_slice %69 {offsets = [0, 1, 0], sizes = [4, 64, 128], strides = [1, 1, 1]} : vector<4x82x128xbf16> to vector<4x64x128xbf16>
    %78 = vector.extract_strided_slice %75 {offsets = [0, 2, 0], sizes = [4, 64, 128], strides = [1, 1, 1]} : vector<4x82x128xbf16> to vector<4x64x128xbf16>
    %79 = vector.extract_strided_slice %67 {offsets = [0, 8, 0], sizes = [4, 64, 128], strides = [1, 1, 1]} : vector<4x82x128xbf16> to vector<4x64x128xbf16>
    %80 = vector.extract_strided_slice %69 {offsets = [0, 9, 0], sizes = [4, 64, 128], strides = [1, 1, 1]} : vector<4x82x128xbf16> to vector<4x64x128xbf16>
    %81 = vector.extract_strided_slice %75 {offsets = [0, 10, 0], sizes = [4, 64, 128], strides = [1, 1, 1]} : vector<4x82x128xbf16> to vector<4x64x128xbf16>
    %82 = vector.extract_strided_slice %67 {offsets = [0, 16, 0], sizes = [4, 64, 128], strides = [1, 1, 1]} : vector<4x82x128xbf16> to vector<4x64x128xbf16>
    %83 = vector.extract_strided_slice %69 {offsets = [0, 17, 0], sizes = [4, 64, 128], strides = [1, 1, 1]} : vector<4x82x128xbf16> to vector<4x64x128xbf16>
    %84 = vector.extract_strided_slice %75 {offsets = [0, 18, 0], sizes = [4, 64, 128], strides = [1, 1, 1]} : vector<4x82x128xbf16> to vector<4x64x128xbf16>
    %85 = tpu.concatenate %76, %77, %78, %79, %80, %81, %82, %83, %84 in 2 : vector<4x64x128xbf16>, vector<4x64x128xbf16>, vector<4x64x128xbf16>, vector<4x64x128xbf16>, vector<4x64x128xbf16>, vector<4x64x128xbf16>, vector<4x64x128xbf16>, vector<4x64x128xbf16>, vector<4x64x128xbf16> -> vector<4x64x1152xbf16>
    %86 = vector.shape_cast %85 : vector<4x64x1152xbf16> to vector<256x1152xbf16>
    %c0_23 = arith.constant 0 : index
    %c0_24 = arith.constant 0 : index
    %87 = vector.load %arg5[%c0_23, %c0_24] : memref<1152x128xbf16, #tpu.memory_space<vmem>>, vector<1152x128xbf16>
    %cst_25 = arith.constant dense<0.000000e+00> : vector<256x128xf32>
    %88 = tpu.matmul %86, %87, %cst_25 {dimension_numbers = #tpu.dot_dimension_numbers<[1], [0], [0], [1], [0, 0, 1, 1], [], []>} : vector<256x1152xbf16>, vector<1152x128xbf16>, vector<256x128xf32> -> vector<256x128xf32>
    %89 = vector.broadcast %59 : vector<1x128xf32> to vector<256x128xf32>
    %90 = arith.mulf %88, %89 : vector<256x128xf32>
    %91 = vector.broadcast %60 : vector<1x128xf32> to vector<256x128xf32>
    %92 = arith.addf %90, %91 : vector<256x128xf32>
    %cst_26 = arith.constant 0.000000e+00 : f32
    %93 = vector.broadcast %cst_26 : f32 to vector<256x128xf32>
    %94 = arith.maximumf %92, %93 : vector<256x128xf32>
    %95 = vector.shape_cast %94 : vector<256x128xf32> to vector<4x64x128xf32>
    %96 = arith.addf %95, %21 : vector<4x64x128xf32>
    %c0_27 = arith.constant 0 : index
    %c0_28 = arith.constant 0 : index
    %c0_29 = arith.constant 0 : index
    %97 = vector.load %arg8[%c0_27, %c0_28, %c0_29] : memref<4x64x128xf32, #tpu.memory_space<vmem>>, vector<4x64x128xf32>
    tpu.vector_store %arg8[%c0_27, %c0_28, %c0_29], %96 {strides = array<i32>} : memref<4x64x128xf32, #tpu.memory_space<vmem>>, vector<4x64x128xf32>,
    return
  }
  func.func @transform_0(%arg0: i32) -> (i32, i32, i32) {
    %c0_i32 = arith.constant 0 : i32
    %c0_i32_0 = arith.constant 0 : i32
    %c0_i32_1 = arith.constant 0 : i32
    return %arg0, %c0_i32, %c0_i32_0 : i32, i32, i32
  }
  func.func @transform_1(%arg0: i32) -> (i32, i32) {
    %c0_i32 = arith.constant 0 : i32
    %c0_i32_0 = arith.constant 0 : i32
    %c0_i32_1 = arith.constant 0 : i32
    return %c0_i32, %c0_i32_0 : i32, i32
  }
  func.func @transform_2(%arg0: i32) -> (i32, i32) {
    %c0_i32 = arith.constant 0 : i32
    %c0_i32_0 = arith.constant 0 : i32
    %c0_i32_1 = arith.constant 0 : i32
    return %c0_i32, %c0_i32_0 : i32, i32
  }
  func.func @transform_3(%arg0: i32) -> (i32, i32) {
    %c0_i32 = arith.constant 0 : i32
    %c0_i32_0 = arith.constant 0 : i32
    %c0_i32_1 = arith.constant 0 : i32
    return %c0_i32, %c0_i32_0 : i32, i32
  }
  func.func @transform_4(%arg0: i32) -> (i32, i32) {
    %c0_i32 = arith.constant 0 : i32
    %c0_i32_0 = arith.constant 0 : i32
    %c0_i32_1 = arith.constant 0 : i32
    return %c0_i32, %c0_i32_0 : i32, i32
  }
  func.func @transform_5(%arg0: i32) -> (i32, i32) {
    %c0_i32 = arith.constant 0 : i32
    %c0_i32_0 = arith.constant 0 : i32
    %c0_i32_1 = arith.constant 0 : i32
    return %c0_i32, %c0_i32_0 : i32, i32
  }
  func.func @transform_6(%arg0: i32) -> (i32, i32) {
    %c0_i32 = arith.constant 0 : i32
    %c0_i32_0 = arith.constant 0 : i32
    %c0_i32_1 = arith.constant 0 : i32
    return %c0_i32, %c0_i32_0 : i32, i32
  }
  func.func @transform_7(%arg0: i32) -> (i32, i32, i32) {
    %c0_i32 = arith.constant 0 : i32
    %c0_i32_0 = arith.constant 0 : i32
    %c0_i32_1 = arith.constant 0 : i32
    return %arg0, %c0_i32, %c0_i32_0 : i32, i32, i32
  }
}

</mosaic_0001>

<llo_original>
// kernel: conv_res_block.1
$region0: #{conv_res_block.1}
  #allocation0 [shape = 'u32[]', space=smem, size = 0x4, offset = 0x4, fixed_abs, tag = 'smem constant byte address 0x4 - core index']
  #allocation1 [shape = 'u32[144,128]{1,0:T(1,128)}', space=vmem, size = 0x12000, scoped, tag = 'internal scratch']
  %s0 = inlined_call_operand.hbm [shape: f32[8,64,128], index: 0, kind: input, shape index: {}]
  %s1 = inlined_call_operand.hbm [shape: bf16[1152,128], index: 1, kind: input, shape index: {}]
  %s2 = inlined_call_operand.vmem [shape: f32[1,128], index: 2, kind: input, shape index: {}]
  %s3 = inlined_call_operand.vmem [shape: f32[1,128], index: 3, kind: input, shape index: {}]
  %s4 = inlined_call_operand.hbm [shape: bf16[1152,128], index: 4, kind: input, shape index: {}]
  %s5 = inlined_call_operand.vmem [shape: f32[1,128], index: 5, kind: input, shape index: {}]
  %s6 = inlined_call_operand.vmem [shape: f32[1,128], index: 6, kind: input, shape index: {}]
  %s7 = inlined_call_operand.hbm [shape: f32[8,64,128], index: 7, kind: output, shape index: {}]
  %s8 = sld [smem:[#allocation0]]
  $region73: #{conv_res_block.1} parent=0
    _
  %s10 = ssub.s32 1, %s8
  %s11 = scalar_select 0, %s10, %s8
  $region1: #{conv_res_block.1} parent=0
    #allocation2 [shape = 'u8[262144]{0}', space=vmem, size = 0x40000, scoped, tag = 'input window, operand 0']
    #allocation3 [shape = 's32[2]{0}', space=sflag, size = 0x8, scoped, tag = 'scoped memory for conv_res_block.1']
    #allocation4 [shape = 's32[2]{0}', space=sflag, size = 0x8, scoped, tag = 'scoped memory for conv_res_block.1']
    #allocation5 [shape = 'u8[294912]{0}', space=vmem, size = 0x48000, scoped, tag = 'input window, operand 1, single buffered']
    #allocation6 [shape = 's32[1]{0}', space=sflag, size = 0x4, scoped, tag = 'scoped memory for conv_res_block.1']
    #allocation7 [shape = 'u8[294912]{0}', space=vmem, size = 0x48000, scoped, tag = 'input window, operand 4, single buffered']
    #allocation8 [shape = 'u8[262144]{0}', space=vmem, size = 0x40000, scoped, tag = 'output window, operand 0']
    %12 = vsyncpa [#allocation3], 0
    %s13 = scalar_lea.sflag [#allocation3], 1
    %14 = vsyncpa %s13, 0
    %15 = vsyncpa [#allocation6], 0
    %16 = vsyncpa [#allocation4], 0
    %s17 = scalar_lea.sflag [#allocation4], 1
    %18 = vsyncpa %s17, 0
    loop: start=0, step=1, limit=4
    $region2: #{conv_res_block.1} parent=1 // loop_pre_header
      _
    $region3: #{conv_res_block.1} parent=1 // loop_header
      %s20 = sphi 0, %s24
      %p21 = scmp.ge.s32.totalorder %s20, 4
      %s30 = sphi 0, %s32
      %s33 = sphi 0, %s30
      %s34 = sphi 0, %s33
      %s50 = sphi 0, %s34
      %s54 = sphi 0, %s54
      %s56 = sphi 0, %s54
      %s57 = sphi 0, %s56
      %s71 = sphi 0, %s57
      %s75 = sphi 0, %s75
      %s77 = sphi 0, %s75
      %s78 = sphi 0, %s77
      %s92 = sphi 0, %s78
      %s96 = sphi 0, %s96
      %s98 = sphi 0, %s96
      %s99 = sphi 0, %s98
      %s113 = sphi 0, %s99
      %s117 = sphi 0, %s117
      %s119 = sphi 0, %s117
      %s120 = sphi 0, %s119
      %s134 = sphi 0, %s120
      %s138 = sphi 0, %s138
      %s140 = sphi 0, %s138
      %s141 = sphi 0, %s140
      %s155 = sphi 0, %s141
      %s159 = sphi 0, %s159
      %s161 = sphi 0, %s159
      %s162 = sphi 0, %s161
      %s176 = sphi 0, %s162
      %s182 = sphi 0, %s184
      %s185 = sphi 0, %s182
      %s186 = sphi 0, %s185
      %s202 = sphi 0, %s186
    $region4: #{conv_res_block.1} parent=1 // loop_header_branch
      %23 = sbr.rel (%p21) target = $region8
    $region5: #{conv_res_block.1} parent=1 // loop_body
      %s25 = ssub.s32 %s20, 1
      %s26 = ssub.s32 %s20, 2
      %s27 = sadd.s32 %s20, 1
      %s28 = ssub.s32 %s20, %s27
      %p29 = scmp.eq.s32.totalorder %s28, 0
      %s31 = sadd.s32 %s30, 1
      %s32 = scalar_select %p29, %s30, %s31
      %p35 = pneg %p29
      %p36 = scmp.eq.s32.totalorder %s20, 1
      %p37 = por %p35, %p36
      %p38 = scmp.ne.s32.totalorder %s30, %s33
      %p39 = scmp.eq.s32.totalorder %s20, 0
      %p40 = por %p38, %p39
      %p41 = scmp.ne.s32.totalorder %s30, %s33
      %p42 = scmp.eq.s32.totalorder %s25, 1
      %p43 = por %p41, %p42
      %p44 = scmp.ne.s32.totalorder %s33, %s34
      %p45 = scmp.eq.s32.totalorder %s25, 0
      %p46 = por %p44, %p45
      %p47 = scmp.ne.s32.totalorder %s33, %s34
      %p48 = scmp.eq.s32.totalorder %s26, 1
      %p49 = por %p47, %p48
      %p51 = scmp.ne.s32.totalorder %s34, %s50
      %p52 = scmp.eq.s32.totalorder %s26, 0
      %p53 = por %p51, %p52
      %s55 = sadd.s32 %s54, 1
      %p58 = scmp.eq.s32.totalorder %s20, 1
      %p59 = scmp.ne.s32.totalorder %s54, %s56
      %p60 = scmp.eq.s32.totalorder %s20, 0
      %p61 = por %p59, %p60
      %p62 = scmp.ne.s32.totalorder %s54, %s56
      %p63 = scmp.eq.s32.totalorder %s25, 1
      %p64 = por %p62, %p63
      %p65 = scmp.ne.s32.totalorder %s56, %s57
      %p66 = scmp.eq.s32.totalorder %s25, 0
      %p67 = por %p65, %p66
      %p68 = scmp.ne.s32.totalorder %s56, %s57
      %p69 = scmp.eq.s32.totalorder %s26, 1
      %p70 = por %p68, %p69
      %p72 = scmp.ne.s32.totalorder %s57, %s71
      %p73 = scmp.eq.s32.totalorder %s26, 0
      %p74 = por %p72, %p73
      %s76 = sadd.s32 %s75, 1
      %p79 = scmp.eq.s32.totalorder %s20, 1
      %p80 = scmp.ne.s32.totalorder %s75, %s77
      %p81 = scmp.eq.s32.totalorder %s20, 0
      %p82 = por %p80, %p81
      %p83 = scmp.ne.s32.totalorder %s75, %s77
      %p84 = scmp.eq.s32.totalorder %s25, 1
      %p85 = por %p83, %p84
      %p86 = scmp.ne.s32.totalorder %s77, %s78
      %p87 = scmp.eq.s32.totalorder %s25, 0
      %p88 = por %p86, %p87
      %p89 = scmp.ne.s32.totalorder %s77, %s78
      %p90 = scmp.eq.s32.totalorder %s26, 1
      %p91 = por %p89, %p90
      %p93 = scmp.ne.s32.totalorder %s78, %s92
      %p94 = scmp.eq.s32.totalorder %s26, 0
      %p95 = por %p93, %p94
      %s97 = sadd.s32 %s96, 1
      %p100 = scmp.eq.s32.totalorder %s20, 1
      %p101 = scmp.ne.s32.totalorder %s96, %s98
      %p102 = scmp.eq.s32.totalorder %s20, 0
      %p103 = por %p101, %p102
      %p104 = scmp.ne.s32.totalorder %s96, %s98
      %p105 = scmp.eq.s32.totalorder %s25, 1
      %p106 = por %p104, %p105
      %p107 = scmp.ne.s32.totalorder %s98, %s99
      %p108 = scmp.eq.s32.totalorder %s25, 0
      %p109 = por %p107, %p108
      %p110 = scmp.ne.s32.totalorder %s98, %s99
      %p111 = scmp.eq.s32.totalorder %s26, 1
      %p112 = por %p110, %p111
      %p114 = scmp.ne.s32.totalorder %s99, %s113
      %p115 = scmp.eq.s32.totalorder %s26, 0
      %p116 = por %p114, %p115
      %s118 = sadd.s32 %s117, 1
      %p121 = scmp.eq.s32.totalorder %s20, 1
      %p122 = scmp.ne.s32.totalorder %s117, %s119
      %p123 = scmp.eq.s32.totalorder %s20, 0
      %p124 = por %p122, %p123
      %p125 = scmp.ne.s32.totalorder %s117, %s119
      %p126 = scmp.eq.s32.totalorder %s25, 1
      %p127 = por %p125, %p126
      %p128 = scmp.ne.s32.totalorder %s119, %s120
      %p129 = scmp.eq.s32.totalorder %s25, 0
      %p130 = por %p128, %p129
      %p131 = scmp.ne.s32.totalorder %s119, %s120
      %p132 = scmp.eq.s32.totalorder %s26, 1
      %p133 = por %p131, %p132
      %p135 = scmp.ne.s32.totalorder %s120, %s134
      %p136 = scmp.eq.s32.totalorder %s26, 0
      %p137 = por %p135, %p136
      %s139 = sadd.s32 %s138, 1
      %p142 = scmp.eq.s32.totalorder %s20, 1
      %p143 = scmp.ne.s32.totalorder %s138, %s140
      %p144 = scmp.eq.s32.totalorder %s20, 0
      %p145 = por %p143, %p144
      %p146 = scmp.ne.s32.totalorder %s138, %s140
      %p147 = scmp.eq.s32.totalorder %s25, 1
      %p148 = por %p146, %p147
      %p149 = scmp.ne.s32.totalorder %s140, %s141
      %p150 = scmp.eq.s32.totalorder %s25, 0
      %p151 = por %p149, %p150
      %p152 = scmp.ne.s32.totalorder %s140, %s141
      %p153 = scmp.eq.s32.totalorder %s26, 1
      %p154 = por %p152, %p153
      %p156 = scmp.ne.s32.totalorder %s141, %s155
      %p157 = scmp.eq.s32.totalorder %s26, 0
      %p158 = por %p156, %p157
      %s160 = sadd.s32 %s159, 1
      %p163 = scmp.eq.s32.totalorder %s20, 1
      %p164 = scmp.ne.s32.totalorder %s159, %s161
      %p165 = scmp.eq.s32.totalorder %s20, 0
      %p166 = por %p164, %p165
      %p167 = scmp.ne.s32.totalorder %s159, %s161
      %p168 = scmp.eq.s32.totalorder %s25, 1
      %p169 = por %p167, %p168
      %p170 = scmp.ne.s32.totalorder %s161, %s162
      %p171 = scmp.eq.s32.totalorder %s25, 0
      %p172 = por %p170, %p171
      %p173 = scmp.ne.s32.totalorder %s161, %s162
      %p174 = scmp.eq.s32.totalorder %s26, 1
      %p175 = por %p173, %p174
      %p177 = scmp.ne.s32.totalorder %s162, %s176
      %p178 = scmp.eq.s32.totalorder %s26, 0
      %p179 = por %p177, %p178
      %s180 = ssub.s32 %s20, %s27
      %p181 = scmp.eq.s32.totalorder %s180, 0
      %s183 = sadd.s32 %s182, 1
      %s184 = scalar_select %p181, %s182, %s183
      %p187 = pneg %p181
      %p188 = scmp.eq.s32.totalorder %s20, 1
      %p189 = por %p187, %p188
      %p190 = scmp.ne.s32.totalorder %s182, %s185
      %p191 = scmp.eq.s32.totalorder %s20, 0
      %p192 = por %p190, %p191
      %p193 = scmp.ne.s32.totalorder %s182, %s185
      %p194 = scmp.eq.s32.totalorder %s25, 1
      %p195 = por %p193, %p194
      %p196 = scmp.ne.s32.totalorder %s185, %s186
      %p197 = scmp.eq.s32.totalorder %s25, 0
      %p198 = por %p196, %p197
      %p199 = scmp.ne.s32.totalorder %s185, %s186
      %p200 = scmp.eq.s32.totalorder %s26, 1
      %p201 = por %p199, %p200
      %p203 = scmp.ne.s32.totalorder %s186, %s202
      %p204 = scmp.eq.s32.totalorder %s26, 0
      %p205 = por %p203, %p204
      %p206 = scmp.le.s32.totalorder 1, %s20
      %p207 = scmp.lt.s32.totalorder %s20, 3
      %p208 = pnand %p206, %p207
      %p209 = pneg %p208
      // Predicated region
      $region9: #{conv_res_block.1} parent=5 // pred_check
        _
      $region10: #{conv_res_block.1} parent=5 // pred_check_branch
        %211 = sbr.rel (%p208) target = $region12
      $region11: #{conv_res_block.1} parent=5 // pred_region
        %s212 = ssub.s32 %s20, 1
        // Predicated region
        $region13: #{conv_res_block.1} parent=11 // pred_check
          %p213 = pneg %p67
        $region14: #{conv_res_block.1} parent=11 // pred_check_branch
          %215 = sbr.rel (%p213) target = $region16
        $region15: #{conv_res_block.1} parent=11 // pred_region
          %s217 = ssub.s32 9216, 9216
          %218 = vsyncadd [#allocation6], %s217
          %s219 = sshll.u32 [#allocation5], 4
          %s220 = int_to_ptr.vmem [resolvable:$true] %s219
          %225 = dma.hbm_to_vmem [thread:$0]  %s1, 9216, %s220, [#allocation6], 64, 64, 4
        $region16: #{conv_res_block.1} parent=11 // pred_fallthru
          _
        // Predicated region
        $region17: #{conv_res_block.1} parent=11 // pred_check
          %p226 = pneg %p88
        $region18: #{conv_res_block.1} parent=11 // pred_check_branch
          %228 = sbr.rel (%p226) target = $region20
        $region19: #{conv_res_block.1} parent=11 // pred_region
          _
        $region20: #{conv_res_block.1} parent=11 // pred_fallthru
          _
        // Predicated region
        $region21: #{conv_res_block.1} parent=11 // pred_check
          %p229 = pneg %p109
        $region22: #{conv_res_block.1} parent=11 // pred_check_branch
          %231 = sbr.rel (%p229) target = $region24
        $region23: #{conv_res_block.1} parent=11 // pred_region
          _
        $region24: #{conv_res_block.1} parent=11 // pred_fallthru
          _
        // Predicated region
        $region25: #{conv_res_block.1} parent=11 // pred_check
          %p232 = pneg %p130
        $region26: #{conv_res_block.1} parent=11 // pred_check_branch
          %234 = sbr.rel (%p232) target = $region28
        $region27: #{conv_res_block.1} parent=11 // pred_region
          %s236 = ssub.s32 9216, 9216
          %237 = vsyncadd [#allocation6], %s236
          %s238 = sshll.u32 [#allocation7], 4
          %s239 = int_to_ptr.vmem [resolvable:$true] %s238
          %244 = dma.hbm_to_vmem [thread:$0]  %s4, 9216, %s239, [#allocation6], 64, 64, 4
        $region28: #{conv_res_block.1} parent=11 // pred_fallthru
          _
        // Predicated region
        $region29: #{conv_res_block.1} parent=11 // pred_check
          %p245 = pneg %p151
        $region30: #{conv_res_block.1} parent=11 // pred_check_branch
          %247 = sbr.rel (%p245) target = $region32
        $region31: #{conv_res_block.1} parent=11 // pred_region
          _
        $region32: #{conv_res_block.1} parent=11 // pred_fallthru
          _
        // Predicated region
        $region33: #{conv_res_block.1} parent=11 // pred_check
          %p248 = pneg %p172
        $region34: #{conv_res_block.1} parent=11 // pred_check_branch
          %250 = sbr.rel (%p248) target = $region36
        $region35: #{conv_res_block.1} parent=11 // pred_region
          _
        $region36: #{conv_res_block.1} parent=11 // pred_fallthru
          _
      $region12: #{conv_res_block.1} parent=5 // pred_fallthru
        _
      %p251 = scmp.lt.s32.totalorder %s20, 2
      // Predicated region
      $region37: #{conv_res_block.1} parent=5 // pred_check
        %p252 = pneg %p251
      $region38: #{conv_res_block.1} parent=5 // pred_check_branch
        %254 = sbr.rel (%p252) target = $region40
      $region39: #{conv_res_block.1} parent=5 // pred_region
        // Predicated region
        $region41: #{conv_res_block.1} parent=39 // pred_check
          %p255 = pneg %p40
        $region42: #{conv_res_block.1} parent=39 // pred_check_branch
          %257 = sbr.rel (%p255) target = $region44
        $region43: #{conv_res_block.1} parent=39 // pred_region
          %s258 = sand.u32 %s30, 1
          %s259 = scalar_lea.sflag [#allocation3], %s258
          %s260 = sand.u32 %s30, 1
          %s261 = smul.addr %s260, 256
          %s262 = scalar_lea.vmem [#allocation2], %s261
          %s263 = smul.u32 4, %s20
          %s265 = ssub.s32 4096, 4096
          %266 = vsyncadd %s259, %s265
          %s267 = smul.addr %s263, 8
          %s268 = smul.addr %s267, 128
          %s269 = scalar_lea.hbm %s0, %s268
          %s270 = sshll.u32 %s262, 4
          %s271 = int_to_ptr.vmem [resolvable:$true] %s270
          %276 = dma.hbm_to_vmem [thread:$0]  %s269, 4096, %s271, %s259, 128, 128, 8
        $region44: #{conv_res_block.1} parent=39 // pred_fallthru
          _
      $region40: #{conv_res_block.1} parent=5 // pred_fallthru
        _
      %p277 = scmp.le.s32.totalorder 1, %s20
      %p278 = scmp.lt.s32.totalorder %s20, 3
      %p279 = pnand %p277, %p278
      %p280 = pneg %p279
      // Predicated region
      $region45: #{conv_res_block.1} parent=5 // pred_check
        _
      $region46: #{conv_res_block.1} parent=5 // pred_check_branch
        %282 = sbr.rel (%p279) target = $region48
      $region47: #{conv_res_block.1} parent=5 // pred_region
        %s283 = ssub.s32 %s20, 1
        %s284 = sand.u32 %s33, 1
        %s285 = scalar_lea.sflag [#allocation3], %s284
        %s286 = sand.u32 %s33, 1
        %s287 = smul.addr %s286, 256
        %s288 = scalar_lea.vmem [#allocation2], %s287
        // Predicated region
        $region49: #{conv_res_block.1} parent=47 // pred_check
          %p289 = pneg %p46
        $region50: #{conv_res_block.1} parent=47 // pred_check_branch
          %291 = sbr.rel (%p289) target = $region52
        $region51: #{conv_res_block.1} parent=47 // pred_region
          %292 = dma.done %s285, 4096
        $region52: #{conv_res_block.1} parent=47 // pred_fallthru
          _
        // Predicated region
        $region53: #{conv_res_block.1} parent=47 // pred_check
          %p293 = pneg %p67
        $region54: #{conv_res_block.1} parent=47 // pred_check_branch
          %295 = sbr.rel (%p293) target = $region56
        $region55: #{conv_res_block.1} parent=47 // pred_region
          %296 = dma.done [#allocation6], 9216
        $region56: #{conv_res_block.1} parent=47 // pred_fallthru
          _
        // Predicated region
        $region57: #{conv_res_block.1} parent=47 // pred_check
          %p297 = pneg %p130
        $region58: #{conv_res_block.1} parent=47 // pred_check_branch
          %299 = sbr.rel (%p297) target = $region60
        $region59: #{conv_res_block.1} parent=47 // pred_region
          %300 = dma.done [#allocation6], 9216
        $region60: #{conv_res_block.1} parent=47 // pred_fallthru
          _
        %s301 = sand.u32 %s33, 1
        %s302 = scalar_lea.sflag [#allocation3], %s301
        %s303 = sand.u32 %s33, 1
        %s304 = smul.addr %s303, 256
        %s305 = scalar_lea.vmem [#allocation2], %s304
        %p306 = pneg %p46
        %p307 = pneg %p43
        %p308 = pneg %p67
        %p309 = pneg %p64
        %p310 = pneg %p88
        %p311 = pneg %p85
        %p312 = pneg %p109
        %p313 = pneg %p106
        %p314 = pneg %p130
        %p315 = pneg %p127
        %p316 = pneg %p151
        %p317 = pneg %p148
        %p318 = pneg %p172
        %p319 = pneg %p169
        %p320 = pneg %p198
        %p321 = pneg %p195
        %s322 = sand.u32 %s185, 1
        %s323 = scalar_lea.sflag [#allocation4], %s322
        %s324 = sand.u32 %s185, 1
        %s325 = smul.addr %s324, 256
        %s326 = scalar_lea.vmem [#allocation8], %s325
        %s327 = smul.u32 4, %s25
        %s328 = smul.u32 4, %s25
        %v330 = vlaneseq
        %v331 = vshrl.u32 %v330, 7
        %v332 = vadd.s32 %v331, 8
        %v333 = vadd.s32 %v331, 16
        %v334 = vadd.s32 %v331, 24
        %v335 = vadd.s32 %v331, 32
        %v336 = vadd.s32 %v331, 40
        %v337 = vadd.s32 %v331, 48
        %v338 = vadd.s32 %v331, 56
        %vm339 = vcmp.lt.s32.totalorder %v331, 0
        %v340 = vsub.s32 0, %v331
        %v341 = vsel %vm339, %v340, %v331
        %v342 = vshrl.u32 %v341, 3
        %v343 = vand.u32 %v341, 7
        %v344 = vsub.s32 0, %v343
        %v345 = vsel %vm339, %v344, %v343
        %vm346 = vcmp.lt.s32.totalorder %v332, 0
        %v347 = vsub.s32 0, %v332
        %v348 = vsel %vm346, %v347, %v332
        %v349 = vshrl.u32 %v348, 3
        %v350 = vand.u32 %v348, 7
        %v351 = vsub.s32 0, %v350
        %v352 = vsel %vm346, %v351, %v350
        %vm353 = vcmp.lt.s32.totalorder %v333, 0
        %v354 = vsub.s32 0, %v333
        %v355 = vsel %vm353, %v354, %v333
        %v356 = vshrl.u32 %v355, 3
        %v357 = vand.u32 %v355, 7
        %v358 = vsub.s32 0, %v357
        %v359 = vsel %vm353, %v358, %v357
        %vm360 = vcmp.lt.s32.totalorder %v334, 0
        %v361 = vsub.s32 0, %v334
        %v362 = vsel %vm360, %v361, %v334
        %v363 = vshrl.u32 %v362, 3
        %v364 = vand.u32 %v362, 7
        %v365 = vsub.s32 0, %v364
        %v366 = vsel %vm360, %v365, %v364
        %vm367 = vcmp.lt.s32.totalorder %v335, 0
        %v368 = vsub.s32 0, %v335
        %v369 = vsel %vm367, %v368, %v335
        %v370 = vshrl.u32 %v369, 3
        %v371 = vand.u32 %v369, 7
        %v372 = vsub.s32 0, %v371
        %v373 = vsel %vm367, %v372, %v371
        %vm374 = vcmp.lt.s32.totalorder %v336, 0
        %v375 = vsub.s32 0, %v336
        %v376 = vsel %vm374, %v375, %v336
        %v377 = vshrl.u32 %v376, 3
        %v378 = vand.u32 %v376, 7
        %v379 = vsub.s32 0, %v378
        %v380 = vsel %vm374, %v379, %v378
        %vm381 = vcmp.lt.s32.totalorder %v337, 0
        %v382 = vsub.s32 0, %v337
        %v383 = vsel %vm381, %v382, %v337
        %v384 = vshrl.u32 %v383, 3
        %v385 = vand.u32 %v383, 7
        %v386 = vsub.s32 0, %v385
        %v387 = vsel %vm381, %v386, %v385
        %vm388 = vcmp.lt.s32.totalorder %v338, 0
        %v389 = vsub.s32 0, %v338
        %v390 = vsel %vm388, %v389, %v338
        %v391 = vshrl.u32 %v390, 3
        %v392 = vand.u32 %v390, 7
        %v393 = vsub.s32 0, %v392
        %v394 = vsel %vm388, %v393, %v392
        %vm395 = vcmp.ne.s32.totalorder %v345, 0
        %vm396 = vcmp.ne.s32.totalorder %v352, 0
        %vm397 = vcmp.ne.s32.totalorder %v359, 0
        %vm398 = vcmp.ne.s32.totalorder %v366, 0
        %vm399 = vcmp.ne.s32.totalorder %v373, 0
        %vm400 = vcmp.ne.s32.totalorder %v380, 0
        %vm401 = vcmp.ne.s32.totalorder %v387, 0
        %vm402 = vcmp.ne.s32.totalorder %v394, 0
        %vm403 = vcmp.lt.s32.totalorder %v345, 0
        %vm404 = vcmp.lt.s32.totalorder %v352, 0
        %vm405 = vcmp.lt.s32.totalorder %v359, 0
        %vm406 = vcmp.lt.s32.totalorder %v366, 0
        %vm407 = vcmp.lt.s32.totalorder %v373, 0
        %vm408 = vcmp.lt.s32.totalorder %v380, 0
        %vm409 = vcmp.lt.s32.totalorder %v387, 0
        %vm410 = vcmp.lt.s32.totalorder %v394, 0
        %vm411 = vmand %vm403, %vm395
        %vm412 = vmand %vm404, %vm396
        %vm413 = vmand %vm405, %vm397
        %vm414 = vmand %vm406, %vm398
        %vm415 = vmand %vm407, %vm399
        %vm416 = vmand %vm408, %vm400
        %vm417 = vmand %vm409, %vm401
        %vm418 = vmand %vm410, %vm402
        %v419 = vadd.s32 %v345, 8
        %v420 = vadd.s32 %v352, 8
        %v421 = vadd.s32 %v359, 8
        %v422 = vadd.s32 %v366, 8
        %v423 = vadd.s32 %v373, 8
        %v424 = vadd.s32 %v380, 8
        %v425 = vadd.s32 %v387, 8
        %v426 = vadd.s32 %v394, 8
        %v427 = vsel %vm411, %v419, %v345
        %v428 = vsel %vm412, %v420, %v352
        %v429 = vsel %vm413, %v421, %v359
        %v430 = vsel %vm414, %v422, %v366
        %v431 = vsel %vm415, %v423, %v373
        %v432 = vsel %vm416, %v424, %v380
        %v433 = vsel %vm417, %v425, %v387
        %v434 = vsel %vm418, %v426, %v394
        %vm435 = vcmp.eq.s32.totalorder %v427, 0
        %vm436 = vcmp.eq.s32.totalorder %v428, 0
        %vm437 = vcmp.eq.s32.totalorder %v429, 0
        %vm438 = vcmp.eq.s32.totalorder %v430, 0
        %vm439 = vcmp.eq.s32.totalorder %v431, 0
        %vm440 = vcmp.eq.s32.totalorder %v432, 0
        %vm441 = vcmp.eq.s32.totalorder %v433, 0
        %vm442 = vcmp.eq.s32.totalorder %v434, 0
        %vm443 = vcmp.eq.s32.totalorder %v427, 7
        %vm444 = vcmp.eq.s32.totalorder %v428, 7
        %vm445 = vcmp.eq.s32.totalorder %v429, 7
        %vm446 = vcmp.eq.s32.totalorder %v430, 7
        %vm447 = vcmp.eq.s32.totalorder %v431, 7
        %vm448 = vcmp.eq.s32.totalorder %v432, 7
        %vm449 = vcmp.eq.s32.totalorder %v433, 7
        %vm450 = vcmp.eq.s32.totalorder %v434, 7
        %v451 = vld [vmem:[%s288] sm:$0xff]
        %v452 = vld [vmem:[%s288 + $0x8] sm:$0xff]
        %v453 = vld [vmem:[%s288 + $0x10] sm:$0xff]
        %v454 = vld [vmem:[%s288 + $0x18] sm:$0xff]
        %v455 = vld [vmem:[%s288 + $0x20] sm:$0xff]
        %v456 = vld [vmem:[%s288 + $0x28] sm:$0xff]
        %v457 = vld [vmem:[%s288 + $0x30] sm:$0xff]
        %v458 = vld [vmem:[%s288 + $0x38] sm:$0xff]
        %v459 = vld [vmem:[%s288 + $0x40] sm:$0xff]
        %v460 = vld [vmem:[%s288 + $0x48] sm:$0xff]
        %v461 = vld [vmem:[%s288 + $0x50] sm:$0xff]
        %v462 = vld [vmem:[%s288 + $0x58] sm:$0xff]
        %v463 = vld [vmem:[%s288 + $0x60] sm:$0xff]
        %v464 = vld [vmem:[%s288 + $0x68] sm:$0xff]
        %v465 = vld [vmem:[%s288 + $0x70] sm:$0xff]
        %v466 = vld [vmem:[%s288 + $0x78] sm:$0xff]
        %v467 = vld [vmem:[%s288 + $0x80] sm:$0xff]
        %v468 = vld [vmem:[%s288 + $0x88] sm:$0xff]
        %v469 = vld [vmem:[%s288 + $0x90] sm:$0xff]
        %v470 = vld [vmem:[%s288 + $0x98] sm:$0xff]
        %v471 = vld [vmem:[%s288 + $0xa0] sm:$0xff]
        %v472 = vld [vmem:[%s288 + $0xa8] sm:$0xff]
        %v473 = vld [vmem:[%s288 + $0xb0] sm:$0xff]
        %v474 = vld [vmem:[%s288 + $0xb8] sm:$0xff]
        %v475 = vld [vmem:[%s288 + $0xc0] sm:$0xff]
        %v476 = vld [vmem:[%s288 + $0xc8] sm:$0xff]
        %v477 = vld [vmem:[%s288 + $0xd0] sm:$0xff]
        %v478 = vld [vmem:[%s288 + $0xd8] sm:$0xff]
        %v479 = vld [vmem:[%s288 + $0xe0] sm:$0xff]
        %v480 = vld [vmem:[%s288 + $0xe8] sm:$0xff]
        %v481 = vld [vmem:[%s288 + $0xf0] sm:$0xff]
        %v482 = vld [vmem:[%s288 + $0xf8] sm:$0xff]
        %v483 = vld [vmem:[%s2] sm:$0x1]
        %v484 = vld [vmem:[%s3] sm:$0x1]
        %v485 = vsel %vm443, 1, 0
        %v486 = vsel %vm444, 1, 0
        %v487 = vsel %vm445, 1, 0
        %v488 = vsel %vm446, 1, 0
        %v489 = vsel %vm447, 1, 0
        %v490 = vsel %vm448, 1, 0
        %v491 = vsel %vm449, 1, 0
        %v492 = vsel %vm450, 1, 0
        %vm493 = vcmp.eq.s32.totalorder %v485, 1
        %vm494 = vcmp.eq.s32.totalorder %v486, 1
        %vm495 = vcmp.eq.s32.totalorder %v487, 1
        %vm496 = vcmp.eq.s32.totalorder %v488, 1
        %vm497 = vcmp.eq.s32.totalorder %v489, 1
        %vm498 = vcmp.eq.s32.totalorder %v490, 1
        %vm499 = vcmp.eq.s32.totalorder %v491, 1
        %vm500 = vcmp.eq.s32.totalorder %v492, 1
        %v501 = vsel %vm493, 0.0, %v451
        %v502 = vsel %vm494, 0.0, %v452
        %v503 = vsel %vm495, 0.0, %v453
        %v504 = vsel %vm496, 0.0, %v454
        %v505 = vsel %vm497, 0.0, %v455
        %v506 = vsel %vm498, 0.0, %v456
        %v507 = vsel %vm499, 0.0, %v457
        %v508 = vsel %vm500, 0.0, %v458
        %v509 = vsel %vm493, 0.0, %v459
        %v510 = vsel %vm494, 0.0, %v460
        %v511 = vsel %vm495, 0.0, %v461
        %v512 = vsel %vm496, 0.0, %v462
        %v513 = vsel %vm497, 0.0, %v463
        %v514 = vsel %vm498, 0.0, %v464
        %v515 = vsel %vm499, 0.0, %v465
        %v516 = vsel %vm500, 0.0, %v466
        %v517 = vsel %vm493, 0.0, %v467
        %v518 = vsel %vm494, 0.0, %v468
        %v519 = vsel %vm495, 0.0, %v469
        %v520 = vsel %vm496, 0.0, %v470
        %v521 = vsel %vm497, 0.0, %v471
        %v522 = vsel %vm498, 0.0, %v472
        %v523 = vsel %vm499, 0.0, %v473
        %v524 = vsel %vm500, 0.0, %v474
        %v525 = vsel %vm493, 0.0, %v475
        %v526 = vsel %vm494, 0.0, %v476
        %v527 = vsel %vm495, 0.0, %v477
        %v528 = vsel %vm496, 0.0, %v478
        %v529 = vsel %vm497, 0.0, %v479
        %v530 = vsel %vm498, 0.0, %v480
        %v531 = vsel %vm499, 0.0, %v481
        %v532 = vsel %vm500, 0.0, %v482
        %v533 = vpack.c.bf16 %v502, %v501
        %v534 = vpack.c.bf16 %v504, %v503
        %v535 = vpack.c.bf16 %v506, %v505
        %v536 = vpack.c.bf16 %v508, %v507
        %v537 = vpack.c.bf16 %v510, %v509
        %v538 = vpack.c.bf16 %v512, %v511
        %v539 = vpack.c.bf16 %v514, %v513
        %v540 = vpack.c.bf16 %v516, %v515
        %v541 = vpack.c.bf16 %v518, %v517
        %v542 = vpack.c.bf16 %v520, %v519
        %v543 = vpack.c.bf16 %v522, %v521
        %v544 = vpack.c.bf16 %v524, %v523
        %v545 = vpack.c.bf16 %v526, %v525
        %v546 = vpack.c.bf16 %v528, %v527
        %v547 = vpack.c.bf16 %v530, %v529
        %v548 = vpack.c.bf16 %v532, %v531
        %vm549 = vsmask.f32 4352
        %v551 = vshrl.u32 %v533, 16
        %v553 = vrot.slane %v551, 3
        %v554 = vshll.u32 %v533, 16
        %v556 = vrot.slane %v554, 4
        %v557 = vor.u32 %v553, %v556
        %v559 = vshrl.u32 %v534, 16
        %v561 = vrot.slane %v559, 3
        %v562 = vshll.u32 %v534, 16
        %v564 = vrot.slane %v562, 4
        %v565 = vor.u32 %v561, %v564
        %v566 = vsel %vm549, %v557, %v565
        %v568 = vshrl.u32 %v535, 16
        %v570 = vrot.slane %v568, 3
        %v571 = vshll.u32 %v535, 16
        %v573 = vrot.slane %v571, 4
        %v574 = vor.u32 %v570, %v573
        %v575 = vsel %vm549, %v565, %v574
        %v577 = vshrl.u32 %v536, 16
        %v579 = vrot.slane %v577, 3
        %v580 = vshll.u32 %v536, 16
        %v582 = vrot.slane %v580, 4
        %v583 = vor.u32 %v579, %v582
        %v584 = vsel %vm549, %v574, %v583
        %v586 = vshrl.u32 %v537, 16
        %v588 = vrot.slane %v586, 3
        %v589 = vshll.u32 %v537, 16
        %v591 = vrot.slane %v589, 4
        %v592 = vor.u32 %v588, %v591
        %v594 = vshrl.u32 %v538, 16
        %v596 = vrot.slane %v594, 3
        %v597 = vshll.u32 %v538, 16
        %v599 = vrot.slane %v597, 4
        %v600 = vor.u32 %v596, %v599
        %v601 = vsel %vm549, %v592, %v600
        %v603 = vshrl.u32 %v539, 16
        %v605 = vrot.slane %v603, 3
        %v606 = vshll.u32 %v539, 16
        %v608 = vrot.slane %v606, 4
        %v609 = vor.u32 %v605, %v608
        %v610 = vsel %vm549, %v600, %v609
        %v612 = vshrl.u32 %v540, 16
        %v614 = vrot.slane %v612, 3
        %v615 = vshll.u32 %v540, 16
        %v617 = vrot.slane %v615, 4
        %v618 = vor.u32 %v614, %v617
        %v619 = vsel %vm549, %v609, %v618
        %v621 = vshrl.u32 %v541, 16
        %v623 = vrot.slane %v621, 3
        %v624 = vshll.u32 %v541, 16
        %v626 = vrot.slane %v624, 4
        %v627 = vor.u32 %v623, %v626
        %v629 = vshrl.u32 %v542, 16
        %v631 = vrot.slane %v629, 3
        %v632 = vshll.u32 %v542, 16
        %v634 = vrot.slane %v632, 4
        %v635 = vor.u32 %v631, %v634
        %v636 = vsel %vm549, %v627, %v635
        %v638 = vshrl.u32 %v543, 16
        %v640 = vrot.slane %v638, 3
        %v641 = vshll.u32 %v543, 16
        %v643 = vrot.slane %v641, 4
        %v644 = vor.u32 %v640, %v643
        %v645 = vsel %vm549, %v635, %v644
        %v647 = vshrl.u32 %v544, 16
        %v649 = vrot.slane %v647, 3
        %v650 = vshll.u32 %v544, 16
        %v652 = vrot.slane %v650, 4
        %v653 = vor.u32 %v649, %v652
        %v654 = vsel %vm549, %v644, %v653
        %v656 = vshrl.u32 %v545, 16
        %v658 = vrot.slane %v656, 3
        %v659 = vshll.u32 %v545, 16
        %v661 = vrot.slane %v659, 4
        %v662 = vor.u32 %v658, %v661
        %v664 = vshrl.u32 %v546, 16
        %v666 = vrot.slane %v664, 3
        %v667 = vshll.u32 %v546, 16
        %v669 = vrot.slane %v667, 4
        %v670 = vor.u32 %v666, %v669
        %v671 = vsel %vm549, %v662, %v670
        %v673 = vshrl.u32 %v547, 16
        %v675 = vrot.slane %v673, 3
        %v676 = vshll.u32 %v547, 16
        %v678 = vrot.slane %v676, 4
        %v679 = vor.u32 %v675, %v678
        %v680 = vsel %vm549, %v670, %v679
        %v682 = vshrl.u32 %v548, 16
        %v684 = vrot.slane %v682, 3
        %v685 = vshll.u32 %v548, 16
        %v687 = vrot.slane %v685, 4
        %v688 = vor.u32 %v684, %v687
        %v689 = vsel %vm549, %v679, %v688
        %vm710 = vcmask 1044480
        %vm711 = vmand %vm710, %vm549
        %v712 = vsel %vm711, 0, %v557
        %v713 = vsel %vm711, 0, %v592
        %v714 = vsel %vm711, 0, %v627
        %v715 = vsel %vm711, 0, %v662
        %v716 = vsel %vm711, %v583, 0
        %v717 = vsel %vm711, %v618, 0
        %v718 = vsel %vm711, %v653, 0
        %v719 = vsel %vm711, %v688, 0
        %v720 = vpack.c.bf16 %v452, %v451
        %v721 = vpack.c.bf16 %v454, %v453
        %v722 = vpack.c.bf16 %v456, %v455
        %v723 = vpack.c.bf16 %v458, %v457
        %v724 = vpack.c.bf16 %v460, %v459
        %v725 = vpack.c.bf16 %v462, %v461
        %v726 = vpack.c.bf16 %v464, %v463
        %v727 = vpack.c.bf16 %v466, %v465
        %v728 = vpack.c.bf16 %v468, %v467
        %v729 = vpack.c.bf16 %v470, %v469
        %v730 = vpack.c.bf16 %v472, %v471
        %v731 = vpack.c.bf16 %v474, %v473
        %v732 = vpack.c.bf16 %v476, %v475
        %v733 = vpack.c.bf16 %v478, %v477
        %v734 = vpack.c.bf16 %v480, %v479
        %v735 = vpack.c.bf16 %v482, %v481
        %v737 = vshrl.u32 %v720, 16
        %v739 = vrot.slane %v737, 3
        %v740 = vshll.u32 %v720, 16
        %v742 = vrot.slane %v740, 4
        %v743 = vor.u32 %v739, %v742
        %v745 = vshrl.u32 %v721, 16
        %v747 = vrot.slane %v745, 3
        %v748 = vshll.u32 %v721, 16
        %v750 = vrot.slane %v748, 4
        %v751 = vor.u32 %v747, %v750
        %v752 = vsel %vm549, %v743, %v751
        %v754 = vshrl.u32 %v722, 16
        %v756 = vrot.slane %v754, 3
        %v757 = vshll.u32 %v722, 16
        %v759 = vrot.slane %v757, 4
        %v760 = vor.u32 %v756, %v759
        %v761 = vsel %vm549, %v751, %v760
        %v763 = vshrl.u32 %v723, 16
        %v765 = vrot.slane %v763, 3
        %v766 = vshll.u32 %v723, 16
        %v768 = vrot.slane %v766, 4
        %v769 = vor.u32 %v765, %v768
        %v770 = vsel %vm549, %v760, %v769
        %v772 = vshrl.u32 %v724, 16
        %v774 = vrot.slane %v772, 3
        %v775 = vshll.u32 %v724, 16
        %v777 = vrot.slane %v775, 4
        %v778 = vor.u32 %v774, %v777
        %v780 = vshrl.u32 %v725, 16
        %v782 = vrot.slane %v780, 3
        %v783 = vshll.u32 %v725, 16
        %v785 = vrot.slane %v783, 4
        %v786 = vor.u32 %v782, %v785
        %v787 = vsel %vm549, %v778, %v786
        %v789 = vshrl.u32 %v726, 16
        %v791 = vrot.slane %v789, 3
        %v792 = vshll.u32 %v726, 16
        %v794 = vrot.slane %v792, 4
        %v795 = vor.u32 %v791, %v794
        %v796 = vsel %vm549, %v786, %v795
        %v798 = vshrl.u32 %v727, 16
        %v800 = vrot.slane %v798, 3
        %v801 = vshll.u32 %v727, 16
        %v803 = vrot.slane %v801, 4
        %v804 = vor.u32 %v800, %v803
        %v805 = vsel %vm549, %v795, %v804
        %v807 = vshrl.u32 %v728, 16
        %v809 = vrot.slane %v807, 3
        %v810 = vshll.u32 %v728, 16
        %v812 = vrot.slane %v810, 4
        %v813 = vor.u32 %v809, %v812
        %v815 = vshrl.u32 %v729, 16
        %v817 = vrot.slane %v815, 3
        %v818 = vshll.u32 %v729, 16
        %v820 = vrot.slane %v818, 4
        %v821 = vor.u32 %v817, %v820
        %v822 = vsel %vm549, %v813, %v821
        %v824 = vshrl.u32 %v730, 16
        %v826 = vrot.slane %v824, 3
        %v827 = vshll.u32 %v730, 16
        %v829 = vrot.slane %v827, 4
        %v830 = vor.u32 %v826, %v829
        %v831 = vsel %vm549, %v821, %v830
        %v833 = vshrl.u32 %v731, 16
        %v835 = vrot.slane %v833, 3
        %v836 = vshll.u32 %v731, 16
        %v838 = vrot.slane %v836, 4
        %v839 = vor.u32 %v835, %v838
        %v840 = vsel %vm549, %v830, %v839
        %v842 = vshrl.u32 %v732, 16
        %v844 = vrot.slane %v842, 3
        %v845 = vshll.u32 %v732, 16
        %v847 = vrot.slane %v845, 4
        %v848 = vor.u32 %v844, %v847
        %v850 = vshrl.u32 %v733, 16
        %v852 = vrot.slane %v850, 3
        %v853 = vshll.u32 %v733, 16
        %v855 = vrot.slane %v853, 4
        %v856 = vor.u32 %v852, %v855
        %v857 = vsel %vm549, %v848, %v856
        %v859 = vshrl.u32 %v734, 16
        %v861 = vrot.slane %v859, 3
        %v862 = vshll.u32 %v734, 16
        %v864 = vrot.slane %v862, 4
        %v865 = vor.u32 %v861, %v864
        %v866 = vsel %vm549, %v856, %v865
        %v868 = vshrl.u32 %v735, 16
        %v870 = vrot.slane %v868, 3
        %v871 = vshll.u32 %v735, 16
        %v873 = vrot.slane %v871, 4
        %v874 = vor.u32 %v870, %v873
        %v875 = vsel %vm549, %v865, %v874
        %v884 = vsel %vm711, 0, %v743
        %v885 = vsel %vm711, 0, %v778
        %v886 = vsel %vm711, 0, %v813
        %v887 = vsel %vm711, 0, %v848
        %v888 = vsel %vm711, %v769, 0
        %v889 = vsel %vm711, %v804, 0
        %v890 = vsel %vm711, %v839, 0
        %v891 = vsel %vm711, %v874, 0
        %v892 = vsel %vm435, 1, 0
        %v893 = vsel %vm436, 1, 0
        %v894 = vsel %vm437, 1, 0
        %v895 = vsel %vm438, 1, 0
        %v896 = vsel %vm439, 1, 0
        %v897 = vsel %vm440, 1, 0
        %v898 = vsel %vm441, 1, 0
        %v899 = vsel %vm442, 1, 0
        %vm900 = vcmp.eq.s32.totalorder %v892, 1
        %vm901 = vcmp.eq.s32.totalorder %v893, 1
        %vm902 = vcmp.eq.s32.totalorder %v894, 1
        %vm903 = vcmp.eq.s32.totalorder %v895, 1
        %vm904 = vcmp.eq.s32.totalorder %v896, 1
        %vm905 = vcmp.eq.s32.totalorder %v897, 1
        %vm906 = vcmp.eq.s32.totalorder %v898, 1
        %vm907 = vcmp.eq.s32.totalorder %v899, 1
        %v908 = vsel %vm900, 0.0, %v451
        %v909 = vsel %vm901, 0.0, %v452
        %v910 = vsel %vm902, 0.0, %v453
        %v911 = vsel %vm903, 0.0, %v454
        %v912 = vsel %vm904, 0.0, %v455
        %v913 = vsel %vm905, 0.0, %v456
        %v914 = vsel %vm906, 0.0, %v457
        %v915 = vsel %vm907, 0.0, %v458
        %v916 = vsel %vm900, 0.0, %v459
        %v917 = vsel %vm901, 0.0, %v460
        %v918 = vsel %vm902, 0.0, %v461
        %v919 = vsel %vm903, 0.0, %v462
        %v920 = vsel %vm904, 0.0, %v463
        %v921 = vsel %vm905, 0.0, %v464
        %v922 = vsel %vm906, 0.0, %v465
        %v923 = vsel %vm907, 0.0, %v466
        %v924 = vsel %vm900, 0.0, %v467
        %v925 = vsel %vm901, 0.0, %v468
        %v926 = vsel %vm902, 0.0, %v469
        %v927 = vsel %vm903, 0.0, %v470
        %v928 = vsel %vm904, 0.0, %v471
        %v929 = vsel %vm905, 0.0, %v472
        %v930 = vsel %vm906, 0.0, %v473
        %v931 = vsel %vm907, 0.0, %v474
        %v932 = vsel %vm900, 0.0, %v475
        %v933 = vsel %vm901, 0.0, %v476
        %v934 = vsel %vm902, 0.0, %v477
        %v935 = vsel %vm903, 0.0, %v478
        %v936 = vsel %vm904, 0.0, %v479
        %v937 = vsel %vm905, 0.0, %v480
        %v938 = vsel %vm906, 0.0, %v481
        %v939 = vsel %vm907, 0.0, %v482
        %v940 = vpack.c.bf16 %v909, %v908
        %v941 = vpack.c.bf16 %v911, %v910
        %v942 = vpack.c.bf16 %v913, %v912
        %v943 = vpack.c.bf16 %v915, %v914
        %v944 = vpack.c.bf16 %v917, %v916
        %v945 = vpack.c.bf16 %v919, %v918
        %v946 = vpack.c.bf16 %v921, %v920
        %v947 = vpack.c.bf16 %v923, %v922
        %v948 = vpack.c.bf16 %v925, %v924
        %v949 = vpack.c.bf16 %v927, %v926
        %v950 = vpack.c.bf16 %v929, %v928
        %v951 = vpack.c.bf16 %v931, %v930
        %v952 = vpack.c.bf16 %v933, %v932
        %v953 = vpack.c.bf16 %v935, %v934
        %v954 = vpack.c.bf16 %v937, %v936
        %v955 = vpack.c.bf16 %v939, %v938
        %v957 = vshrl.u32 %v940, 16
        %v959 = vrot.slane %v957, 3
        %v960 = vshll.u32 %v940, 16
        %v962 = vrot.slane %v960, 4
        %v963 = vor.u32 %v959, %v962
        %v965 = vshrl.u32 %v941, 16
        %v967 = vrot.slane %v965, 3
        %v968 = vshll.u32 %v941, 16
        %v970 = vrot.slane %v968, 4
        %v971 = vor.u32 %v967, %v970
        %v972 = vsel %vm549, %v963, %v971
        %v974 = vshrl.u32 %v942, 16
        %v976 = vrot.slane %v974, 3
        %v977 = vshll.u32 %v942, 16
        %v979 = vrot.slane %v977, 4
        %v980 = vor.u32 %v976, %v979
        %v981 = vsel %vm549, %v971, %v980
        %v983 = vshrl.u32 %v943, 16
        %v985 = vrot.slane %v983, 3
        %v986 = vshll.u32 %v943, 16
        %v988 = vrot.slane %v986, 4
        %v989 = vor.u32 %v985, %v988
        %v990 = vsel %vm549, %v980, %v989
        %v992 = vshrl.u32 %v944, 16
        %v994 = vrot.slane %v992, 3
        %v995 = vshll.u32 %v944, 16
        %v997 = vrot.slane %v995, 4
        %v998 = vor.u32 %v994, %v997
        %v1000 = vshrl.u32 %v945, 16
        %v1002 = vrot.slane %v1000, 3
        %v1003 = vshll.u32 %v945, 16
        %v1005 = vrot.slane %v1003, 4
        %v1006 = vor.u32 %v1002, %v1005
        %v1007 = vsel %vm549, %v998, %v1006
        %v1009 = vshrl.u32 %v946, 16
        %v1011 = vrot.slane %v1009, 3
        %v1012 = vshll.u32 %v946, 16
        %v1014 = vrot.slane %v1012, 4
        %v1015 = vor.u32 %v1011, %v1014
        %v1016 = vsel %vm549, %v1006, %v1015
        %v1018 = vshrl.u32 %v947, 16
        %v1020 = vrot.slane %v1018, 3
        %v1021 = vshll.u32 %v947, 16
        %v1023 = vrot.slane %v1021, 4
        %v1024 = vor.u32 %v1020, %v1023
        %v1025 = vsel %vm549, %v1015, %v1024
        %v1027 = vshrl.u32 %v948, 16
        %v1029 = vrot.slane %v1027, 3
        %v1030 = vshll.u32 %v948, 16
        %v1032 = vrot.slane %v1030, 4
        %v1033 = vor.u32 %v1029, %v1032
        %v1035 = vshrl.u32 %v949, 16
        %v1037 = vrot.slane %v1035, 3
        %v1038 = vshll.u32 %v949, 16
        %v1040 = vrot.slane %v1038, 4
        %v1041 = vor.u32 %v1037, %v1040
        %v1042 = vsel %vm549, %v1033, %v1041
        %v1044 = vshrl.u32 %v950, 16
        %v1046 = vrot.slane %v1044, 3
        %v1047 = vshll.u32 %v950, 16
        %v1049 = vrot.slane %v1047, 4
        %v1050 = vor.u32 %v1046, %v1049
        %v1051 = vsel %vm549, %v1041, %v1050
        %v1053 = vshrl.u32 %v951, 16
        %v1055 = vrot.slane %v1053, 3
        %v1056 = vshll.u32 %v951, 16
        %v1058 = vrot.slane %v1056, 4
        %v1059 = vor.u32 %v1055, %v1058
        %v1060 = vsel %vm549, %v1050, %v1059
        %v1062 = vshrl.u32 %v952, 16
        %v1064 = vrot.slane %v1062, 3
        %v1065 = vshll.u32 %v952, 16
        %v1067 = vrot.slane %v1065, 4
        %v1068 = vor.u32 %v1064, %v1067
        %v1070 = vshrl.u32 %v953, 16
        %v1072 = vrot.slane %v1070, 3
        %v1073 = vshll.u32 %v953, 16
        %v1075 = vrot.slane %v1073, 4
        %v1076 = vor.u32 %v1072, %v1075
        %v1077 = vsel %vm549, %v1068, %v1076
        %v1079 = vshrl.u32 %v954, 16
        %v1081 = vrot.slane %v1079, 3
        %v1082 = vshll.u32 %v954, 16
        %v1084 = vrot.slane %v1082, 4
        %v1085 = vor.u32 %v1081, %v1084
        %v1086 = vsel %vm549, %v1076, %v1085
        %v1088 = vshrl.u32 %v955, 16
        %v1090 = vrot.slane %v1088, 3
        %v1091 = vshll.u32 %v955, 16
        %v1093 = vrot.slane %v1091, 4
        %v1094 = vor.u32 %v1090, %v1093
        %v1095 = vsel %vm549, %v1085, %v1094
        %v1104 = vsel %vm711, 0, %v963
        %v1105 = vsel %vm711, 0, %v998
        %v1106 = vsel %vm711, 0, %v1033
        %v1107 = vsel %vm711, 0, %v1068
        %v1108 = vsel %vm711, %v989, 0
        %v1109 = vsel %vm711, %v1024, 0
        %v1110 = vsel %vm711, %v1059, 0
        %v1111 = vsel %vm711, %v1094, 0
        %vm1112 = vsmask.f32 7424
        %v1114 = vshrl.u32 %v884, 16
        %v1116 = vshll.u32 %v884, 16
        %v1118 = vrot.slane %v1116, 1
        %v1119 = vor.u32 %v1114, %v1118
        %v1121 = vshll.u32 %v752, 16
        %v1123 = vrot.slane %v1121, 1
        %v1124 = vsel %vm1112, %v1119, %v1123
        %v1125 = vshrl.u32 %v752, 16
        %v1127 = vor.u32 %v1125, %v1123
        %v1129 = vshll.u32 %v761, 16
        %v1131 = vrot.slane %v1129, 1
        %v1132 = vsel %vm1112, %v1127, %v1131
        %v1133 = vshrl.u32 %v761, 16
        %v1135 = vor.u32 %v1133, %v1131
        %v1137 = vshll.u32 %v770, 16
        %v1139 = vrot.slane %v1137, 1
        %v1140 = vsel %vm1112, %v1135, %v1139
        %v1141 = vshrl.u32 %v770, 16
        %v1143 = vor.u32 %v1141, %v1139
        %v1145 = vshll.u32 %v888, 16
        %v1147 = vrot.slane %v1145, 1
        %v1148 = vsel %vm1112, %v1143, %v1147
        %v1150 = vshrl.u32 %v885, 16
        %v1152 = vshll.u32 %v885, 16
        %v1154 = vrot.slane %v1152, 1
        %v1155 = vor.u32 %v1150, %v1154
        %v1157 = vshll.u32 %v787, 16
        %v1159 = vrot.slane %v1157, 1
        %v1160 = vsel %vm1112, %v1155, %v1159
        %v1161 = vshrl.u32 %v787, 16
        %v1163 = vor.u32 %v1161, %v1159
        %v1165 = vshll.u32 %v796, 16
        %v1167 = vrot.slane %v1165, 1
        %v1168 = vsel %vm1112, %v1163, %v1167
        %v1169 = vshrl.u32 %v796, 16
        %v1171 = vor.u32 %v1169, %v1167
        %v1173 = vshll.u32 %v805, 16
        %v1175 = vrot.slane %v1173, 1
        %v1176 = vsel %vm1112, %v1171, %v1175
        %v1177 = vshrl.u32 %v805, 16
        %v1179 = vor.u32 %v1177, %v1175
        %v1181 = vshll.u32 %v889, 16
        %v1183 = vrot.slane %v1181, 1
        %v1184 = vsel %vm1112, %v1179, %v1183
        %v1186 = vshrl.u32 %v886, 16
        %v1188 = vshll.u32 %v886, 16
        %v1190 = vrot.slane %v1188, 1
        %v1191 = vor.u32 %v1186, %v1190
        %v1193 = vshll.u32 %v822, 16
        %v1195 = vrot.slane %v1193, 1
        %v1196 = vsel %vm1112, %v1191, %v1195
        %v1197 = vshrl.u32 %v822, 16
        %v1199 = vor.u32 %v1197, %v1195
        %v1201 = vshll.u32 %v831, 16
        %v1203 = vrot.slane %v1201, 1
        %v1204 = vsel %vm1112, %v1199, %v1203
        %v1205 = vshrl.u32 %v831, 16
        %v1207 = vor.u32 %v1205, %v1203
        %v1209 = vshll.u32 %v840, 16
        %v1211 = vrot.slane %v1209, 1
        %v1212 = vsel %vm1112, %v1207, %v1211
        %v1213 = vshrl.u32 %v840, 16
        %v1215 = vor.u32 %v1213, %v1211
        %v1217 = vshll.u32 %v890, 16
        %v1219 = vrot.slane %v1217, 1
        %v1220 = vsel %vm1112, %v1215, %v1219
        %v1222 = vshrl.u32 %v887, 16
        %v1224 = vshll.u32 %v887, 16
        %v1226 = vrot.slane %v1224, 1
        %v1227 = vor.u32 %v1222, %v1226
        %v1229 = vshll.u32 %v857, 16
        %v1231 = vrot.slane %v1229, 1
        %v1232 = vsel %vm1112, %v1227, %v1231
        %v1233 = vshrl.u32 %v857, 16
        %v1235 = vor.u32 %v1233, %v1231
        %v1237 = vshll.u32 %v866, 16
        %v1239 = vrot.slane %v1237, 1
        %v1240 = vsel %vm1112, %v1235, %v1239
        %v1241 = vshrl.u32 %v866, 16
        %v1243 = vor.u32 %v1241, %v1239
        %v1245 = vshll.u32 %v875, 16
        %v1247 = vrot.slane %v1245, 1
        %v1248 = vsel %vm1112, %v1243, %v1247
        %v1249 = vshrl.u32 %v875, 16
        %v1251 = vor.u32 %v1249, %v1247
        %v1253 = vshll.u32 %v891, 16
        %v1255 = vrot.slane %v1253, 1
        %v1256 = vsel %vm1112, %v1251, %v1255
        %vm1281 = vcmask 1046528
        %v1282 = vrot.slane %v1104, 1
        %v1283 = vrot.slane %v972, 1
        %v1284 = vsel %vm1281, %v1282, %v1283
        %v1285 = vrot.slane %v981, 1
        %v1286 = vsel %vm1281, %v1283, %v1285
        %v1287 = vrot.slane %v990, 1
        %v1288 = vsel %vm1281, %v1285, %v1287
        %v1289 = vrot.slane %v1108, 1
        %v1290 = vsel %vm1281, %v1287, %v1289
        %v1291 = vrot.slane %v1105, 1
        %v1292 = vrot.slane %v1007, 1
        %v1293 = vsel %vm1281, %v1291, %v1292
        %v1294 = vrot.slane %v1016, 1
        %v1295 = vsel %vm1281, %v1292, %v1294
        %v1296 = vrot.slane %v1025, 1
        %v1297 = vsel %vm1281, %v1294, %v1296
        %v1298 = vrot.slane %v1109, 1
        %v1299 = vsel %vm1281, %v1296, %v1298
        %v1300 = vrot.slane %v1106, 1
        %v1301 = vrot.slane %v1042, 1
        %v1302 = vsel %vm1281, %v1300, %v1301
        %v1303 = vrot.slane %v1051, 1
        %v1304 = vsel %vm1281, %v1301, %v1303
        %v1305 = vrot.slane %v1060, 1
        %v1306 = vsel %vm1281, %v1303, %v1305
        %v1307 = vrot.slane %v1110, 1
        %v1308 = vsel %vm1281, %v1305, %v1307
        %v1309 = vrot.slane %v1107, 1
        %v1310 = vrot.slane %v1077, 1
        %v1311 = vsel %vm1281, %v1309, %v1310
        %v1312 = vrot.slane %v1086, 1
        %v1313 = vsel %vm1281, %v1310, %v1312
        %v1314 = vrot.slane %v1095, 1
        %v1315 = vsel %vm1281, %v1312, %v1314
        %v1316 = vrot.slane %v1111, 1
        %v1317 = vsel %vm1281, %v1314, %v1316
        %vm1342 = vcmask 1043456
        %v1343 = vrot.slane %v712, 4
        %v1344 = vrot.slane %v566, 4
        %v1345 = vsel %vm1342, %v1343, %v1344
        %v1346 = vrot.slane %v575, 4
        %v1347 = vsel %vm1342, %v1344, %v1346
        %v1348 = vrot.slane %v584, 4
        %v1349 = vsel %vm1342, %v1346, %v1348
        %v1350 = vrot.slane %v716, 4
        %v1351 = vsel %vm1342, %v1348, %v1350
        %v1352 = vrot.slane %v713, 4
        %v1353 = vrot.slane %v601, 4
        %v1354 = vsel %vm1342, %v1352, %v1353
        %v1355 = vrot.slane %v610, 4
        %v1356 = vsel %vm1342, %v1353, %v1355
        %v1357 = vrot.slane %v619, 4
        %v1358 = vsel %vm1342, %v1355, %v1357
        %v1359 = vrot.slane %v717, 4
        %v1360 = vsel %vm1342, %v1357, %v1359
        %v1361 = vrot.slane %v714, 4
        %v1362 = vrot.slane %v636, 4
        %v1363 = vsel %vm1342, %v1361, %v1362
        %v1364 = vrot.slane %v645, 4
        %v1365 = vsel %vm1342, %v1362, %v1364
        %v1366 = vrot.slane %v654, 4
        %v1367 = vsel %vm1342, %v1364, %v1366
        %v1368 = vrot.slane %v718, 4
        %v1369 = vsel %vm1342, %v1366, %v1368
        %v1370 = vrot.slane %v715, 4
        %v1371 = vrot.slane %v671, 4
        %v1372 = vsel %vm1342, %v1370, %v1371
        %v1373 = vrot.slane %v680, 4
        %v1374 = vsel %vm1342, %v1371, %v1373
        %v1375 = vrot.slane %v689, 4
        %v1376 = vsel %vm1342, %v1373, %v1375
        %v1377 = vrot.slane %v719, 4
        %v1378 = vsel %vm1342, %v1375, %v1377
        %vm1395 = vsmask.f32 3328
        %v1396 = vrot.slane %v1114, 4
        %v1397 = vrot.slane %v1116, 5
        %v1398 = vor.u32 %v1396, %v1397
        %v1399 = vrot.slane %v1125, 4
        %v1400 = vrot.slane %v1121, 5
        %v1401 = vor.u32 %v1399, %v1400
        %v1402 = vsel %vm1395, %v1398, %v1401
        %v1403 = vrot.slane %v1133, 4
        %v1404 = vrot.slane %v1129, 5
        %v1405 = vor.u32 %v1403, %v1404
        %v1406 = vsel %vm1395, %v1401, %v1405
        %v1407 = vrot.slane %v1141, 4
        %v1408 = vrot.slane %v1137, 5
        %v1409 = vor.u32 %v1407, %v1408
        %v1410 = vsel %vm1395, %v1405, %v1409
        %v1411 = vshrl.u32 %v888, 16
        %v1413 = vrot.slane %v1411, 4
        %v1414 = vrot.slane %v1145, 5
        %v1415 = vor.u32 %v1413, %v1414
        %v1416 = vsel %vm1395, %v1409, %v1415
        %v1417 = vrot.slane %v1150, 4
        %v1418 = vrot.slane %v1152, 5
        %v1419 = vor.u32 %v1417, %v1418
        %v1420 = vrot.slane %v1161, 4
        %v1421 = vrot.slane %v1157, 5
        %v1422 = vor.u32 %v1420, %v1421
        %v1423 = vsel %vm1395, %v1419, %v1422
        %v1424 = vrot.slane %v1169, 4
        %v1425 = vrot.slane %v1165, 5
        %v1426 = vor.u32 %v1424, %v1425
        %v1427 = vsel %vm1395, %v1422, %v1426
        %v1428 = vrot.slane %v1177, 4
        %v1429 = vrot.slane %v1173, 5
        %v1430 = vor.u32 %v1428, %v1429
        %v1431 = vsel %vm1395, %v1426, %v1430
        %v1432 = vshrl.u32 %v889, 16
        %v1434 = vrot.slane %v1432, 4
        %v1435 = vrot.slane %v1181, 5
        %v1436 = vor.u32 %v1434, %v1435
        %v1437 = vsel %vm1395, %v1430, %v1436
        %v1438 = vrot.slane %v1186, 4
        %v1439 = vrot.slane %v1188, 5
        %v1440 = vor.u32 %v1438, %v1439
        %v1441 = vrot.slane %v1197, 4
        %v1442 = vrot.slane %v1193, 5
        %v1443 = vor.u32 %v1441, %v1442
        %v1444 = vsel %vm1395, %v1440, %v1443
        %v1445 = vrot.slane %v1205, 4
        %v1446 = vrot.slane %v1201, 5
        %v1447 = vor.u32 %v1445, %v1446
        %v1448 = vsel %vm1395, %v1443, %v1447
        %v1449 = vrot.slane %v1213, 4
        %v1450 = vrot.slane %v1209, 5
        %v1451 = vor.u32 %v1449, %v1450
        %v1452 = vsel %vm1395, %v1447, %v1451
        %v1453 = vshrl.u32 %v890, 16
        %v1455 = vrot.slane %v1453, 4
        %v1456 = vrot.slane %v1217, 5
        %v1457 = vor.u32 %v1455, %v1456
        %v1458 = vsel %vm1395, %v1451, %v1457
        %v1459 = vrot.slane %v1222, 4
        %v1460 = vrot.slane %v1224, 5
        %v1461 = vor.u32 %v1459, %v1460
        %v1462 = vrot.slane %v1233, 4
        %v1463 = vrot.slane %v1229, 5
        %v1464 = vor.u32 %v1462, %v1463
        %v1465 = vsel %vm1395, %v1461, %v1464
        %v1466 = vrot.slane %v1241, 4
        %v1467 = vrot.slane %v1237, 5
        %v1468 = vor.u32 %v1466, %v1467
        %v1469 = vsel %vm1395, %v1464, %v1468
        %v1470 = vrot.slane %v1249, 4
        %v1471 = vrot.slane %v1245, 5
        %v1472 = vor.u32 %v1470, %v1471
        %v1473 = vsel %vm1395, %v1468, %v1472
        %v1474 = vshrl.u32 %v891, 16
        %v1476 = vrot.slane %v1474, 4
        %v1477 = vrot.slane %v1253, 5
        %v1478 = vor.u32 %v1476, %v1477
        %v1479 = vsel %vm1395, %v1472, %v1478
        %vm1496 = vcmask 1042432
        %v1497 = vrot.slane %v1104, 5
        %v1498 = vrot.slane %v972, 5
        %v1499 = vsel %vm1496, %v1497, %v1498
        %v1500 = vrot.slane %v981, 5
        %v1501 = vsel %vm1496, %v1498, %v1500
        %v1502 = vrot.slane %v990, 5
        %v1503 = vsel %vm1496, %v1500, %v1502
        %v1504 = vrot.slane %v1108, 5
        %v1505 = vsel %vm1496, %v1502, %v1504
        %v1506 = vrot.slane %v1105, 5
        %v1507 = vrot.slane %v1007, 5
        %v1508 = vsel %vm1496, %v1506, %v1507
        %v1509 = vrot.slane %v1016, 5
        %v1510 = vsel %vm1496, %v1507, %v1509
        %v1511 = vrot.slane %v1025, 5
        %v1512 = vsel %vm1496, %v1509, %v1511
        %v1513 = vrot.slane %v1109, 5
        %v1514 = vsel %vm1496, %v1511, %v1513
        %v1515 = vrot.slane %v1106, 5
        %v1516 = vrot.slane %v1042, 5
        %v1517 = vsel %vm1496, %v1515, %v1516
        %v1518 = vrot.slane %v1051, 5
        %v1519 = vsel %vm1496, %v1516, %v1518
        %v1520 = vrot.slane %v1060, 5
        %v1521 = vsel %vm1496, %v1518, %v1520
        %v1522 = vrot.slane %v1110, 5
        %v1523 = vsel %vm1496, %v1520, %v1522
        %v1524 = vrot.slane %v1107, 5
        %v1525 = vrot.slane %v1077, 5
        %v1526 = vsel %vm1496, %v1524, %v1525
        %v1527 = vrot.slane %v1086, 5
        %v1528 = vsel %vm1496, %v1525, %v1527
        %v1529 = vrot.slane %v1095, 5
        %v1530 = vsel %vm1496, %v1527, %v1529
        %v1531 = vrot.slane %v1111, 5
        %v1532 = vsel %vm1496, %v1529, %v1531
        %v1549 = vor.u32 %v1411, %v1147
        %v1551 = vshll.u32 0, 16
        %v1553 = vrot.slane %v1551, 1
        %v1554 = vsel %vm1112, %v1549, %v1553
        %v1555 = vor.u32 %v1432, %v1183
        %v1556 = vsel %vm1112, %v1555, %v1553
        %v1557 = vor.u32 %v1453, %v1219
        %v1558 = vsel %vm1112, %v1557, %v1553
        %v1559 = vor.u32 %v1474, %v1255
        %v1560 = vsel %vm1112, %v1559, %v1553
        %v1566 = vrot.slane 0, 1
        %v1567 = vsel %vm1281, %v1289, %v1566
        %v1568 = vsel %vm1281, %v1298, %v1566
        %v1569 = vsel %vm1281, %v1307, %v1566
        %v1570 = vsel %vm1281, %v1316, %v1566
        %v1575 = vld [vmem:[#allocation5] sm:$0xf]
        %v1576 = vld [vmem:[#allocation5 + $0x4] sm:$0xf]
        %v1577 = vld [vmem:[#allocation5 + $0x8] sm:$0xf]
        %v1578 = vld [vmem:[#allocation5 + $0xc] sm:$0xf]
        %v1579 = vld [vmem:[#allocation5 + $0x10] sm:$0xf]
        %v1580 = vld [vmem:[#allocation5 + $0x14] sm:$0xf]
        %v1581 = vld [vmem:[#allocation5 + $0x18] sm:$0xf]
        %v1582 = vld [vmem:[#allocation5 + $0x1c] sm:$0xf]
        %v1583 = vld [vmem:[#allocation5 + $0x20] sm:$0xf]
        %v1584 = vld [vmem:[#allocation5 + $0x24] sm:$0xf]
        %v1585 = vld [vmem:[#allocation5 + $0x28] sm:$0xf]
        %v1586 = vld [vmem:[#allocation5 + $0x2c] sm:$0xf]
        %v1587 = vld [vmem:[#allocation5 + $0x30] sm:$0xf]
        %v1588 = vld [vmem:[#allocation5 + $0x34] sm:$0xf]
        %v1589 = vld [vmem:[#allocation5 + $0x38] sm:$0xf]
        %v1590 = vld [vmem:[#allocation5 + $0x3c] sm:$0xf]
        %v1591 = vld [vmem:[#allocation5 + $0x40] sm:$0xf]
        %v1592 = vld [vmem:[#allocation5 + $0x44] sm:$0xf]
        %v1593 = vld [vmem:[#allocation5 + $0x48] sm:$0xf]
        %v1594 = vld [vmem:[#allocation5 + $0x4c] sm:$0xf]
        %v1595 = vld [vmem:[#allocation5 + $0x50] sm:$0xf]
        %v1596 = vld [vmem:[#allocation5 + $0x54] sm:$0xf]
        %v1597 = vld [vmem:[#allocation5 + $0x58] sm:$0xf]
        %v1598 = vld [vmem:[#allocation5 + $0x5c] sm:$0xf]
        %v1599 = vld [vmem:[#allocation5 + $0x60] sm:$0xf]
        %v1600 = vld [vmem:[#allocation5 + $0x64] sm:$0xf]
        %v1601 = vld [vmem:[#allocation5 + $0x68] sm:$0xf]
        %v1602 = vld [vmem:[#allocation5 + $0x6c] sm:$0xf]
        %v1603 = vld [vmem:[#allocation5 + $0x70] sm:$0xf]
        %v1604 = vld [vmem:[#allocation5 + $0x74] sm:$0xf]
        %v1605 = vld [vmem:[#allocation5 + $0x78] sm:$0xf]
        %v1606 = vld [vmem:[#allocation5 + $0x7c] sm:$0xf]
        %v1607 = vld [vmem:[#allocation5 + $0x80] sm:$0xf]
        %v1608 = vld [vmem:[#allocation5 + $0x84] sm:$0xf]
        %v1609 = vld [vmem:[#allocation5 + $0x88] sm:$0xf]
        %v1610 = vld [vmem:[#allocation5 + $0x8c] sm:$0xf]
        %v1611 = vld [vmem:[#allocation5 + $0x90] sm:$0xf]
        %v1612 = vld [vmem:[#allocation5 + $0x94] sm:$0xf]
        %v1613 = vld [vmem:[#allocation5 + $0x98] sm:$0xf]
        %v1614 = vld [vmem:[#allocation5 + $0x9c] sm:$0xf]
        %v1615 = vld [vmem:[#allocation5 + $0xa0] sm:$0xf]
        %v1616 = vld [vmem:[#allocation5 + $0xa4] sm:$0xf]
        %v1617 = vld [vmem:[#allocation5 + $0xa8] sm:$0xf]
        %v1618 = vld [vmem:[#allocation5 + $0xac] sm:$0xf]
        %v1619 = vld [vmem:[#allocation5 + $0xb0] sm:$0xf]
        %v1620 = vld [vmem:[#allocation5 + $0xb4] sm:$0xf]
        %v1621 = vld [vmem:[#allocation5 + $0xb8] sm:$0xf]
        %v1622 = vld [vmem:[#allocation5 + $0xbc] sm:$0xf]
        %v1623 = vld [vmem:[#allocation5 + $0xc0] sm:$0xf]
        %v1624 = vld [vmem:[#allocation5 + $0xc4] sm:$0xf]
        %v1625 = vld [vmem:[#allocation5 + $0xc8] sm:$0xf]
        %v1626 = vld [vmem:[#allocation5 + $0xcc] sm:$0xf]
        %v1627 = vld [vmem:[#allocation5 + $0xd0] sm:$0xf]
        %v1628 = vld [vmem:[#allocation5 + $0xd4] sm:$0xf]
        %v1629 = vld [vmem:[#allocation5 + $0xd8] sm:$0xf]
        %v1630 = vld [vmem:[#allocation5 + $0xdc] sm:$0xf]
        %v1631 = vld [vmem:[#allocation5 + $0xe0] sm:$0xf]
        %v1632 = vld [vmem:[#allocation5 + $0xe4] sm:$0xf]
        %v1633 = vld [vmem:[#allocation5 + $0xe8] sm:$0xf]
        %v1634 = vld [vmem:[#allocation5 + $0xec] sm:$0xf]
        %v1635 = vld [vmem:[#allocation5 + $0xf0] sm:$0xf]
        %v1636 = vld [vmem:[#allocation5 + $0xf4] sm:$0xf]
        %v1637 = vld [vmem:[#allocation5 + $0xf8] sm:$0xf]
        %v1638 = vld [vmem:[#allocation5 + $0xfc] sm:$0xf]
        %v1639 = vld [vmem:[#allocation5 + $0x100] sm:$0xf]
        %v1640 = vld [vmem:[#allocation5 + $0x104] sm:$0xf]
        %v1641 = vld [vmem:[#allocation5 + $0x108] sm:$0xf]
        %v1642 = vld [vmem:[#allocation5 + $0x10c] sm:$0xf]
        %v1643 = vld [vmem:[#allocation5 + $0x110] sm:$0xf]
        %v1644 = vld [vmem:[#allocation5 + $0x114] sm:$0xf]
        %v1645 = vld [vmem:[#allocation5 + $0x118] sm:$0xf]
        %v1646 = vld [vmem:[#allocation5 + $0x11c] sm:$0xf]
        %v1647 = vld [vmem:[#allocation5 + $0x120] sm:$0xf]
        %v1648 = vld [vmem:[#allocation5 + $0x124] sm:$0xf]
        %v1649 = vld [vmem:[#allocation5 + $0x128] sm:$0xf]
        %v1650 = vld [vmem:[#allocation5 + $0x12c] sm:$0xf]
        %v1651 = vld [vmem:[#allocation5 + $0x130] sm:$0xf]
        %v1652 = vld [vmem:[#allocation5 + $0x134] sm:$0xf]
        %v1653 = vld [vmem:[#allocation5 + $0x138] sm:$0xf]
        %v1654 = vld [vmem:[#allocation5 + $0x13c] sm:$0xf]
        %v1655 = vld [vmem:[#allocation5 + $0x140] sm:$0xf]
        %v1656 = vld [vmem:[#allocation5 + $0x144] sm:$0xf]
        %v1657 = vld [vmem:[#allocation5 + $0x148] sm:$0xf]
        %v1658 = vld [vmem:[#allocation5 + $0x14c] sm:$0xf]
        %v1659 = vld [vmem:[#allocation5 + $0x150] sm:$0xf]
        %v1660 = vld [vmem:[#allocation5 + $0x154] sm:$0xf]
        %v1661 = vld [vmem:[#allocation5 + $0x158] sm:$0xf]
        %v1662 = vld [vmem:[#allocation5 + $0x15c] sm:$0xf]
        %v1663 = vld [vmem:[#allocation5 + $0x160] sm:$0xf]
        %v1664 = vld [vmem:[#allocation5 + $0x164] sm:$0xf]
        %v1665 = vld [vmem:[#allocation5 + $0x168] sm:$0xf]
        %v1666 = vld [vmem:[#allocation5 + $0x16c] sm:$0xf]
        %v1667 = vld [vmem:[#allocation5 + $0x170] sm:$0xf]
        %v1668 = vld [vmem:[#allocation5 + $0x174] sm:$0xf]
        %v1669 = vld [vmem:[#allocation5 + $0x178] sm:$0xf]
        %v1670 = vld [vmem:[#allocation5 + $0x17c] sm:$0xf]
        %v1671 = vld [vmem:[#allocation5 + $0x180] sm:$0xf]
        %v1672 = vld [vmem:[#allocation5 + $0x184] sm:$0xf]
        %v1673 = vld [vmem:[#allocation5 + $0x188] sm:$0xf]
        %v1674 = vld [vmem:[#allocation5 + $0x18c] sm:$0xf]
        %v1675 = vld [vmem:[#allocation5 + $0x190] sm:$0xf]
        %v1676 = vld [vmem:[#allocation5 + $0x194] sm:$0xf]
        %v1677 = vld [vmem:[#allocation5 + $0x198] sm:$0xf]
        %v1678 = vld [vmem:[#allocation5 + $0x19c] sm:$0xf]
        %v1679 = vld [vmem:[#allocation5 + $0x1a0] sm:$0xf]
        %v1680 = vld [vmem:[#allocation5 + $0x1a4] sm:$0xf]
        %v1681 = vld [vmem:[#allocation5 + $0x1a8] sm:$0xf]
        %v1682 = vld [vmem:[#allocation5 + $0x1ac] sm:$0xf]
        %v1683 = vld [vmem:[#allocation5 + $0x1b0] sm:$0xf]
        %v1684 = vld [vmem:[#allocation5 + $0x1b4] sm:$0xf]
        %v1685 = vld [vmem:[#allocation5 + $0x1b8] sm:$0xf]
        %v1686 = vld [vmem:[#allocation5 + $0x1bc] sm:$0xf]
        %v1687 = vld [vmem:[#allocation5 + $0x1c0] sm:$0xf]
        %v1688 = vld [vmem:[#allocation5 + $0x1c4] sm:$0xf]
        %v1689 = vld [vmem:[#allocation5 + $0x1c8] sm:$0xf]
        %v1690 = vld [vmem:[#allocation5 + $0x1cc] sm:$0xf]
        %v1691 = vld [vmem:[#allocation5 + $0x1d0] sm:$0xf]
        %v1692 = vld [vmem:[#allocation5 + $0x1d4] sm:$0xf]
        %v1693 = vld [vmem:[#allocation5 + $0x1d8] sm:$0xf]
        %v1694 = vld [vmem:[#allocation5 + $0x1dc] sm:$0xf]
        %v1695 = vld [vmem:[#allocation5 + $0x1e0] sm:$0xf]
        %v1696 = vld [vmem:[#allocation5 + $0x1e4] sm:$0xf]
        %v1697 = vld [vmem:[#allocation5 + $0x1e8] sm:$0xf]
        %v1698 = vld [vmem:[#allocation5 + $0x1ec] sm:$0xf]
        %v1699 = vld [vmem:[#allocation5 + $0x1f0] sm:$0xf]
        %v1700 = vld [vmem:[#allocation5 + $0x1f4] sm:$0xf]
        %v1701 = vld [vmem:[#allocation5 + $0x1f8] sm:$0xf]
        %v1702 = vld [vmem:[#allocation5 + $0x1fc] sm:$0xf]
        %v1703 = vld [vmem:[#allocation5 + $0x200] sm:$0xf]
        %v1704 = vld [vmem:[#allocation5 + $0x204] sm:$0xf]
        %v1705 = vld [vmem:[#allocation5 + $0x208] sm:$0xf]
        %v1706 = vld [vmem:[#allocation5 + $0x20c] sm:$0xf]
        %v1707 = vld [vmem:[#allocation5 + $0x210] sm:$0xf]
        %v1708 = vld [vmem:[#allocation5 + $0x214] sm:$0xf]
        %v1709 = vld [vmem:[#allocation5 + $0x218] sm:$0xf]
        %v1710 = vld [vmem:[#allocation5 + $0x21c] sm:$0xf]
        %v1711 = vld [vmem:[#allocation5 + $0x220] sm:$0xf]
        %v1712 = vld [vmem:[#allocation5 + $0x224] sm:$0xf]
        %v1713 = vld [vmem:[#allocation5 + $0x228] sm:$0xf]
        %v1714 = vld [vmem:[#allocation5 + $0x22c] sm:$0xf]
        %v1715 = vld [vmem:[#allocation5 + $0x230] sm:$0xf]
        %v1716 = vld [vmem:[#allocation5 + $0x234] sm:$0xf]
        %v1717 = vld [vmem:[#allocation5 + $0x238] sm:$0xf]
        %v1718 = vld [vmem:[#allocation5 + $0x23c] sm:$0xf]
        %v1863 = vunpack.c.l.b16 %v1575
        %v1864 = vunpack.c.l.b16 %v1576
        %v1865 = vunpack.c.l.b16 %v1577
        %v1866 = vunpack.c.l.b16 %v1578
        %v1867 = vunpack.c.l.b16 %v1579
        %v1868 = vunpack.c.l.b16 %v1580
        %v1869 = vunpack.c.l.b16 %v1581
        %v1870 = vunpack.c.l.b16 %v1582
        %v1871 = vunpack.c.l.b16 %v1583
        %v1872 = vunpack.c.l.b16 %v1584
        %v1873 = vunpack.c.l.b16 %v1585
        %v1874 = vunpack.c.l.b16 %v1586
        %v1875 = vunpack.c.l.b16 %v1587
        %v1876 = vunpack.c.l.b16 %v1588
        %v1877 = vunpack.c.l.b16 %v1589
        %v1878 = vunpack.c.l.b16 %v1590
        %v1879 = vunpack.c.l.b16 %v1591
        %v1880 = vunpack.c.l.b16 %v1592
        %v1881 = vunpack.c.l.b16 %v1593
        %v1882 = vunpack.c.l.b16 %v1594
        %v1883 = vunpack.c.l.b16 %v1595
        %v1884 = vunpack.c.l.b16 %v1596
        %v1885 = vunpack.c.l.b16 %v1597
        %v1886 = vunpack.c.l.b16 %v1598
        %v1887 = vunpack.c.l.b16 %v1599
        %v1888 = vunpack.c.l.b16 %v1600
        %v1889 = vunpack.c.l.b16 %v1601
        %v1890 = vunpack.c.l.b16 %v1602
        %v1891 = vunpack.c.l.b16 %v1603
        %v1892 = vunpack.c.l.b16 %v1604
        %v1893 = vunpack.c.l.b16 %v1605
        %v1894 = vunpack.c.l.b16 %v1606
        %v1895 = vunpack.c.l.b16 %v1607
        %v1896 = vunpack.c.l.b16 %v1608
        %v1897 = vunpack.c.l.b16 %v1609
        %v1898 = vunpack.c.l.b16 %v1610
        %v1899 = vunpack.c.l.b16 %v1611
        %v1900 = vunpack.c.l.b16 %v1612
        %v1901 = vunpack.c.l.b16 %v1613
        %v1902 = vunpack.c.l.b16 %v1614
        %v1903 = vunpack.c.l.b16 %v1615
        %v1904 = vunpack.c.l.b16 %v1616
        %v1905 = vunpack.c.l.b16 %v1617
        %v1906 = vunpack.c.l.b16 %v1618
        %v1907 = vunpack.c.l.b16 %v1619
        %v1908 = vunpack.c.l.b16 %v1620
        %v1909 = vunpack.c.l.b16 %v1621
        %v1910 = vunpack.c.l.b16 %v1622
        %v1911 = vunpack.c.l.b16 %v1623
        %v1912 = vunpack.c.l.b16 %v1624
        %v1913 = vunpack.c.l.b16 %v1625
        %v1914 = vunpack.c.l.b16 %v1626
        %v1915 = vunpack.c.l.b16 %v1627
        %v1916 = vunpack.c.l.b16 %v1628
        %v1917 = vunpack.c.l.b16 %v1629
        %v1918 = vunpack.c.l.b16 %v1630
        %v1919 = vunpack.c.l.b16 %v1631
        %v1920 = vunpack.c.l.b16 %v1632
        %v1921 = vunpack.c.l.b16 %v1633
        %v1922 = vunpack.c.l.b16 %v1634
        %v1923 = vunpack.c.l.b16 %v1635
        %v1924 = vunpack.c.l.b16 %v1636
        %v1925 = vunpack.c.l.b16 %v1637
        %v1926 = vunpack.c.l.b16 %v1638
        %v1927 = vunpack.c.l.b16 %v1639
        %v1928 = vunpack.c.l.b16 %v1640
        %v1929 = vunpack.c.l.b16 %v1641
        %v1930 = vunpack.c.l.b16 %v1642
        %v1931 = vunpack.c.l.b16 %v1643
        %v1932 = vunpack.c.l.b16 %v1644
        %v1933 = vunpack.c.l.b16 %v1645
        %v1934 = vunpack.c.l.b16 %v1646
        %v1935 = vunpack.c.l.b16 %v1647
        %v1936 = vunpack.c.l.b16 %v1648
        %v1937 = vunpack.c.l.b16 %v1649
        %v1938 = vunpack.c.l.b16 %v1650
        %v1939 = vunpack.c.l.b16 %v1651
        %v1940 = vunpack.c.l.b16 %v1652
        %v1941 = vunpack.c.l.b16 %v1653
        %v1942 = vunpack.c.l.b16 %v1654
        %v1943 = vunpack.c.l.b16 %v1655
        %v1944 = vunpack.c.l.b16 %v1656
        %v1945 = vunpack.c.l.b16 %v1657
        %v1946 = vunpack.c.l.b16 %v1658
        %v1947 = vunpack.c.l.b16 %v1659
        %v1948 = vunpack.c.l.b16 %v1660
        %v1949 = vunpack.c.l.b16 %v1661
        %v1950 = vunpack.c.l.b16 %v1662
        %v1951 = vunpack.c.l.b16 %v1663
        %v1952 = vunpack.c.l.b16 %v1664
        %v1953 = vunpack.c.l.b16 %v1665
        %v1954 = vunpack.c.l.b16 %v1666
        %v1955 = vunpack.c.l.b16 %v1667
        %v1956 = vunpack.c.l.b16 %v1668
        %v1957 = vunpack.c.l.b16 %v1669
        %v1958 = vunpack.c.l.b16 %v1670
        %v1959 = vunpack.c.l.b16 %v1671
        %v1960 = vunpack.c.l.b16 %v1672
        %v1961 = vunpack.c.l.b16 %v1673
        %v1962 = vunpack.c.l.b16 %v1674
        %v1963 = vunpack.c.l.b16 %v1675
        %v1964 = vunpack.c.l.b16 %v1676
        %v1965 = vunpack.c.l.b16 %v1677
        %v1966 = vunpack.c.l.b16 %v1678
        %v1967 = vunpack.c.l.b16 %v1679
        %v1968 = vunpack.c.l.b16 %v1680
        %v1969 = vunpack.c.l.b16 %v1681
        %v1970 = vunpack.c.l.b16 %v1682
        %v1971 = vunpack.c.l.b16 %v1683
        %v1972 = vunpack.c.l.b16 %v1684
        %v1973 = vunpack.c.l.b16 %v1685
        %v1974 = vunpack.c.l.b16 %v1686
        %v1975 = vunpack.c.l.b16 %v1687
        %v1976 = vunpack.c.l.b16 %v1688
        %v1977 = vunpack.c.l.b16 %v1689
        %v1978 = vunpack.c.l.b16 %v1690
        %v1979 = vunpack.c.l.b16 %v1691
        %v1980 = vunpack.c.l.b16 %v1692
        %v1981 = vunpack.c.l.b16 %v1693
        %v1982 = vunpack.c.l.b16 %v1694
        %v1983 = vunpack.c.l.b16 %v1695
        %v1984 = vunpack.c.l.b16 %v1696
        %v1985 = vunpack.c.l.b16 %v1697
        %v1986 = vunpack.c.l.b16 %v1698
        %v1987 = vunpack.c.l.b16 %v1699
        %v1988 = vunpack.c.l.b16 %v1700
        %v1989 = vunpack.c.l.b16 %v1701
        %v1990 = vunpack.c.l.b16 %v1702
        %v1991 = vunpack.c.l.b16 %v1703
        %v1992 = vunpack.c.l.b16 %v1704
        %v1993 = vunpack.c.l.b16 %v1705
        %v1994 = vunpack.c.l.b16 %v1706
        %v1995 = vunpack.c.l.b16 %v1707
        %v1996 = vunpack.c.l.b16 %v1708
        %v1997 = vunpack.c.l.b16 %v1709
        %v1998 = vunpack.c.l.b16 %v1710
        %v1999 = vunpack.c.l.b16 %v1711
        %v2000 = vunpack.c.l.b16 %v1712
        %v2001 = vunpack.c.l.b16 %v1713
        %v2002 = vunpack.c.l.b16 %v1714
        %v2003 = vunpack.c.l.b16 %v1715
        %v2004 = vunpack.c.l.b16 %v1716
        %v2005 = vunpack.c.l.b16 %v1717
        %v2006 = vunpack.c.l.b16 %v1718
        %v2007 = vpack.c.b16 %v1864, %v1863
        %v2008 = vpack.c.b16 %v1866, %v1865
        %v2009 = vpack.c.b16 %v1868, %v1867
        %v2010 = vpack.c.b16 %v1870, %v1869
        %v2011 = vpack.c.b16 %v1872, %v1871
        %v2012 = vpack.c.b16 %v1874, %v1873
        %v2013 = vpack.c.b16 %v1876, %v1875
        %v2014 = vpack.c.b16 %v1878, %v1877
        %v2015 = vpack.c.b16 %v1880, %v1879
        %v2016 = vpack.c.b16 %v1882, %v1881
        %v2017 = vpack.c.b16 %v1884, %v1883
        %v2018 = vpack.c.b16 %v1886, %v1885
        %v2019 = vpack.c.b16 %v1888, %v1887
        %v2020 = vpack.c.b16 %v1890, %v1889
        %v2021 = vpack.c.b16 %v1892, %v1891
        %v2022 = vpack.c.b16 %v1894, %v1893
        %v2023 = vpack.c.b16 %v1896, %v1895
        %v2024 = vpack.c.b16 %v1898, %v1897
        %v2025 = vpack.c.b16 %v1900, %v1899
        %v2026 = vpack.c.b16 %v1902, %v1901
        %v2027 = vpack.c.b16 %v1904, %v1903
        %v2028 = vpack.c.b16 %v1906, %v1905
        %v2029 = vpack.c.b16 %v1908, %v1907
        %v2030 = vpack.c.b16 %v1910, %v1909
        %v2031 = vpack.c.b16 %v1912, %v1911
        %v2032 = vpack.c.b16 %v1914, %v1913
        %v2033 = vpack.c.b16 %v1916, %v1915
        %v2034 = vpack.c.b16 %v1918, %v1917
        %v2035 = vpack.c.b16 %v1920, %v1919
        %v2036 = vpack.c.b16 %v1922, %v1921
        %v2037 = vpack.c.b16 %v1924, %v1923
        %v2038 = vpack.c.b16 %v1926, %v1925
        %v2039 = vpack.c.b16 %v1928, %v1927
        %v2040 = vpack.c.b16 %v1930, %v1929
        %v2041 = vpack.c.b16 %v1932, %v1931
        %v2042 = vpack.c.b16 %v1934, %v1933
        %v2043 = vpack.c.b16 %v1936, %v1935
        %v2044 = vpack.c.b16 %v1938, %v1937
        %v2045 = vpack.c.b16 %v1940, %v1939
        %v2046 = vpack.c.b16 %v1942, %v1941
        %v2047 = vpack.c.b16 %v1944, %v1943
        %v2048 = vpack.c.b16 %v1946, %v1945
        %v2049 = vpack.c.b16 %v1948, %v1947
        %v2050 = vpack.c.b16 %v1950, %v1949
        %v2051 = vpack.c.b16 %v1952, %v1951
        %v2052 = vpack.c.b16 %v1954, %v1953
        %v2053 = vpack.c.b16 %v1956, %v1955
        %v2054 = vpack.c.b16 %v1958, %v1957
        %v2055 = vpack.c.b16 %v1960, %v1959
        %v2056 = vpack.c.b16 %v1962, %v1961
        %v2057 = vpack.c.b16 %v1964, %v1963
        %v2058 = vpack.c.b16 %v1966, %v1965
        %v2059 = vpack.c.b16 %v1968, %v1967
        %v2060 = vpack.c.b16 %v1970, %v1969
        %v2061 = vpack.c.b16 %v1972, %v1971
        %v2062 = vpack.c.b16 %v1974, %v1973
        %v2063 = vpack.c.b16 %v1976, %v1975
        %v2064 = vpack.c.b16 %v1978, %v1977
        %v2065 = vpack.c.b16 %v1980, %v1979
        %v2066 = vpack.c.b16 %v1982, %v1981
        %v2067 = vpack.c.b16 %v1984, %v1983
        %v2068 = vpack.c.b16 %v1986, %v1985
        %v2069 = vpack.c.b16 %v1988, %v1987
        %v2070 = vpack.c.b16 %v1990, %v1989
        %v2071 = vpack.c.b16 %v1992, %v1991
        %v2072 = vpack.c.b16 %v1994, %v1993
        %v2073 = vpack.c.b16 %v1996, %v1995
        %v2074 = vpack.c.b16 %v1998, %v1997
        %v2075 = vpack.c.b16 %v2000, %v1999
        %v2076 = vpack.c.b16 %v2002, %v2001
        %v2077 = vpack.c.b16 %v2004, %v2003
        %v2078 = vpack.c.b16 %v2006, %v2005
        %2151 = vmatprep.subr.bf16.mxu0 0
        %2152 = vmatpush1.bf16.msra.mxu0 %v2007
        %2153 = vmatprep.subr.bf16.mxu0 0
        %2154 = vmatpush1.bf16.msra.mxu0 %v2008
        %2155 = vmatprep.subr.bf16.mxu0 0
        %2156 = vmatpush1.bf16.msra.mxu0 %v2009
        %2157 = vmatprep.subr.bf16.mxu0 0
        %2158 = vmatpush1.bf16.msra.mxu0 %v2010
        %2159 = vmatprep.subr.bf16.mxu0 0
        %2160 = vmatpush1.bf16.msra.mxu0 %v2011
        %2161 = vmatprep.subr.bf16.mxu0 0
        %2162 = vmatpush1.bf16.msra.mxu0 %v2012
        %2163 = vmatprep.subr.bf16.mxu0 0
        %2164 = vmatpush1.bf16.msra.mxu0 %v2013
        %2165 = vmatprep.subr.bf16.mxu0 0
        %2166 = vmatpush1.bf16.msra.mxu0 %v2014
        %2167 = vmatprep.subr.bf16.mxu0 0
        %2168 = vmatpush1.bf16.msra.mxu0 %v2015
        %2169 = vmatprep.subr.bf16.mxu0 0
        %2170 = vmatpush1.bf16.msra.mxu0 %v2016
        %2171 = vmatprep.subr.bf16.mxu0 0
        %2172 = vmatpush1.bf16.msra.mxu0 %v2017
        %2173 = vmatprep.subr.bf16.mxu0 0
        %2174 = vmatpush1.bf16.msra.mxu0 %v2018
        %2175 = vmatprep.subr.bf16.mxu0 0
        %2176 = vmatpush1.bf16.msra.mxu0 %v2019
        %2177 = vmatprep.subr.bf16.mxu0 0
        %2178 = vmatpush1.bf16.msra.mxu0 %v2020
        %2179 = vmatprep.subr.bf16.mxu0 0
        %2180 = vmatpush1.bf16.msra.mxu0 %v2021
        %2181 = vmatprep.subr.bf16.mxu0 0
        %2182 = vmatpush1.bf16.msra.mxu0 %v2022
        %2183 = vmatprep.mubr.bf16.mxu0 %v1124
        %2184 = vmatmul.mubr.bf16.gmra.mrb[0].mxu0 %v712
        %v2185 = vpop.f32.mrb[0].mxu0
        %v2186 = vadd.f32 0.0, %v2185
        %v2187 = vpop.f32.mrb[0].mxu0
        %v2188 = vpop.f32.mrb[0].mxu0
        %v2189 = vadd.f32 0.0, %v2188
        %v2190 = vpop.f32.mrb[0].mxu0
        %2191 = vmatprep.mubr.bf16.mxu0 %v1132
        %2192 = vmatmul.mubr.bf16.gmra.mrb[0].mxu0 %v566
        %v2193 = vpop.f32.mrb[0].mxu0
        %v2194 = vadd.f32 0.0, %v2193
        %v2195 = vpop.f32.mrb[0].mxu0
        %v2196 = vpop.f32.mrb[0].mxu0
        %v2197 = vadd.f32 0.0, %v2196
        %v2198 = vpop.f32.mrb[0].mxu0
        %2199 = vmatprep.mubr.bf16.mxu0 %v1140
        %2200 = vmatmul.mubr.bf16.gmra.mrb[0].mxu0 %v575
        %v2201 = vpop.f32.mrb[0].mxu0
        %v2202 = vadd.f32 0.0, %v2201
        %v2203 = vpop.f32.mrb[0].mxu0
        %v2204 = vpop.f32.mrb[0].mxu0
        %v2205 = vadd.f32 0.0, %v2204
        %v2206 = vpop.f32.mrb[0].mxu0
        %2207 = vmatprep.mubr.bf16.mxu0 %v1148
        %2208 = vmatmul.mubr.bf16.gmra.mrb[0].mxu0 %v584
        %v2209 = vpop.f32.mrb[0].mxu0
        %v2210 = vadd.f32 0.0, %v2209
        %v2211 = vpop.f32.mrb[0].mxu0
        %v2212 = vpop.f32.mrb[0].mxu0
        %v2213 = vadd.f32 0.0, %v2212
        %v2214 = vpop.f32.mrb[0].mxu0
        %2215 = vmatprep.mubr.bf16.mxu0 %v1160
        %2216 = vmatmul.mubr.bf16.gmra.mrb[0].mxu0 %v713
        %v2217 = vpop.f32.mrb[0].mxu0
        %v2218 = vadd.f32 0.0, %v2217
        %v2219 = vpop.f32.mrb[0].mxu0
        %v2220 = vpop.f32.mrb[0].mxu0
        %v2221 = vadd.f32 0.0, %v2220
        %v2222 = vpop.f32.mrb[0].mxu0
        %2223 = vmatprep.mubr.bf16.mxu0 %v1168
        %2224 = vmatmul.mubr.bf16.gmra.mrb[0].mxu0 %v601
        %v2225 = vpop.f32.mrb[0].mxu0
        %v2226 = vadd.f32 0.0, %v2225
        %v2227 = vpop.f32.mrb[0].mxu0
        %v2228 = vpop.f32.mrb[0].mxu0
        %v2229 = vadd.f32 0.0, %v2228
        %v2230 = vpop.f32.mrb[0].mxu0
        %2231 = vmatprep.mubr.bf16.mxu0 %v1176
        %2232 = vmatmul.mubr.bf16.gmra.mrb[0].mxu0 %v610
        %v2233 = vpop.f32.mrb[0].mxu0
        %v2234 = vadd.f32 0.0, %v2233
        %v2235 = vpop.f32.mrb[0].mxu0
        %v2236 = vpop.f32.mrb[0].mxu0
        %v2237 = vadd.f32 0.0, %v2236
        %v2238 = vpop.f32.mrb[0].mxu0
        %2239 = vmatprep.mubr.bf16.mxu0 %v1184
        %2240 = vmatmul.mubr.bf16.gmra.mrb[0].mxu0 %v619
        %v2241 = vpop.f32.mrb[0].mxu0
        %v2242 = vadd.f32 0.0, %v2241
        %v2243 = vpop.f32.mrb[0].mxu0
        %v2244 = vpop.f32.mrb[0].mxu0
        %v2245 = vadd.f32 0.0, %v2244
        %v2246 = vpop.f32.mrb[0].mxu0
        %2247 = vmatprep.mubr.bf16.mxu0 %v1196
        %2248 = vmatmul.mubr.bf16.gmra.mrb[0].mxu0 %v714
        %v2249 = vpop.f32.mrb[0].mxu0
        %v2250 = vadd.f32 0.0, %v2249
        %v2251 = vpop.f32.mrb[0].mxu0
        %v2252 = vpop.f32.mrb[0].mxu0
        %v2253 = vadd.f32 0.0, %v2252
        %v2254 = vpop.f32.mrb[0].mxu0
        %2255 = vmatprep.mubr.bf16.mxu0 %v1204
        %2256 = vmatmul.mubr.bf16.gmra.mrb[0].mxu0 %v636
        %v2257 = vpop.f32.mrb[0].mxu0
        %v2258 = vadd.f32 0.0, %v2257
        %v2259 = vpop.f32.mrb[0].mxu0
        %v2260 = vpop.f32.mrb[0].mxu0
        %v2261 = vadd.f32 0.0, %v2260
        %v2262 = vpop.f32.mrb[0].mxu0
        %2263 = vmatprep.mubr.bf16.mxu0 %v1212
        %2264 = vmatmul.mubr.bf16.gmra.mrb[0].mxu0 %v645
        %v2265 = vpop.f32.mrb[0].mxu0
        %v2266 = vadd.f32 0.0, %v2265
        %v2267 = vpop.f32.mrb[0].mxu0
        %v2268 = vpop.f32.mrb[0].mxu0
        %v2269 = vadd.f32 0.0, %v2268
        %v2270 = vpop.f32.mrb[0].mxu0
        %2271 = vmatprep.mubr.bf16.mxu0 %v1220
        %2272 = vmatmul.mubr.bf16.gmra.mrb[0].mxu0 %v654
        %v2273 = vpop.f32.mrb[0].mxu0
        %v2274 = vadd.f32 0.0, %v2273
        %v2275 = vpop.f32.mrb[0].mxu0
        %v2276 = vpop.f32.mrb[0].mxu0
        %v2277 = vadd.f32 0.0, %v2276
        %v2278 = vpop.f32.mrb[0].mxu0
        %2279 = vmatprep.mubr.bf16.mxu0 %v1232
        %2280 = vmatmul.mubr.bf16.gmra.mrb[0].mxu0 %v715
        %v2281 = vpop.f32.mrb[0].mxu0
        %v2282 = vadd.f32 0.0, %v2281
        %v2283 = vpop.f32.mrb[0].mxu0
        %v2284 = vpop.f32.mrb[0].mxu0
        %v2285 = vadd.f32 0.0, %v2284
        %v2286 = vpop.f32.mrb[0].mxu0
        %2287 = vmatprep.mubr.bf16.mxu0 %v1240
        %2288 = vmatmul.mubr.bf16.gmra.mrb[0].mxu0 %v671
        %v2289 = vpop.f32.mrb[0].mxu0
        %v2290 = vadd.f32 0.0, %v2289
        %v2291 = vpop.f32.mrb[0].mxu0
        %v2292 = vpop.f32.mrb[0].mxu0
        %v2293 = vadd.f32 0.0, %v2292
        %v2294 = vpop.f32.mrb[0].mxu0
        %2295 = vmatprep.mubr.bf16.mxu0 %v1248
        %2296 = vmatmul.mubr.bf16.gmra.mrb[0].mxu0 %v680
        %v2297 = vpop.f32.mrb[0].mxu0
        %v2298 = vadd.f32 0.0, %v2297
        %v2299 = vpop.f32.mrb[0].mxu0
        %v2300 = vpop.f32.mrb[0].mxu0
        %v2301 = vadd.f32 0.0, %v2300
        %v2302 = vpop.f32.mrb[0].mxu0
        %2303 = vmatprep.mubr.bf16.mxu0 %v1256
        %2304 = vmatmul.mubr.bf16.gmra.mrb[0].mxu0 %v689
        %v2305 = vpop.f32.mrb[0].mxu0
        %v2306 = vadd.f32 0.0, %v2305
        %v2307 = vpop.f32.mrb[0].mxu0
        %v2308 = vpop.f32.mrb[0].mxu0
        %v2309 = vadd.f32 0.0, %v2308
        %v2310 = vpop.f32.mrb[0].mxu0
        %2311 = vdwg.mxu0
        %2312 = vmatprep.subr.bf16.mxu0 0
        %2313 = vmatpush1.bf16.msra.mxu0 %v2023
        %2314 = vmatprep.subr.bf16.mxu0 0
        %2315 = vmatpush1.bf16.msra.mxu0 %v2024
        %2316 = vmatprep.subr.bf16.mxu0 0
        %2317 = vmatpush1.bf16.msra.mxu0 %v2025
        %2318 = vmatprep.subr.bf16.mxu0 0
        %2319 = vmatpush1.bf16.msra.mxu0 %v2026
        %2320 = vmatprep.subr.bf16.mxu0 0
        %2321 = vmatpush1.bf16.msra.mxu0 %v2027
        %2322 = vmatprep.subr.bf16.mxu0 0
        %2323 = vmatpush1.bf16.msra.mxu0 %v2028
        %2324 = vmatprep.subr.bf16.mxu0 0
        %2325 = vmatpush1.bf16.msra.mxu0 %v2029
        %2326 = vmatprep.subr.bf16.mxu0 0
        %2327 = vmatpush1.bf16.msra.mxu0 %v2030
        %2328 = vmatprep.subr.bf16.mxu0 0
        %2329 = vmatpush1.bf16.msra.mxu0 %v2031
        %2330 = vmatprep.subr.bf16.mxu0 0
        %2331 = vmatpush1.bf16.msra.mxu0 %v2032
        %2332 = vmatprep.subr.bf16.mxu0 0
        %2333 = vmatpush1.bf16.msra.mxu0 %v2033
        %2334 = vmatprep.subr.bf16.mxu0 0
        %2335 = vmatpush1.bf16.msra.mxu0 %v2034
        %2336 = vmatprep.subr.bf16.mxu0 0
        %2337 = vmatpush1.bf16.msra.mxu0 %v2035
        %2338 = vmatprep.subr.bf16.mxu0 0
        %2339 = vmatpush1.bf16.msra.mxu0 %v2036
        %2340 = vmatprep.subr.bf16.mxu0 0
        %2341 = vmatpush1.bf16.msra.mxu0 %v2037
        %2342 = vmatprep.subr.bf16.mxu0 0
        %2343 = vmatpush1.bf16.msra.mxu0 %v2038
        %2344 = vmatprep.mubr.bf16.mxu0 %v1345
        %2345 = vmatmul.mubr.bf16.gmra.mrb[0].mxu0 %v1284
        %v2346 = vpop.f32.mrb[0].mxu0
        %v2347 = vadd.f32 %v2186, %v2346
        %v2348 = vpop.f32.mrb[0].mxu0
        %v2349 = vpop.f32.mrb[0].mxu0
        %v2350 = vadd.f32 %v2189, %v2349
        %v2351 = vpop.f32.mrb[0].mxu0
        %2352 = vmatprep.mubr.bf16.mxu0 %v1347
        %2353 = vmatmul.mubr.bf16.gmra.mrb[0].mxu0 %v1286
        %v2354 = vpop.f32.mrb[0].mxu0
        %v2355 = vadd.f32 %v2194, %v2354
        %v2356 = vpop.f32.mrb[0].mxu0
        %v2357 = vpop.f32.mrb[0].mxu0
        %v2358 = vadd.f32 %v2197, %v2357
        %v2359 = vpop.f32.mrb[0].mxu0
        %2360 = vmatprep.mubr.bf16.mxu0 %v1349
        %2361 = vmatmul.mubr.bf16.gmra.mrb[0].mxu0 %v1288
        %v2362 = vpop.f32.mrb[0].mxu0
        %v2363 = vadd.f32 %v2202, %v2362
        %v2364 = vpop.f32.mrb[0].mxu0
        %v2365 = vpop.f32.mrb[0].mxu0
        %v2366 = vadd.f32 %v2205, %v2365
        %v2367 = vpop.f32.mrb[0].mxu0
        %2368 = vmatprep.mubr.bf16.mxu0 %v1351
        %2369 = vmatmul.mubr.bf16.gmra.mrb[0].mxu0 %v1290
        %v2370 = vpop.f32.mrb[0].mxu0
        %v2371 = vadd.f32 %v2210, %v2370
        %v2372 = vpop.f32.mrb[0].mxu0
        %v2373 = vpop.f32.mrb[0].mxu0
        %v2374 = vadd.f32 %v2213, %v2373
        %v2375 = vpop.f32.mrb[0].mxu0
        %2376 = vmatprep.mubr.bf16.mxu0 %v1354
        %2377 = vmatmul.mubr.bf16.gmra.mrb[0].mxu0 %v1293
        %v2378 = vpop.f32.mrb[0].mxu0
        %v2379 = vadd.f32 %v2218, %v2378
        %v2380 = vpop.f32.mrb[0].mxu0
        %v2381 = vpop.f32.mrb[0].mxu0
        %v2382 = vadd.f32 %v2221, %v2381
        %v2383 = vpop.f32.mrb[0].mxu0
        %2384 = vmatprep.mubr.bf16.mxu0 %v1356
        %2385 = vmatmul.mubr.bf16.gmra.mrb[0].mxu0 %v1295
        %v2386 = vpop.f32.mrb[0].mxu0
        %v2387 = vadd.f32 %v2226, %v2386
        %v2388 = vpop.f32.mrb[0].mxu0
        %v2389 = vpop.f32.mrb[0].mxu0
        %v2390 = vadd.f32 %v2229, %v2389
        %v2391 = vpop.f32.mrb[0].mxu0
        %2392 = vmatprep.mubr.bf16.mxu0 %v1358
        %2393 = vmatmul.mubr.bf16.gmra.mrb[0].mxu0 %v1297
        %v2394 = vpop.f32.mrb[0].mxu0
        %v2395 = vadd.f32 %v2234, %v2394
        %v2396 = vpop.f32.mrb[0].mxu0
        %v2397 = vpop.f32.mrb[0].mxu0
        %v2398 = vadd.f32 %v2237, %v2397
        %v2399 = vpop.f32.mrb[0].mxu0
        %2400 = vmatprep.mubr.bf16.mxu0 %v1360
        %2401 = vmatmul.mubr.bf16.gmra.mrb[0].mxu0 %v1299
        %v2402 = vpop.f32.mrb[0].mxu0
        %v2403 = vadd.f32 %v2242, %v2402
        %v2404 = vpop.f32.mrb[0].mxu0
        %v2405 = vpop.f32.mrb[0].mxu0
        %v2406 = vadd.f32 %v2245, %v2405
        %v2407 = vpop.f32.mrb[0].mxu0
        %2408 = vmatprep.mubr.bf16.mxu0 %v1363
        %2409 = vmatmul.mubr.bf16.gmra.mrb[0].mxu0 %v1302
        %v2410 = vpop.f32.mrb[0].mxu0
        %v2411 = vadd.f32 %v2250, %v2410
        %v2412 = vpop.f32.mrb[0].mxu0
        %v2413 = vpop.f32.mrb[0].mxu0
        %v2414 = vadd.f32 %v2253, %v2413
        %v2415 = vpop.f32.mrb[0].mxu0
        %2416 = vmatprep.mubr.bf16.mxu0 %v1365
        %2417 = vmatmul.mubr.bf16.gmra.mrb[0].mxu0 %v1304
        %v2418 = vpop.f32.mrb[0].mxu0
        %v2419 = vadd.f32 %v2258, %v2418
        %v2420 = vpop.f32.mrb[0].mxu0
        %v2421 = vpop.f32.mrb[0].mxu0
        %v2422 = vadd.f32 %v2261, %v2421
        %v2423 = vpop.f32.mrb[0].mxu0
        %2424 = vmatprep.mubr.bf16.mxu0 %v1367
        %2425 = vmatmul.mubr.bf16.gmra.mrb[0].mxu0 %v1306
        %v2426 = vpop.f32.mrb[0].mxu0
        %v2427 = vadd.f32 %v2266, %v2426
        %v2428 = vpop.f32.mrb[0].mxu0
        %v2429 = vpop.f32.mrb[0].mxu0
        %v2430 = vadd.f32 %v2269, %v2429
        %v2431 = vpop.f32.mrb[0].mxu0
        %2432 = vmatprep.mubr.bf16.mxu0 %v1369
        %2433 = vmatmul.mubr.bf16.gmra.mrb[0].mxu0 %v1308
        %v2434 = vpop.f32.mrb[0].mxu0
        %v2435 = vadd.f32 %v2274, %v2434
        %v2436 = vpop.f32.mrb[0].mxu0
        %v2437 = vpop.f32.mrb[0].mxu0
        %v2438 = vadd.f32 %v2277, %v2437
        %v2439 = vpop.f32.mrb[0].mxu0
        %2440 = vmatprep.mubr.bf16.mxu0 %v1372
        %2441 = vmatmul.mubr.bf16.gmra.mrb[0].mxu0 %v1311
        %v2442 = vpop.f32.mrb[0].mxu0
        %v2443 = vadd.f32 %v2282, %v2442
        %v2444 = vpop.f32.mrb[0].mxu0
        %v2445 = vpop.f32.mrb[0].mxu0
        %v2446 = vadd.f32 %v2285, %v2445
        %v2447 = vpop.f32.mrb[0].mxu0
        %2448 = vmatprep.mubr.bf16.mxu0 %v1374
        %2449 = vmatmul.mubr.bf16.gmra.mrb[0].mxu0 %v1313
        %v2450 = vpop.f32.mrb[0].mxu0
        %v2451 = vadd.f32 %v2290, %v2450
        %v2452 = vpop.f32.mrb[0].mxu0
        %v2453 = vpop.f32.mrb[0].mxu0
        %v2454 = vadd.f32 %v2293, %v2453
        %v2455 = vpop.f32.mrb[0].mxu0
        %2456 = vmatprep.mubr.bf16.mxu0 %v1376
        %2457 = vmatmul.mubr.bf16.gmra.mrb[0].mxu0 %v1315
        %v2458 = vpop.f32.mrb[0].mxu0
        %v2459 = vadd.f32 %v2298, %v2458
        %v2460 = vpop.f32.mrb[0].mxu0
        %v2461 = vpop.f32.mrb[0].mxu0
        %v2462 = vadd.f32 %v2301, %v2461
        %v2463 = vpop.f32.mrb[0].mxu0
        %2464 = vmatprep.mubr.bf16.mxu0 %v1378
        %2465 = vmatmul.mubr.bf16.gmra.mrb[0].mxu0 %v1317
        %v2466 = vpop.f32.mrb[0].mxu0
        %v2467 = vadd.f32 %v2306, %v2466
        %v2468 = vpop.f32.mrb[0].mxu0
        %v2469 = vpop.f32.mrb[0].mxu0
        %v2470 = vadd.f32 %v2309, %v2469
        %v2471 = vpop.f32.mrb[0].mxu0
        %2472 = vdwg.mxu0
        %2473 = vmatprep.subr.bf16.mxu0 0
        %2474 = vmatpush1.bf16.msra.mxu0 %v2039
        %2475 = vmatprep.subr.bf16.mxu0 0
        %2476 = vmatpush1.bf16.msra.mxu0 %v2040
        %2477 = vmatprep.subr.bf16.mxu0 0
        %2478 = vmatpush1.bf16.msra.mxu0 %v2041
        %2479 = vmatprep.subr.bf16.mxu0 0
        %2480 = vmatpush1.bf16.msra.mxu0 %v2042
        %2481 = vmatprep.subr.bf16.mxu0 0
        %2482 = vmatpush1.bf16.msra.mxu0 %v2043
        %2483 = vmatprep.subr.bf16.mxu0 0
        %2484 = vmatpush1.bf16.msra.mxu0 %v2044
        %2485 = vmatprep.subr.bf16.mxu0 0
        %2486 = vmatpush1.bf16.msra.mxu0 %v2045
        %2487 = vmatprep.subr.bf16.mxu0 0
        %2488 = vmatpush1.bf16.msra.mxu0 %v2046
        %2489 = vmatprep.subr.bf16.mxu0 0
        %2490 = vmatpush1.bf16.msra.mxu0 %v2047
        %2491 = vmatprep.subr.bf16.mxu0 0
        %2492 = vmatpush1.bf16.msra.mxu0 %v2048
        %2493 = vmatprep.subr.bf16.mxu0 0
        %2494 = vmatpush1.bf16.msra.mxu0 %v2049
        %2495 = vmatprep.subr.bf16.mxu0 0
        %2496 = vmatpush1.bf16.msra.mxu0 %v2050
        %2497 = vmatprep.subr.bf16.mxu0 0
        %2498 = vmatpush1.bf16.msra.mxu0 %v2051
        %2499 = vmatprep.subr.bf16.mxu0 0
        %2500 = vmatpush1.bf16.msra.mxu0 %v2052
        %2501 = vmatprep.subr.bf16.mxu0 0
        %2502 = vmatpush1.bf16.msra.mxu0 %v2053
        %2503 = vmatprep.subr.bf16.mxu0 0
        %2504 = vmatpush1.bf16.msra.mxu0 %v2054
        %2505 = vmatprep.mubr.bf16.mxu0 %v1499
        %2506 = vmatmul.mubr.bf16.gmra.mrb[0].mxu0 %v1402
        %v2507 = vpop.f32.mrb[0].mxu0
        %v2508 = vadd.f32 %v2347, %v2507
        %v2509 = vpop.f32.mrb[0].mxu0
        %v2510 = vpop.f32.mrb[0].mxu0
        %v2511 = vadd.f32 %v2350, %v2510
        %v2512 = vpop.f32.mrb[0].mxu0
        %2513 = vmatprep.mubr.bf16.mxu0 %v1501
        %2514 = vmatmul.mubr.bf16.gmra.mrb[0].mxu0 %v1406
        %v2515 = vpop.f32.mrb[0].mxu0
        %v2516 = vadd.f32 %v2355, %v2515
        %v2517 = vpop.f32.mrb[0].mxu0
        %v2518 = vpop.f32.mrb[0].mxu0
        %v2519 = vadd.f32 %v2358, %v2518
        %v2520 = vpop.f32.mrb[0].mxu0
        %2521 = vmatprep.mubr.bf16.mxu0 %v1503
        %2522 = vmatmul.mubr.bf16.gmra.mrb[0].mxu0 %v1410
        %v2523 = vpop.f32.mrb[0].mxu0
        %v2524 = vadd.f32 %v2363, %v2523
        %v2525 = vpop.f32.mrb[0].mxu0
        %v2526 = vpop.f32.mrb[0].mxu0
        %v2527 = vadd.f32 %v2366, %v2526
        %v2528 = vpop.f32.mrb[0].mxu0
        %2529 = vmatprep.mubr.bf16.mxu0 %v1505
        %2530 = vmatmul.mubr.bf16.gmra.mrb[0].mxu0 %v1416
        %v2531 = vpop.f32.mrb[0].mxu0
        %v2532 = vadd.f32 %v2371, %v2531
        %v2533 = vpop.f32.mrb[0].mxu0
        %v2534 = vpop.f32.mrb[0].mxu0
        %v2535 = vadd.f32 %v2374, %v2534
        %v2536 = vpop.f32.mrb[0].mxu0
        %2537 = vmatprep.mubr.bf16.mxu0 %v1508
        %2538 = vmatmul.mubr.bf16.gmra.mrb[0].mxu0 %v1423
        %v2539 = vpop.f32.mrb[0].mxu0
        %v2540 = vadd.f32 %v2379, %v2539
        %v2541 = vpop.f32.mrb[0].mxu0
        %v2542 = vpop.f32.mrb[0].mxu0
        %v2543 = vadd.f32 %v2382, %v2542
        %v2544 = vpop.f32.mrb[0].mxu0
        %2545 = vmatprep.mubr.bf16.mxu0 %v1510
        %2546 = vmatmul.mubr.bf16.gmra.mrb[0].mxu0 %v1427
        %v2547 = vpop.f32.mrb[0].mxu0
        %v2548 = vadd.f32 %v2387, %v2547
        %v2549 = vpop.f32.mrb[0].mxu0
        %v2550 = vpop.f32.mrb[0].mxu0
        %v2551 = vadd.f32 %v2390, %v2550
        %v2552 = vpop.f32.mrb[0].mxu0
        %2553 = vmatprep.mubr.bf16.mxu0 %v1512
        %2554 = vmatmul.mubr.bf16.gmra.mrb[0].mxu0 %v1431
        %v2555 = vpop.f32.mrb[0].mxu0
        %v2556 = vadd.f32 %v2395, %v2555
        %v2557 = vpop.f32.mrb[0].mxu0
        %v2558 = vpop.f32.mrb[0].mxu0
        %v2559 = vadd.f32 %v2398, %v2558
        %v2560 = vpop.f32.mrb[0].mxu0
        %2561 = vmatprep.mubr.bf16.mxu0 %v1514
        %2562 = vmatmul.mubr.bf16.gmra.mrb[0].mxu0 %v1437
        %v2563 = vpop.f32.mrb[0].mxu0
        %v2564 = vadd.f32 %v2403, %v2563
        %v2565 = vpop.f32.mrb[0].mxu0
        %v2566 = vpop.f32.mrb[0].mxu0
        %v2567 = vadd.f32 %v2406, %v2566
        %v2568 = vpop.f32.mrb[0].mxu0
        %2569 = vmatprep.mubr.bf16.mxu0 %v1517
        %2570 = vmatmul.mubr.bf16.gmra.mrb[0].mxu0 %v1444
        %v2571 = vpop.f32.mrb[0].mxu0
        %v2572 = vadd.f32 %v2411, %v2571
        %v2573 = vpop.f32.mrb[0].mxu0
        %v2574 = vpop.f32.mrb[0].mxu0
        %v2575 = vadd.f32 %v2414, %v2574
        %v2576 = vpop.f32.mrb[0].mxu0
        %2577 = vmatprep.mubr.bf16.mxu0 %v1519
        %2578 = vmatmul.mubr.bf16.gmra.mrb[0].mxu0 %v1448
        %v2579 = vpop.f32.mrb[0].mxu0
        %v2580 = vadd.f32 %v2419, %v2579
        %v2581 = vpop.f32.mrb[0].mxu0
        %v2582 = vpop.f32.mrb[0].mxu0
        %v2583 = vadd.f32 %v2422, %v2582
        %v2584 = vpop.f32.mrb[0].mxu0
        %2585 = vmatprep.mubr.bf16.mxu0 %v1521
        %2586 = vmatmul.mubr.bf16.gmra.mrb[0].mxu0 %v1452
        %v2587 = vpop.f32.mrb[0].mxu0
        %v2588 = vadd.f32 %v2427, %v2587
        %v2589 = vpop.f32.mrb[0].mxu0
        %v2590 = vpop.f32.mrb[0].mxu0
        %v2591 = vadd.f32 %v2430, %v2590
        %v2592 = vpop.f32.mrb[0].mxu0
        %2593 = vmatprep.mubr.bf16.mxu0 %v1523
        %2594 = vmatmul.mubr.bf16.gmra.mrb[0].mxu0 %v1458
        %v2595 = vpop.f32.mrb[0].mxu0
        %v2596 = vadd.f32 %v2435, %v2595
        %v2597 = vpop.f32.mrb[0].mxu0
        %v2598 = vpop.f32.mrb[0].mxu0
        %v2599 = vadd.f32 %v2438, %v2598
        %v2600 = vpop.f32.mrb[0].mxu0
        %2601 = vmatprep.mubr.bf16.mxu0 %v1526
        %2602 = vmatmul.mubr.bf16.gmra.mrb[0].mxu0 %v1465
        %v2603 = vpop.f32.mrb[0].mxu0
        %v2604 = vadd.f32 %v2443, %v2603
        %v2605 = vpop.f32.mrb[0].mxu0
        %v2606 = vpop.f32.mrb[0].mxu0
        %v2607 = vadd.f32 %v2446, %v2606
        %v2608 = vpop.f32.mrb[0].mxu0
        %2609 = vmatprep.mubr.bf16.mxu0 %v1528
        %2610 = vmatmul.mubr.bf16.gmra.mrb[0].mxu0 %v1469
        %v2611 = vpop.f32.mrb[0].mxu0
        %v2612 = vadd.f32 %v2451, %v2611
        %v2613 = vpop.f32.mrb[0].mxu0
        %v2614 = vpop.f32.mrb[0].mxu0
        %v2615 = vadd.f32 %v2454, %v2614
        %v2616 = vpop.f32.mrb[0].mxu0
        %2617 = vmatprep.mubr.bf16.mxu0 %v1530
        %2618 = vmatmul.mubr.bf16.gmra.mrb[0].mxu0 %v1473
        %v2619 = vpop.f32.mrb[0].mxu0
        %v2620 = vadd.f32 %v2459, %v2619
        %v2621 = vpop.f32.mrb[0].mxu0
        %v2622 = vpop.f32.mrb[0].mxu0
        %v2623 = vadd.f32 %v2462, %v2622
        %v2624 = vpop.f32.mrb[0].mxu0
        %2625 = vmatprep.mubr.bf16.mxu0 %v1532
        %2626 = vmatmul.mubr.bf16.gmra.mrb[0].mxu0 %v1479
        %v2627 = vpop.f32.mrb[0].mxu0
        %v2628 = vadd.f32 %v2467, %v2627
        %v2629 = vpop.f32.mrb[0].mxu0
        %v2630 = vpop.f32.mrb[0].mxu0
        %v2631 = vadd.f32 %v2470, %v2630
        %v2632 = vpop.f32.mrb[0].mxu0
        %2633 = vdwg.mxu0
        %2634 = vmatprep.subr.bf16.mxu0 0
        %2635 = vmatpush1.bf16.msra.mxu0 %v2055
        %2636 = vmatprep.subr.bf16.mxu0 0
        %2637 = vmatpush1.bf16.msra.mxu0 %v2056
        %2638 = vmatprep.subr.bf16.mxu0 0
        %2639 = vmatpush1.bf16.msra.mxu0 %v2057
        %2640 = vmatprep.subr.bf16.mxu0 0
        %2641 = vmatpush1.bf16.msra.mxu0 %v2058
        %2642 = vmatprep.subr.bf16.mxu0 0
        %2643 = vmatpush1.bf16.msra.mxu0 %v2059
        %2644 = vmatprep.subr.bf16.mxu0 0
        %2645 = vmatpush1.bf16.msra.mxu0 %v2060
        %2646 = vmatprep.subr.bf16.mxu0 0
        %2647 = vmatpush1.bf16.msra.mxu0 %v2061
        %2648 = vmatprep.subr.bf16.mxu0 0
        %2649 = vmatpush1.bf16.msra.mxu0 %v2062
        %2650 = vmatprep.subr.bf16.mxu0 0
        %2651 = vmatpush1.bf16.msra.mxu0 %v2063
        %2652 = vmatprep.subr.bf16.mxu0 0
        %2653 = vmatpush1.bf16.msra.mxu0 %v2064
        %2654 = vmatprep.subr.bf16.mxu0 0
        %2655 = vmatpush1.bf16.msra.mxu0 %v2065
        %2656 = vmatprep.subr.bf16.mxu0 0
        %2657 = vmatpush1.bf16.msra.mxu0 %v2066
        %2658 = vmatprep.subr.bf16.mxu0 0
        %2659 = vmatpush1.bf16.msra.mxu0 %v2067
        %2660 = vmatprep.subr.bf16.mxu0 0
        %2661 = vmatpush1.bf16.msra.mxu0 %v2068
        %2662 = vmatprep.subr.bf16.mxu0 0
        %2663 = vmatpush1.bf16.msra.mxu0 %v2069
        %2664 = vmatprep.subr.bf16.mxu0 0
        %2665 = vmatpush1.bf16.msra.mxu0 %v2070
        %2666 = vmatprep.mubr.bf16.mxu0 %v1132
        %2667 = vmatmul.mubr.bf16.gmra.mrb[0].mxu0 %v566
        %v2668 = vpop.f32.mrb[0].mxu0
        %v2669 = vadd.f32 %v2508, %v2668
        %v2670 = vpop.f32.mrb[0].mxu0
        %v2671 = vpop.f32.mrb[0].mxu0
        %v2672 = vadd.f32 %v2511, %v2671
        %v2673 = vpop.f32.mrb[0].mxu0
        %2674 = vmatprep.mubr.bf16.mxu0 %v1140
        %2675 = vmatmul.mubr.bf16.gmra.mrb[0].mxu0 %v575
        %v2676 = vpop.f32.mrb[0].mxu0
        %v2677 = vadd.f32 %v2516, %v2676
        %v2678 = vpop.f32.mrb[0].mxu0
        %v2679 = vpop.f32.mrb[0].mxu0
        %v2680 = vadd.f32 %v2519, %v2679
        %v2681 = vpop.f32.mrb[0].mxu0
        %2682 = vmatprep.mubr.bf16.mxu0 %v1148
        %2683 = vmatmul.mubr.bf16.gmra.mrb[0].mxu0 %v584
        %v2684 = vpop.f32.mrb[0].mxu0
        %v2685 = vadd.f32 %v2524, %v2684
        %v2686 = vpop.f32.mrb[0].mxu0
        %v2687 = vpop.f32.mrb[0].mxu0
        %v2688 = vadd.f32 %v2527, %v2687
        %v2689 = vpop.f32.mrb[0].mxu0
        %2690 = vmatprep.mubr.bf16.mxu0 %v1554
        %2691 = vmatmul.mubr.bf16.gmra.mrb[0].mxu0 %v716
        %v2692 = vpop.f32.mrb[0].mxu0
        %v2693 = vadd.f32 %v2532, %v2692
        %v2694 = vpop.f32.mrb[0].mxu0
        %v2695 = vpop.f32.mrb[0].mxu0
        %v2696 = vadd.f32 %v2535, %v2695
        %v2697 = vpop.f32.mrb[0].mxu0
        %2698 = vmatprep.mubr.bf16.mxu0 %v1168
        %2699 = vmatmul.mubr.bf16.gmra.mrb[0].mxu0 %v601
        %v2700 = vpop.f32.mrb[0].mxu0
        %v2701 = vadd.f32 %v2540, %v2700
        %v2702 = vpop.f32.mrb[0].mxu0
        %v2703 = vpop.f32.mrb[0].mxu0
        %v2704 = vadd.f32 %v2543, %v2703
        %v2705 = vpop.f32.mrb[0].mxu0
        %2706 = vmatprep.mubr.bf16.mxu0 %v1176
        %2707 = vmatmul.mubr.bf16.gmra.mrb[0].mxu0 %v610
        %v2708 = vpop.f32.mrb[0].mxu0
        %v2709 = vadd.f32 %v2548, %v2708
        %v2710 = vpop.f32.mrb[0].mxu0
        %v2711 = vpop.f32.mrb[0].mxu0
        %v2712 = vadd.f32 %v2551, %v2711
        %v2713 = vpop.f32.mrb[0].mxu0
        %2714 = vmatprep.mubr.bf16.mxu0 %v1184
        %2715 = vmatmul.mubr.bf16.gmra.mrb[0].mxu0 %v619
        %v2716 = vpop.f32.mrb[0].mxu0
        %v2717 = vadd.f32 %v2556, %v2716
        %v2718 = vpop.f32.mrb[0].mxu0
        %v2719 = vpop.f32.mrb[0].mxu0
        %v2720 = vadd.f32 %v2559, %v2719
        %v2721 = vpop.f32.mrb[0].mxu0
        %2722 = vmatprep.mubr.bf16.mxu0 %v1556
        %2723 = vmatmul.mubr.bf16.gmra.mrb[0].mxu0 %v717
        %v2724 = vpop.f32.mrb[0].mxu0
        %v2725 = vadd.f32 %v2564, %v2724
        %v2726 = vpop.f32.mrb[0].mxu0
        %v2727 = vpop.f32.mrb[0].mxu0
        %v2728 = vadd.f32 %v2567, %v2727
        %v2729 = vpop.f32.mrb[0].mxu0
        %2730 = vmatprep.mubr.bf16.mxu0 %v1204
        %2731 = vmatmul.mubr.bf16.gmra.mrb[0].mxu0 %v636
        %v2732 = vpop.f32.mrb[0].mxu0
        %v2733 = vadd.f32 %v2572, %v2732
        %v2734 = vpop.f32.mrb[0].mxu0
        %v2735 = vpop.f32.mrb[0].mxu0
        %v2736 = vadd.f32 %v2575, %v2735
        %v2737 = vpop.f32.mrb[0].mxu0
        %2738 = vmatprep.mubr.bf16.mxu0 %v1212
        %2739 = vmatmul.mubr.bf16.gmra.mrb[0].mxu0 %v645
        %v2740 = vpop.f32.mrb[0].mxu0
        %v2741 = vadd.f32 %v2580, %v2740
        %v2742 = vpop.f32.mrb[0].mxu0
        %v2743 = vpop.f32.mrb[0].mxu0
        %v2744 = vadd.f32 %v2583, %v2743
        %v2745 = vpop.f32.mrb[0].mxu0
        %2746 = vmatprep.mubr.bf16.mxu0 %v1220
        %2747 = vmatmul.mubr.bf16.gmra.mrb[0].mxu0 %v654
        %v2748 = vpop.f32.mrb[0].mxu0
        %v2749 = vadd.f32 %v2588, %v2748
        %v2750 = vpop.f32.mrb[0].mxu0
        %v2751 = vpop.f32.mrb[0].mxu0
        %v2752 = vadd.f32 %v2591, %v2751
        %v2753 = vpop.f32.mrb[0].mxu0
        %2754 = vmatprep.mubr.bf16.mxu0 %v1558
        %2755 = vmatmul.mubr.bf16.gmra.mrb[0].mxu0 %v718
        %v2756 = vpop.f32.mrb[0].mxu0
        %v2757 = vadd.f32 %v2596, %v2756
        %v2758 = vpop.f32.mrb[0].mxu0
        %v2759 = vpop.f32.mrb[0].mxu0
        %v2760 = vadd.f32 %v2599, %v2759
        %v2761 = vpop.f32.mrb[0].mxu0
        %2762 = vmatprep.mubr.bf16.mxu0 %v1240
        %2763 = vmatmul.mubr.bf16.gmra.mrb[0].mxu0 %v671
        %v2764 = vpop.f32.mrb[0].mxu0
        %v2765 = vadd.f32 %v2604, %v2764
        %v2766 = vpop.f32.mrb[0].mxu0
        %v2767 = vpop.f32.mrb[0].mxu0
        %v2768 = vadd.f32 %v2607, %v2767
        %v2769 = vpop.f32.mrb[0].mxu0
        %2770 = vmatprep.mubr.bf16.mxu0 %v1248
        %2771 = vmatmul.mubr.bf16.gmra.mrb[0].mxu0 %v680
        %v2772 = vpop.f32.mrb[0].mxu0
        %v2773 = vadd.f32 %v2612, %v2772
        %v2774 = vpop.f32.mrb[0].mxu0
        %v2775 = vpop.f32.mrb[0].mxu0
        %v2776 = vadd.f32 %v2615, %v2775
        %v2777 = vpop.f32.mrb[0].mxu0
        %2778 = vmatprep.mubr.bf16.mxu0 %v1256
        %2779 = vmatmul.mubr.bf16.gmra.mrb[0].mxu0 %v689
        %v2780 = vpop.f32.mrb[0].mxu0
        %v2781 = vadd.f32 %v2620, %v2780
        %v2782 = vpop.f32.mrb[0].mxu0
        %v2783 = vpop.f32.mrb[0].mxu0
        %v2784 = vadd.f32 %v2623, %v2783
        %v2785 = vpop.f32.mrb[0].mxu0
        %2786 = vmatprep.mubr.bf16.mxu0 %v1560
        %2787 = vmatmul.mubr.bf16.gmra.mrb[0].mxu0 %v719
        %v2788 = vpop.f32.mrb[0].mxu0
        %v2789 = vadd.f32 %v2628, %v2788
        %v2790 = vpop.f32.mrb[0].mxu0
        %v2791 = vpop.f32.mrb[0].mxu0
        %v2792 = vadd.f32 %v2631, %v2791
        %v2793 = vpop.f32.mrb[0].mxu0
        %2794 = vdwg.mxu0
        %2795 = vmatprep.subr.bf16.mxu0 0
        %2796 = vmatpush1.bf16.msra.mxu0 %v2071
        %2797 = vmatprep.subr.bf16.mxu0 0
        %2798 = vmatpush1.bf16.msra.mxu0 %v2072
        %2799 = vmatprep.subr.bf16.mxu0 0
        %2800 = vmatpush1.bf16.msra.mxu0 %v2073
        %2801 = vmatprep.subr.bf16.mxu0 0
        %2802 = vmatpush1.bf16.msra.mxu0 %v2074
        %2803 = vmatprep.subr.bf16.mxu0 0
        %2804 = vmatpush1.bf16.msra.mxu0 %v2075
        %2805 = vmatprep.subr.bf16.mxu0 0
        %2806 = vmatpush1.bf16.msra.mxu0 %v2076
        %2807 = vmatprep.subr.bf16.mxu0 0
        %2808 = vmatpush1.bf16.msra.mxu0 %v2077
        %2809 = vmatprep.subr.bf16.mxu0 0
        %2810 = vmatpush1.bf16.msra.mxu0 %v2078
        %2811 = vmatprep.subr.bf16.mxu0 0
        %2812 = vmatpush1.bf16.msra.mxu0 0
        %2813 = vmatprep.subr.bf16.mxu0 0
        %2814 = vmatpush1.bf16.msra.mxu0 0
        %2815 = vmatprep.subr.bf16.mxu0 0
        %2816 = vmatpush1.bf16.msra.mxu0 0
        %2817 = vmatprep.subr.bf16.mxu0 0
        %2818 = vmatpush1.bf16.msra.mxu0 0
        %2819 = vmatprep.subr.bf16.mxu0 0
        %2820 = vmatpush1.bf16.msra.mxu0 0
        %2821 = vmatprep.subr.bf16.mxu0 0
        %2822 = vmatpush1.bf16.msra.mxu0 0
        %2823 = vmatprep.subr.bf16.mxu0 0
        %2824 = vmatpush1.bf16.msra.mxu0 0
        %2825 = vmatprep.subr.bf16.mxu0 0
        %2826 = vmatpush1.bf16.msra.mxu0 0
        %2827 = vmatprep.mubr.bf16.mxu0 0
        %2828 = vmatmul.mubr.bf16.gmra.mrb[0].mxu0 %v1286
        %v2829 = vpop.f32.mrb[0].mxu0
        %v2830 = vadd.f32 %v2669, %v2829
        %v2831 = vpop.f32.mrb[0].mxu0
        %v2832 = vpop.f32.mrb[0].mxu0
        %v2833 = vadd.f32 %v2672, %v2832
        %v2834 = vpop.f32.mrb[0].mxu0
        %2835 = vmatprep.mubr.bf16.mxu0 0
        %2836 = vmatmul.mubr.bf16.gmra.mrb[0].mxu0 %v1288
        %v2837 = vpop.f32.mrb[0].mxu0
        %v2838 = vadd.f32 %v2677, %v2837
        %v2839 = vpop.f32.mrb[0].mxu0
        %v2840 = vpop.f32.mrb[0].mxu0
        %v2841 = vadd.f32 %v2680, %v2840
        %v2842 = vpop.f32.mrb[0].mxu0
        %2843 = vmatprep.mubr.bf16.mxu0 0
        %2844 = vmatmul.mubr.bf16.gmra.mrb[0].mxu0 %v1290
        %v2845 = vpop.f32.mrb[0].mxu0
        %v2846 = vadd.f32 %v2685, %v2845
        %v2847 = vpop.f32.mrb[0].mxu0
        %v2848 = vpop.f32.mrb[0].mxu0
        %v2849 = vadd.f32 %v2688, %v2848
        %v2850 = vpop.f32.mrb[0].mxu0
        %2851 = vmatprep.mubr.bf16.mxu0 0
        %2852 = vmatmul.mubr.bf16.gmra.mrb[0].mxu0 %v1567
        %v2853 = vpop.f32.mrb[0].mxu0
        %v2854 = vadd.f32 %v2693, %v2853
        %v2855 = vpop.f32.mrb[0].mxu0
        %v2856 = vpop.f32.mrb[0].mxu0
        %v2857 = vadd.f32 %v2696, %v2856
        %v2858 = vpop.f32.mrb[0].mxu0
        %2859 = vmatprep.mubr.bf16.mxu0 0
        %2860 = vmatmul.mubr.bf16.gmra.mrb[0].mxu0 %v1295
        %v2861 = vpop.f32.mrb[0].mxu0
        %v2862 = vadd.f32 %v2701, %v2861
        %v2863 = vpop.f32.mrb[0].mxu0
        %v2864 = vpop.f32.mrb[0].mxu0
        %v2865 = vadd.f32 %v2704, %v2864
        %v2866 = vpop.f32.mrb[0].mxu0
        %2867 = vmatprep.mubr.bf16.mxu0 0
        %2868 = vmatmul.mubr.bf16.gmra.mrb[0].mxu0 %v1297
        %v2869 = vpop.f32.mrb[0].mxu0
        %v2870 = vadd.f32 %v2709, %v2869
        %v2871 = vpop.f32.mrb[0].mxu0
        %v2872 = vpop.f32.mrb[0].mxu0
        %v2873 = vadd.f32 %v2712, %v2872
        %v2874 = vpop.f32.mrb[0].mxu0
        %2875 = vmatprep.mubr.bf16.mxu0 0
        %2876 = vmatmul.mubr.bf16.gmra.mrb[0].mxu0 %v1299
        %v2877 = vpop.f32.mrb[0].mxu0
        %v2878 = vadd.f32 %v2717, %v2877
        %v2879 = vpop.f32.mrb[0].mxu0
        %v2880 = vpop.f32.mrb[0].mxu0
        %v2881 = vadd.f32 %v2720, %v2880
        %v2882 = vpop.f32.mrb[0].mxu0
        %2883 = vmatprep.mubr.bf16.mxu0 0
        %2884 = vmatmul.mubr.bf16.gmra.mrb[0].mxu0 %v1568
        %v2885 = vpop.f32.mrb[0].mxu0
        %v2886 = vadd.f32 %v2725, %v2885
        %v2887 = vpop.f32.mrb[0].mxu0
        %v2888 = vpop.f32.mrb[0].mxu0
        %v2889 = vadd.f32 %v2728, %v2888
        %v2890 = vpop.f32.mrb[0].mxu0
        %2891 = vmatprep.mubr.bf16.mxu0 0
        %2892 = vmatmul.mubr.bf16.gmra.mrb[0].mxu0 %v1304
        %v2893 = vpop.f32.mrb[0].mxu0
        %v2894 = vadd.f32 %v2733, %v2893
        %v2895 = vpop.f32.mrb[0].mxu0
        %v2896 = vpop.f32.mrb[0].mxu0
        %v2897 = vadd.f32 %v2736, %v2896
        %v2898 = vpop.f32.mrb[0].mxu0
        %2899 = vmatprep.mubr.bf16.mxu0 0
        %2900 = vmatmul.mubr.bf16.gmra.mrb[0].mxu0 %v1306
        %v2901 = vpop.f32.mrb[0].mxu0
        %v2902 = vadd.f32 %v2741, %v2901
        %v2903 = vpop.f32.mrb[0].mxu0
        %v2904 = vpop.f32.mrb[0].mxu0
        %v2905 = vadd.f32 %v2744, %v2904
        %v2906 = vpop.f32.mrb[0].mxu0
        %2907 = vmatprep.mubr.bf16.mxu0 0
        %2908 = vmatmul.mubr.bf16.gmra.mrb[0].mxu0 %v1308
        %v2909 = vpop.f32.mrb[0].mxu0
        %v2910 = vadd.f32 %v2749, %v2909
        %v2911 = vpop.f32.mrb[0].mxu0
        %v2912 = vpop.f32.mrb[0].mxu0
        %v2913 = vadd.f32 %v2752, %v2912
        %v2914 = vpop.f32.mrb[0].mxu0
        %2915 = vmatprep.mubr.bf16.mxu0 0
        %2916 = vmatmul.mubr.bf16.gmra.mrb[0].mxu0 %v1569
        %v2917 = vpop.f32.mrb[0].mxu0
        %v2918 = vadd.f32 %v2757, %v2917
        %v2919 = vpop.f32.mrb[0].mxu0
        %v2920 = vpop.f32.mrb[0].mxu0
        %v2921 = vadd.f32 %v2760, %v2920
        %v2922 = vpop.f32.mrb[0].mxu0
        %2923 = vmatprep.mubr.bf16.mxu0 0
        %2924 = vmatmul.mubr.bf16.gmra.mrb[0].mxu0 %v1313
        %v2925 = vpop.f32.mrb[0].mxu0
        %v2926 = vadd.f32 %v2765, %v2925
        %v2927 = vpop.f32.mrb[0].mxu0
        %v2928 = vpop.f32.mrb[0].mxu0
        %v2929 = vadd.f32 %v2768, %v2928
        %v2930 = vpop.f32.mrb[0].mxu0
        %2931 = vmatprep.mubr.bf16.mxu0 0
        %2932 = vmatmul.mubr.bf16.gmra.mrb[0].mxu0 %v1315
        %v2933 = vpop.f32.mrb[0].mxu0
        %v2934 = vadd.f32 %v2773, %v2933
        %v2935 = vpop.f32.mrb[0].mxu0
        %v2936 = vpop.f32.mrb[0].mxu0
        %v2937 = vadd.f32 %v2776, %v2936
        %v2938 = vpop.f32.mrb[0].mxu0
        %2939 = vmatprep.mubr.bf16.mxu0 0
        %2940 = vmatmul.mubr.bf16.gmra.mrb[0].mxu0 %v1317
        %v2941 = vpop.f32.mrb[0].mxu0
        %v2942 = vadd.f32 %v2781, %v2941
        %v2943 = vpop.f32.mrb[0].mxu0
        %v2944 = vpop.f32.mrb[0].mxu0
        %v2945 = vadd.f32 %v2784, %v2944
        %v2946 = vpop.f32.mrb[0].mxu0
        %2947 = vmatprep.mubr.bf16.mxu0 0
        %2948 = vmatmul.mubr.bf16.gmra.mrb[0].mxu0 %v1570
        %v2949 = vpop.f32.mrb[0].mxu0
        %v2950 = vadd.f32 %v2789, %v2949
        %v2951 = vpop.f32.mrb[0].mxu0
        %v2952 = vpop.f32.mrb[0].mxu0
        %v2953 = vadd.f32 %v2792, %v2952
        %v2954 = vpop.f32.mrb[0].mxu0
        %2955 = vdwg.mxu0
        %v2957 = vlaneseq
        %v2958 = vshrl.u32 %v2957, 7
        %v2959 = vsub.s32 0, %v2958
        %v2960 = vrot.slane %v483, %v2959
        %v2962 = vmul.f32 %v2830, %v2960
        %v2963 = vmul.f32 %v2833, %v2960
        %v2964 = vmul.f32 %v2838, %v2960
        %v2965 = vmul.f32 %v2841, %v2960
        %v2966 = vmul.f32 %v2846, %v2960
        %v2967 = vmul.f32 %v2849, %v2960
        %v2968 = vmul.f32 %v2854, %v2960
        %v2969 = vmul.f32 %v2857, %v2960
        %v2970 = vmul.f32 %v2862, %v2960
        %v2971 = vmul.f32 %v2865, %v2960
        %v2972 = vmul.f32 %v2870, %v2960
        %v2973 = vmul.f32 %v2873, %v2960
        %v2974 = vmul.f32 %v2878, %v2960
        %v2975 = vmul.f32 %v2881, %v2960
        %v2976 = vmul.f32 %v2886, %v2960
        %v2977 = vmul.f32 %v2889, %v2960
        %v2978 = vmul.f32 %v2894, %v2960
        %v2979 = vmul.f32 %v2897, %v2960
        %v2980 = vmul.f32 %v2902, %v2960
        %v2981 = vmul.f32 %v2905, %v2960
        %v2982 = vmul.f32 %v2910, %v2960
        %v2983 = vmul.f32 %v2913, %v2960
        %v2984 = vmul.f32 %v2918, %v2960
        %v2985 = vmul.f32 %v2921, %v2960
        %v2986 = vmul.f32 %v2926, %v2960
        %v2987 = vmul.f32 %v2929, %v2960
        %v2988 = vmul.f32 %v2934, %v2960
        %v2989 = vmul.f32 %v2937, %v2960
        %v2990 = vmul.f32 %v2942, %v2960
        %v2991 = vmul.f32 %v2945, %v2960
        %v2992 = vmul.f32 %v2950, %v2960
        %v2993 = vmul.f32 %v2953, %v2960
        %v2995 = vlaneseq
        %v2996 = vshrl.u32 %v2995, 7
        %v2997 = vsub.s32 0, %v2996
        %v2998 = vrot.slane %v484, %v2997
        %v3000 = vadd.f32 %v2962, %v2998
        %v3001 = vadd.f32 %v2963, %v2998
        %v3002 = vadd.f32 %v2964, %v2998
        %v3003 = vadd.f32 %v2965, %v2998
        %v3004 = vadd.f32 %v2966, %v2998
        %v3005 = vadd.f32 %v2967, %v2998
        %v3006 = vadd.f32 %v2968, %v2998
        %v3007 = vadd.f32 %v2969, %v2998
        %v3008 = vadd.f32 %v2970, %v2998
        %v3009 = vadd.f32 %v2971, %v2998
        %v3010 = vadd.f32 %v2972, %v2998
        %v3011 = vadd.f32 %v2973, %v2998
        %v3012 = vadd.f32 %v2974, %v2998
        %v3013 = vadd.f32 %v2975, %v2998
        %v3014 = vadd.f32 %v2976, %v2998
        %v3015 = vadd.f32 %v2977, %v2998
        %v3016 = vadd.f32 %v2978, %v2998
        %v3017 = vadd.f32 %v2979, %v2998
        %v3018 = vadd.f32 %v2980, %v2998
        %v3019 = vadd.f32 %v2981, %v2998
        %v3020 = vadd.f32 %v2982, %v2998
        %v3021 = vadd.f32 %v2983, %v2998
        %v3022 = vadd.f32 %v2984, %v2998
        %v3023 = vadd.f32 %v2985, %v2998
        %v3024 = vadd.f32 %v2986, %v2998
        %v3025 = vadd.f32 %v2987, %v2998
        %v3026 = vadd.f32 %v2988, %v2998
        %v3027 = vadd.f32 %v2989, %v2998
        %v3028 = vadd.f32 %v2990, %v2998
        %v3029 = vadd.f32 %v2991, %v2998
        %v3030 = vadd.f32 %v2992, %v2998
        %v3031 = vadd.f32 %v2993, %v2998
        %v3032 = vmax.f32 %v3000, 0.0
        %v3033 = vmax.f32 %v3001, 0.0
        %v3034 = vmax.f32 %v3002, 0.0
        %v3035 = vmax.f32 %v3003, 0.0
        %v3036 = vmax.f32 %v3004, 0.0
        %v3037 = vmax.f32 %v3005, 0.0
        %v3038 = vmax.f32 %v3006, 0.0
        %v3039 = vmax.f32 %v3007, 0.0
        %v3040 = vmax.f32 %v3008, 0.0
        %v3041 = vmax.f32 %v3009, 0.0
        %v3042 = vmax.f32 %v3010, 0.0
        %v3043 = vmax.f32 %v3011, 0.0
        %v3044 = vmax.f32 %v3012, 0.0
        %v3045 = vmax.f32 %v3013, 0.0
        %v3046 = vmax.f32 %v3014, 0.0
        %v3047 = vmax.f32 %v3015, 0.0
        %v3048 = vmax.f32 %v3016, 0.0
        %v3049 = vmax.f32 %v3017, 0.0
        %v3050 = vmax.f32 %v3018, 0.0
        %v3051 = vmax.f32 %v3019, 0.0
        %v3052 = vmax.f32 %v3020, 0.0
        %v3053 = vmax.f32 %v3021, 0.0
        %v3054 = vmax.f32 %v3022, 0.0
        %v3055 = vmax.f32 %v3023, 0.0
        %v3056 = vmax.f32 %v3024, 0.0
        %v3057 = vmax.f32 %v3025, 0.0
        %v3058 = vmax.f32 %v3026, 0.0
        %v3059 = vmax.f32 %v3027, 0.0
        %v3060 = vmax.f32 %v3028, 0.0
        %v3061 = vmax.f32 %v3029, 0.0
        %v3062 = vmax.f32 %v3030, 0.0
        %v3063 = vmax.f32 %v3031, 0.0
        %v3064 = vld [vmem:[%s5] sm:$0x1]
        %v3065 = vld [vmem:[%s6] sm:$0x1]
        %v3066 = vsel %vm493, 0.0, %v3032
        %v3067 = vsel %vm494, 0.0, %v3033
        %v3068 = vsel %vm495, 0.0, %v3034
        %v3069 = vsel %vm496, 0.0, %v3035
        %v3070 = vsel %vm497, 0.0, %v3036
        %v3071 = vsel %vm498, 0.0, %v3037
        %v3072 = vsel %vm499, 0.0, %v3038
        %v3073 = vsel %vm500, 0.0, %v3039
        %v3074 = vsel %vm493, 0.0, %v3040
        %v3075 = vsel %vm494, 0.0, %v3041
        %v3076 = vsel %vm495, 0.0, %v3042
        %v3077 = vsel %vm496, 0.0, %v3043
        %v3078 = vsel %vm497, 0.0, %v3044
        %v3079 = vsel %vm498, 0.0, %v3045
        %v3080 = vsel %vm499, 0.0, %v3046
        %v3081 = vsel %vm500, 0.0, %v3047
        %v3082 = vsel %vm493, 0.0, %v3048
        %v3083 = vsel %vm494, 0.0, %v3049
        %v3084 = vsel %vm495, 0.0, %v3050
        %v3085 = vsel %vm496, 0.0, %v3051
        %v3086 = vsel %vm497, 0.0, %v3052
        %v3087 = vsel %vm498, 0.0, %v3053
        %v3088 = vsel %vm499, 0.0, %v3054
        %v3089 = vsel %vm500, 0.0, %v3055
        %v3090 = vsel %vm493, 0.0, %v3056
        %v3091 = vsel %vm494, 0.0, %v3057
        %v3092 = vsel %vm495, 0.0, %v3058
        %v3093 = vsel %vm496, 0.0, %v3059
        %v3094 = vsel %vm497, 0.0, %v3060
        %v3095 = vsel %vm498, 0.0, %v3061
        %v3096 = vsel %vm499, 0.0, %v3062
        %v3097 = vsel %vm500, 0.0, %v3063
        %v3098 = vpack.c.bf16 %v3067, %v3066
        %v3099 = vpack.c.bf16 %v3069, %v3068
        %v3100 = vpack.c.bf16 %v3071, %v3070
        %v3101 = vpack.c.bf16 %v3073, %v3072
        %v3102 = vpack.c.bf16 %v3075, %v3074
        %v3103 = vpack.c.bf16 %v3077, %v3076
        %v3104 = vpack.c.bf16 %v3079, %v3078
        %v3105 = vpack.c.bf16 %v3081, %v3080
        %v3106 = vpack.c.bf16 %v3083, %v3082
        %v3107 = vpack.c.bf16 %v3085, %v3084
        %v3108 = vpack.c.bf16 %v3087, %v3086
        %v3109 = vpack.c.bf16 %v3089, %v3088
        %v3110 = vpack.c.bf16 %v3091, %v3090
        %v3111 = vpack.c.bf16 %v3093, %v3092
        %v3112 = vpack.c.bf16 %v3095, %v3094
        %v3113 = vpack.c.bf16 %v3097, %v3096
        %v3115 = vshrl.u32 %v3098, 16
        %v3117 = vrot.slane %v3115, 3
        %v3118 = vshll.u32 %v3098, 16
        %v3120 = vrot.slane %v3118, 4
        %v3121 = vor.u32 %v3117, %v3120
        %v3123 = vshrl.u32 %v3099, 16
        %v3125 = vrot.slane %v3123, 3
        %v3126 = vshll.u32 %v3099, 16
        %v3128 = vrot.slane %v3126, 4
        %v3129 = vor.u32 %v3125, %v3128
        %v3130 = vsel %vm549, %v3121, %v3129
        %v3132 = vshrl.u32 %v3100, 16
        %v3134 = vrot.slane %v3132, 3
        %v3135 = vshll.u32 %v3100, 16
        %v3137 = vrot.slane %v3135, 4
        %v3138 = vor.u32 %v3134, %v3137
        %v3139 = vsel %vm549, %v3129, %v3138
        %v3141 = vshrl.u32 %v3101, 16
        %v3143 = vrot.slane %v3141, 3
        %v3144 = vshll.u32 %v3101, 16
        %v3146 = vrot.slane %v3144, 4
        %v3147 = vor.u32 %v3143, %v3146
        %v3148 = vsel %vm549, %v3138, %v3147
        %v3150 = vshrl.u32 %v3102, 16
        %v3152 = vrot.slane %v3150, 3
        %v3153 = vshll.u32 %v3102, 16
        %v3155 = vrot.slane %v3153, 4
        %v3156 = vor.u32 %v3152, %v3155
        %v3158 = vshrl.u32 %v3103, 16
        %v3160 = vrot.slane %v3158, 3
        %v3161 = vshll.u32 %v3103, 16
        %v3163 = vrot.slane %v3161, 4
        %v3164 = vor.u32 %v3160, %v3163
        %v3165 = vsel %vm549, %v3156, %v3164
        %v3167 = vshrl.u32 %v3104, 16
        %v3169 = vrot.slane %v3167, 3
        %v3170 = vshll.u32 %v3104, 16
        %v3172 = vrot.slane %v3170, 4
        %v3173 = vor.u32 %v3169, %v3172
        %v3174 = vsel %vm549, %v3164, %v3173
        %v3176 = vshrl.u32 %v3105, 16
        %v3178 = vrot.slane %v3176, 3
        %v3179 = vshll.u32 %v3105, 16
        %v3181 = vrot.slane %v3179, 4
        %v3182 = vor.u32 %v3178, %v3181
        %v3183 = vsel %vm549, %v3173, %v3182
        %v3185 = vshrl.u32 %v3106, 16
        %v3187 = vrot.slane %v3185, 3
        %v3188 = vshll.u32 %v3106, 16
        %v3190 = vrot.slane %v3188, 4
        %v3191 = vor.u32 %v3187, %v3190
        %v3193 = vshrl.u32 %v3107, 16
        %v3195 = vrot.slane %v3193, 3
        %v3196 = vshll.u32 %v3107, 16
        %v3198 = vrot.slane %v3196, 4
        %v3199 = vor.u32 %v3195, %v3198
        %v3200 = vsel %vm549, %v3191, %v3199
        %v3202 = vshrl.u32 %v3108, 16
        %v3204 = vrot.slane %v3202, 3
        %v3205 = vshll.u32 %v3108, 16
        %v3207 = vrot.slane %v3205, 4
        %v3208 = vor.u32 %v3204, %v3207
        %v3209 = vsel %vm549, %v3199, %v3208
        %v3211 = vshrl.u32 %v3109, 16
        %v3213 = vrot.slane %v3211, 3
        %v3214 = vshll.u32 %v3109, 16
        %v3216 = vrot.slane %v3214, 4
        %v3217 = vor.u32 %v3213, %v3216
        %v3218 = vsel %vm549, %v3208, %v3217
        %v3220 = vshrl.u32 %v3110, 16
        %v3222 = vrot.slane %v3220, 3
        %v3223 = vshll.u32 %v3110, 16
        %v3225 = vrot.slane %v3223, 4
        %v3226 = vor.u32 %v3222, %v3225
        %v3228 = vshrl.u32 %v3111, 16
        %v3230 = vrot.slane %v3228, 3
        %v3231 = vshll.u32 %v3111, 16
        %v3233 = vrot.slane %v3231, 4
        %v3234 = vor.u32 %v3230, %v3233
        %v3235 = vsel %vm549, %v3226, %v3234
        %v3237 = vshrl.u32 %v3112, 16
        %v3239 = vrot.slane %v3237, 3
        %v3240 = vshll.u32 %v3112, 16
        %v3242 = vrot.slane %v3240, 4
        %v3243 = vor.u32 %v3239, %v3242
        %v3244 = vsel %vm549, %v3234, %v3243
        %v3246 = vshrl.u32 %v3113, 16
        %v3248 = vrot.slane %v3246, 3
        %v3249 = vshll.u32 %v3113, 16
        %v3251 = vrot.slane %v3249, 4
        %v3252 = vor.u32 %v3248, %v3251
        %v3253 = vsel %vm549, %v3243, %v3252
        %v3274 = vsel %vm711, 0, %v3121
        %v3275 = vsel %vm711, 0, %v3156
        %v3276 = vsel %vm711, 0, %v3191
        %v3277 = vsel %vm711, 0, %v3226
        %v3278 = vsel %vm711, %v3147, 0
        %v3279 = vsel %vm711, %v3182, 0
        %v3280 = vsel %vm711, %v3217, 0
        %v3281 = vsel %vm711, %v3252, 0
        %v3282 = vpack.c.bf16 %v3033, %v3032
        %v3283 = vpack.c.bf16 %v3035, %v3034
        %v3284 = vpack.c.bf16 %v3037, %v3036
        %v3285 = vpack.c.bf16 %v3039, %v3038
        %v3286 = vpack.c.bf16 %v3041, %v3040
        %v3287 = vpack.c.bf16 %v3043, %v3042
        %v3288 = vpack.c.bf16 %v3045, %v3044
        %v3289 = vpack.c.bf16 %v3047, %v3046
        %v3290 = vpack.c.bf16 %v3049, %v3048
        %v3291 = vpack.c.bf16 %v3051, %v3050
        %v3292 = vpack.c.bf16 %v3053, %v3052
        %v3293 = vpack.c.bf16 %v3055, %v3054
        %v3294 = vpack.c.bf16 %v3057, %v3056
        %v3295 = vpack.c.bf16 %v3059, %v3058
        %v3296 = vpack.c.bf16 %v3061, %v3060
        %v3297 = vpack.c.bf16 %v3063, %v3062
        %v3299 = vshrl.u32 %v3282, 16
        %v3301 = vrot.slane %v3299, 3
        %v3302 = vshll.u32 %v3282, 16
        %v3304 = vrot.slane %v3302, 4
        %v3305 = vor.u32 %v3301, %v3304
        %v3307 = vshrl.u32 %v3283, 16
        %v3309 = vrot.slane %v3307, 3
        %v3310 = vshll.u32 %v3283, 16
        %v3312 = vrot.slane %v3310, 4
        %v3313 = vor.u32 %v3309, %v3312
        %v3314 = vsel %vm549, %v3305, %v3313
        %v3316 = vshrl.u32 %v3284, 16
        %v3318 = vrot.slane %v3316, 3
        %v3319 = vshll.u32 %v3284, 16
        %v3321 = vrot.slane %v3319, 4
        %v3322 = vor.u32 %v3318, %v3321
        %v3323 = vsel %vm549, %v3313, %v3322
        %v3325 = vshrl.u32 %v3285, 16
        %v3327 = vrot.slane %v3325, 3
        %v3328 = vshll.u32 %v3285, 16
        %v3330 = vrot.slane %v3328, 4
        %v3331 = vor.u32 %v3327, %v3330
        %v3332 = vsel %vm549, %v3322, %v3331
        %v3334 = vshrl.u32 %v3286, 16
        %v3336 = vrot.slane %v3334, 3
        %v3337 = vshll.u32 %v3286, 16
        %v3339 = vrot.slane %v3337, 4
        %v3340 = vor.u32 %v3336, %v3339
        %v3342 = vshrl.u32 %v3287, 16
        %v3344 = vrot.slane %v3342, 3
        %v3345 = vshll.u32 %v3287, 16
        %v3347 = vrot.slane %v3345, 4
        %v3348 = vor.u32 %v3344, %v3347
        %v3349 = vsel %vm549, %v3340, %v3348
        %v3351 = vshrl.u32 %v3288, 16
        %v3353 = vrot.slane %v3351, 3
        %v3354 = vshll.u32 %v3288, 16
        %v3356 = vrot.slane %v3354, 4
        %v3357 = vor.u32 %v3353, %v3356
        %v3358 = vsel %vm549, %v3348, %v3357
        %v3360 = vshrl.u32 %v3289, 16
        %v3362 = vrot.slane %v3360, 3
        %v3363 = vshll.u32 %v3289, 16
        %v3365 = vrot.slane %v3363, 4
        %v3366 = vor.u32 %v3362, %v3365
        %v3367 = vsel %vm549, %v3357, %v3366
        %v3369 = vshrl.u32 %v3290, 16
        %v3371 = vrot.slane %v3369, 3
        %v3372 = vshll.u32 %v3290, 16
        %v3374 = vrot.slane %v3372, 4
        %v3375 = vor.u32 %v3371, %v3374
        %v3377 = vshrl.u32 %v3291, 16
        %v3379 = vrot.slane %v3377, 3
        %v3380 = vshll.u32 %v3291, 16
        %v3382 = vrot.slane %v3380, 4
        %v3383 = vor.u32 %v3379, %v3382
        %v3384 = vsel %vm549, %v3375, %v3383
        %v3386 = vshrl.u32 %v3292, 16
        %v3388 = vrot.slane %v3386, 3
        %v3389 = vshll.u32 %v3292, 16
        %v3391 = vrot.slane %v3389, 4
        %v3392 = vor.u32 %v3388, %v3391
        %v3393 = vsel %vm549, %v3383, %v3392
        %v3395 = vshrl.u32 %v3293, 16
        %v3397 = vrot.slane %v3395, 3
        %v3398 = vshll.u32 %v3293, 16
        %v3400 = vrot.slane %v3398, 4
        %v3401 = vor.u32 %v3397, %v3400
        %v3402 = vsel %vm549, %v3392, %v3401
        %v3404 = vshrl.u32 %v3294, 16
        %v3406 = vrot.slane %v3404, 3
        %v3407 = vshll.u32 %v3294, 16
        %v3409 = vrot.slane %v3407, 4
        %v3410 = vor.u32 %v3406, %v3409
        %v3412 = vshrl.u32 %v3295, 16
        %v3414 = vrot.slane %v3412, 3
        %v3415 = vshll.u32 %v3295, 16
        %v3417 = vrot.slane %v3415, 4
        %v3418 = vor.u32 %v3414, %v3417
        %v3419 = vsel %vm549, %v3410, %v3418
        %v3421 = vshrl.u32 %v3296, 16
        %v3423 = vrot.slane %v3421, 3
        %v3424 = vshll.u32 %v3296, 16
        %v3426 = vrot.slane %v3424, 4
        %v3427 = vor.u32 %v3423, %v3426
        %v3428 = vsel %vm549, %v3418, %v3427
        %v3430 = vshrl.u32 %v3297, 16
        %v3432 = vrot.slane %v3430, 3
        %v3433 = vshll.u32 %v3297, 16
        %v3435 = vrot.slane %v3433, 4
        %v3436 = vor.u32 %v3432, %v3435
        %v3437 = vsel %vm549, %v3427, %v3436
        %v3446 = vsel %vm711, 0, %v3305
        %v3447 = vsel %vm711, 0, %v3340
        %v3448 = vsel %vm711, 0, %v3375
        %v3449 = vsel %vm711, 0, %v3410
        %v3450 = vsel %vm711, %v3331, 0
        %v3451 = vsel %vm711, %v3366, 0
        %v3452 = vsel %vm711, %v3401, 0
        %v3453 = vsel %vm711, %v3436, 0
        %v3454 = vsel %vm900, 0.0, %v3032
        %v3455 = vsel %vm901, 0.0, %v3033
        %v3456 = vsel %vm902, 0.0, %v3034
        %v3457 = vsel %vm903, 0.0, %v3035
        %v3458 = vsel %vm904, 0.0, %v3036
        %v3459 = vsel %vm905, 0.0, %v3037
        %v3460 = vsel %vm906, 0.0, %v3038
        %v3461 = vsel %vm907, 0.0, %v3039
        %v3462 = vsel %vm900, 0.0, %v3040
        %v3463 = vsel %vm901, 0.0, %v3041
        %v3464 = vsel %vm902, 0.0, %v3042
        %v3465 = vsel %vm903, 0.0, %v3043
        %v3466 = vsel %vm904, 0.0, %v3044
        %v3467 = vsel %vm905, 0.0, %v3045
        %v3468 = vsel %vm906, 0.0, %v3046
        %v3469 = vsel %vm907, 0.0, %v3047
        %v3470 = vsel %vm900, 0.0, %v3048
        %v3471 = vsel %vm901, 0.0, %v3049
        %v3472 = vsel %vm902, 0.0, %v3050
        %v3473 = vsel %vm903, 0.0, %v3051
        %v3474 = vsel %vm904, 0.0, %v3052
        %v3475 = vsel %vm905, 0.0, %v3053
        %v3476 = vsel %vm906, 0.0, %v3054
        %v3477 = vsel %vm907, 0.0, %v3055
        %v3478 = vsel %vm900, 0.0, %v3056
        %v3479 = vsel %vm901, 0.0, %v3057
        %v3480 = vsel %vm902, 0.0, %v3058
        %v3481 = vsel %vm903, 0.0, %v3059
        %v3482 = vsel %vm904, 0.0, %v3060
        %v3483 = vsel %vm905, 0.0, %v3061
        %v3484 = vsel %vm906, 0.0, %v3062
        %v3485 = vsel %vm907, 0.0, %v3063
        %v3486 = vpack.c.bf16 %v3455, %v3454
        %v3487 = vpack.c.bf16 %v3457, %v3456
        %v3488 = vpack.c.bf16 %v3459, %v3458
        %v3489 = vpack.c.bf16 %v3461, %v3460
        %v3490 = vpack.c.bf16 %v3463, %v3462
        %v3491 = vpack.c.bf16 %v3465, %v3464
        %v3492 = vpack.c.bf16 %v3467, %v3466
        %v3493 = vpack.c.bf16 %v3469, %v3468
        %v3494 = vpack.c.bf16 %v3471, %v3470
        %v3495 = vpack.c.bf16 %v3473, %v3472
        %v3496 = vpack.c.bf16 %v3475, %v3474
        %v3497 = vpack.c.bf16 %v3477, %v3476
        %v3498 = vpack.c.bf16 %v3479, %v3478
        %v3499 = vpack.c.bf16 %v3481, %v3480
        %v3500 = vpack.c.bf16 %v3483, %v3482
        %v3501 = vpack.c.bf16 %v3485, %v3484
        %v3503 = vshrl.u32 %v3486, 16
        %v3505 = vrot.slane %v3503, 3
        %v3506 = vshll.u32 %v3486, 16
        %v3508 = vrot.slane %v3506, 4
        %v3509 = vor.u32 %v3505, %v3508
        %v3511 = vshrl.u32 %v3487, 16
        %v3513 = vrot.slane %v3511, 3
        %v3514 = vshll.u32 %v3487, 16
        %v3516 = vrot.slane %v3514, 4
        %v3517 = vor.u32 %v3513, %v3516
        %v3518 = vsel %vm549, %v3509, %v3517
        %v3520 = vshrl.u32 %v3488, 16
        %v3522 = vrot.slane %v3520, 3
        %v3523 = vshll.u32 %v3488, 16
        %v3525 = vrot.slane %v3523, 4
        %v3526 = vor.u32 %v3522, %v3525
        %v3527 = vsel %vm549, %v3517, %v3526
        %v3529 = vshrl.u32 %v3489, 16
        %v3531 = vrot.slane %v3529, 3
        %v3532 = vshll.u32 %v3489, 16
        %v3534 = vrot.slane %v3532, 4
        %v3535 = vor.u32 %v3531, %v3534
        %v3536 = vsel %vm549, %v3526, %v3535
        %v3538 = vshrl.u32 %v3490, 16
        %v3540 = vrot.slane %v3538, 3
        %v3541 = vshll.u32 %v3490, 16
        %v3543 = vrot.slane %v3541, 4
        %v3544 = vor.u32 %v3540, %v3543
        %v3546 = vshrl.u32 %v3491, 16
        %v3548 = vrot.slane %v3546, 3
        %v3549 = vshll.u32 %v3491, 16
        %v3551 = vrot.slane %v3549, 4
        %v3552 = vor.u32 %v3548, %v3551
        %v3553 = vsel %vm549, %v3544, %v3552
        %v3555 = vshrl.u32 %v3492, 16
        %v3557 = vrot.slane %v3555, 3
        %v3558 = vshll.u32 %v3492, 16
        %v3560 = vrot.slane %v3558, 4
        %v3561 = vor.u32 %v3557, %v3560
        %v3562 = vsel %vm549, %v3552, %v3561
        %v3564 = vshrl.u32 %v3493, 16
        %v3566 = vrot.slane %v3564, 3
        %v3567 = vshll.u32 %v3493, 16
        %v3569 = vrot.slane %v3567, 4
        %v3570 = vor.u32 %v3566, %v3569
        %v3571 = vsel %vm549, %v3561, %v3570
        %v3573 = vshrl.u32 %v3494, 16
        %v3575 = vrot.slane %v3573, 3
        %v3576 = vshll.u32 %v3494, 16
        %v3578 = vrot.slane %v3576, 4
        %v3579 = vor.u32 %v3575, %v3578
        %v3581 = vshrl.u32 %v3495, 16
        %v3583 = vrot.slane %v3581, 3
        %v3584 = vshll.u32 %v3495, 16
        %v3586 = vrot.slane %v3584, 4
        %v3587 = vor.u32 %v3583, %v3586
        %v3588 = vsel %vm549, %v3579, %v3587
        %v3590 = vshrl.u32 %v3496, 16
        %v3592 = vrot.slane %v3590, 3
        %v3593 = vshll.u32 %v3496, 16
        %v3595 = vrot.slane %v3593, 4
        %v3596 = vor.u32 %v3592, %v3595
        %v3597 = vsel %vm549, %v3587, %v3596
        %v3599 = vshrl.u32 %v3497, 16
        %v3601 = vrot.slane %v3599, 3
        %v3602 = vshll.u32 %v3497, 16
        %v3604 = vrot.slane %v3602, 4
        %v3605 = vor.u32 %v3601, %v3604
        %v3606 = vsel %vm549, %v3596, %v3605
        %v3608 = vshrl.u32 %v3498, 16
        %v3610 = vrot.slane %v3608, 3
        %v3611 = vshll.u32 %v3498, 16
        %v3613 = vrot.slane %v3611, 4
        %v3614 = vor.u32 %v3610, %v3613
        %v3616 = vshrl.u32 %v3499, 16
        %v3618 = vrot.slane %v3616, 3
        %v3619 = vshll.u32 %v3499, 16
        %v3621 = vrot.slane %v3619, 4
        %v3622 = vor.u32 %v3618, %v3621
        %v3623 = vsel %vm549, %v3614, %v3622
        %v3625 = vshrl.u32 %v3500, 16
        %v3627 = vrot.slane %v3625, 3
        %v3628 = vshll.u32 %v3500, 16
        %v3630 = vrot.slane %v3628, 4
        %v3631 = vor.u32 %v3627, %v3630
        %v3632 = vsel %vm549, %v3622, %v3631
        %v3634 = vshrl.u32 %v3501, 16
        %v3636 = vrot.slane %v3634, 3
        %v3637 = vshll.u32 %v3501, 16
        %v3639 = vrot.slane %v3637, 4
        %v3640 = vor.u32 %v3636, %v3639
        %v3641 = vsel %vm549, %v3631, %v3640
        %v3650 = vsel %vm711, 0, %v3509
        %v3651 = vsel %vm711, 0, %v3544
        %v3652 = vsel %vm711, 0, %v3579
        %v3653 = vsel %vm711, 0, %v3614
        %v3654 = vsel %vm711, %v3535, 0
        %v3655 = vsel %vm711, %v3570, 0
        %v3656 = vsel %vm711, %v3605, 0
        %v3657 = vsel %vm711, %v3640, 0
        %v3659 = vshrl.u32 %v3446, 16
        %v3661 = vshll.u32 %v3446, 16
        %v3663 = vrot.slane %v3661, 1
        %v3664 = vor.u32 %v3659, %v3663
        %v3666 = vshll.u32 %v3314, 16
        %v3668 = vrot.slane %v3666, 1
        %v3669 = vsel %vm1112, %v3664, %v3668
        %v3670 = vshrl.u32 %v3314, 16
        %v3672 = vor.u32 %v3670, %v3668
        %v3674 = vshll.u32 %v3323, 16
        %v3676 = vrot.slane %v3674, 1
        %v3677 = vsel %vm1112, %v3672, %v3676
        %v3678 = vshrl.u32 %v3323, 16
        %v3680 = vor.u32 %v3678, %v3676
        %v3682 = vshll.u32 %v3332, 16
        %v3684 = vrot.slane %v3682, 1
        %v3685 = vsel %vm1112, %v3680, %v3684
        %v3686 = vshrl.u32 %v3332, 16
        %v3688 = vor.u32 %v3686, %v3684
        %v3690 = vshll.u32 %v3450, 16
        %v3692 = vrot.slane %v3690, 1
        %v3693 = vsel %vm1112, %v3688, %v3692
        %v3695 = vshrl.u32 %v3447, 16
        %v3697 = vshll.u32 %v3447, 16
        %v3699 = vrot.slane %v3697, 1
        %v3700 = vor.u32 %v3695, %v3699
        %v3702 = vshll.u32 %v3349, 16
        %v3704 = vrot.slane %v3702, 1
        %v3705 = vsel %vm1112, %v3700, %v3704
        %v3706 = vshrl.u32 %v3349, 16
        %v3708 = vor.u32 %v3706, %v3704
        %v3710 = vshll.u32 %v3358, 16
        %v3712 = vrot.slane %v3710, 1
        %v3713 = vsel %vm1112, %v3708, %v3712
        %v3714 = vshrl.u32 %v3358, 16
        %v3716 = vor.u32 %v3714, %v3712
        %v3718 = vshll.u32 %v3367, 16
        %v3720 = vrot.slane %v3718, 1
        %v3721 = vsel %vm1112, %v3716, %v3720
        %v3722 = vshrl.u32 %v3367, 16
        %v3724 = vor.u32 %v3722, %v3720
        %v3726 = vshll.u32 %v3451, 16
        %v3728 = vrot.slane %v3726, 1
        %v3729 = vsel %vm1112, %v3724, %v3728
        %v3731 = vshrl.u32 %v3448, 16
        %v3733 = vshll.u32 %v3448, 16
        %v3735 = vrot.slane %v3733, 1
        %v3736 = vor.u32 %v3731, %v3735
        %v3738 = vshll.u32 %v3384, 16
        %v3740 = vrot.slane %v3738, 1
        %v3741 = vsel %vm1112, %v3736, %v3740
        %v3742 = vshrl.u32 %v3384, 16
        %v3744 = vor.u32 %v3742, %v3740
        %v3746 = vshll.u32 %v3393, 16
        %v3748 = vrot.slane %v3746, 1
        %v3749 = vsel %vm1112, %v3744, %v3748
        %v3750 = vshrl.u32 %v3393, 16
        %v3752 = vor.u32 %v3750, %v3748
        %v3754 = vshll.u32 %v3402, 16
        %v3756 = vrot.slane %v3754, 1
        %v3757 = vsel %vm1112, %v3752, %v3756
        %v3758 = vshrl.u32 %v3402, 16
        %v3760 = vor.u32 %v3758, %v3756
        %v3762 = vshll.u32 %v3452, 16
        %v3764 = vrot.slane %v3762, 1
        %v3765 = vsel %vm1112, %v3760, %v3764
        %v3767 = vshrl.u32 %v3449, 16
        %v3769 = vshll.u32 %v3449, 16
        %v3771 = vrot.slane %v3769, 1
        %v3772 = vor.u32 %v3767, %v3771
        %v3774 = vshll.u32 %v3419, 16
        %v3776 = vrot.slane %v3774, 1
        %v3777 = vsel %vm1112, %v3772, %v3776
        %v3778 = vshrl.u32 %v3419, 16
        %v3780 = vor.u32 %v3778, %v3776
        %v3782 = vshll.u32 %v3428, 16
        %v3784 = vrot.slane %v3782, 1
        %v3785 = vsel %vm1112, %v3780, %v3784
        %v3786 = vshrl.u32 %v3428, 16
        %v3788 = vor.u32 %v3786, %v3784
        %v3790 = vshll.u32 %v3437, 16
        %v3792 = vrot.slane %v3790, 1
        %v3793 = vsel %vm1112, %v3788, %v3792
        %v3794 = vshrl.u32 %v3437, 16
        %v3796 = vor.u32 %v3794, %v3792
        %v3798 = vshll.u32 %v3453, 16
        %v3800 = vrot.slane %v3798, 1
        %v3801 = vsel %vm1112, %v3796, %v3800
        %v3826 = vrot.slane %v3650, 1
        %v3827 = vrot.slane %v3518, 1
        %v3828 = vsel %vm1281, %v3826, %v3827
        %v3829 = vrot.slane %v3527, 1
        %v3830 = vsel %vm1281, %v3827, %v3829
        %v3831 = vrot.slane %v3536, 1
        %v3832 = vsel %vm1281, %v3829, %v3831
        %v3833 = vrot.slane %v3654, 1
        %v3834 = vsel %vm1281, %v3831, %v3833
        %v3835 = vrot.slane %v3651, 1
        %v3836 = vrot.slane %v3553, 1
        %v3837 = vsel %vm1281, %v3835, %v3836
        %v3838 = vrot.slane %v3562, 1
        %v3839 = vsel %vm1281, %v3836, %v3838
        %v3840 = vrot.slane %v3571, 1
        %v3841 = vsel %vm1281, %v3838, %v3840
        %v3842 = vrot.slane %v3655, 1
        %v3843 = vsel %vm1281, %v3840, %v3842
        %v3844 = vrot.slane %v3652, 1
        %v3845 = vrot.slane %v3588, 1
        %v3846 = vsel %vm1281, %v3844, %v3845
        %v3847 = vrot.slane %v3597, 1
        %v3848 = vsel %vm1281, %v3845, %v3847
        %v3849 = vrot.slane %v3606, 1
        %v3850 = vsel %vm1281, %v3847, %v3849
        %v3851 = vrot.slane %v3656, 1
        %v3852 = vsel %vm1281, %v3849, %v3851
        %v3853 = vrot.slane %v3653, 1
        %v3854 = vrot.slane %v3623, 1
        %v3855 = vsel %vm1281, %v3853, %v3854
        %v3856 = vrot.slane %v3632, 1
        %v3857 = vsel %vm1281, %v3854, %v3856
        %v3858 = vrot.slane %v3641, 1
        %v3859 = vsel %vm1281, %v3856, %v3858
        %v3860 = vrot.slane %v3657, 1
        %v3861 = vsel %vm1281, %v3858, %v3860
        %v3886 = vrot.slane %v3274, 4
        %v3887 = vrot.slane %v3130, 4
        %v3888 = vsel %vm1342, %v3886, %v3887
        %v3889 = vrot.slane %v3139, 4
        %v3890 = vsel %vm1342, %v3887, %v3889
        %v3891 = vrot.slane %v3148, 4
        %v3892 = vsel %vm1342, %v3889, %v3891
        %v3893 = vrot.slane %v3278, 4
        %v3894 = vsel %vm1342, %v3891, %v3893
        %v3895 = vrot.slane %v3275, 4
        %v3896 = vrot.slane %v3165, 4
        %v3897 = vsel %vm1342, %v3895, %v3896
        %v3898 = vrot.slane %v3174, 4
        %v3899 = vsel %vm1342, %v3896, %v3898
        %v3900 = vrot.slane %v3183, 4
        %v3901 = vsel %vm1342, %v3898, %v3900
        %v3902 = vrot.slane %v3279, 4
        %v3903 = vsel %vm1342, %v3900, %v3902
        %v3904 = vrot.slane %v3276, 4
        %v3905 = vrot.slane %v3200, 4
        %v3906 = vsel %vm1342, %v3904, %v3905
        %v3907 = vrot.slane %v3209, 4
        %v3908 = vsel %vm1342, %v3905, %v3907
        %v3909 = vrot.slane %v3218, 4
        %v3910 = vsel %vm1342, %v3907, %v3909
        %v3911 = vrot.slane %v3280, 4
        %v3912 = vsel %vm1342, %v3909, %v3911
        %v3913 = vrot.slane %v3277, 4
        %v3914 = vrot.slane %v3235, 4
        %v3915 = vsel %vm1342, %v3913, %v3914
        %v3916 = vrot.slane %v3244, 4
        %v3917 = vsel %vm1342, %v3914, %v3916
        %v3918 = vrot.slane %v3253, 4
        %v3919 = vsel %vm1342, %v3916, %v3918
        %v3920 = vrot.slane %v3281, 4
        %v3921 = vsel %vm1342, %v3918, %v3920
        %v3938 = vrot.slane %v3659, 4
        %v3939 = vrot.slane %v3661, 5
        %v3940 = vor.u32 %v3938, %v3939
        %v3941 = vrot.slane %v3670, 4
        %v3942 = vrot.slane %v3666, 5
        %v3943 = vor.u32 %v3941, %v3942
        %v3944 = vsel %vm1395, %v3940, %v3943
        %v3945 = vrot.slane %v3678, 4
        %v3946 = vrot.slane %v3674, 5
        %v3947 = vor.u32 %v3945, %v3946
        %v3948 = vsel %vm1395, %v3943, %v3947
        %v3949 = vrot.slane %v3686, 4
        %v3950 = vrot.slane %v3682, 5
        %v3951 = vor.u32 %v3949, %v3950
        %v3952 = vsel %vm1395, %v3947, %v3951
        %v3953 = vshrl.u32 %v3450, 16
        %v3955 = vrot.slane %v3953, 4
        %v3956 = vrot.slane %v3690, 5
        %v3957 = vor.u32 %v3955, %v3956
        %v3958 = vsel %vm1395, %v3951, %v3957
        %v3959 = vrot.slane %v3695, 4
        %v3960 = vrot.slane %v3697, 5
        %v3961 = vor.u32 %v3959, %v3960
        %v3962 = vrot.slane %v3706, 4
        %v3963 = vrot.slane %v3702, 5
        %v3964 = vor.u32 %v3962, %v3963
        %v3965 = vsel %vm1395, %v3961, %v3964
        %v3966 = vrot.slane %v3714, 4
        %v3967 = vrot.slane %v3710, 5
        %v3968 = vor.u32 %v3966, %v3967
        %v3969 = vsel %vm1395, %v3964, %v3968
        %v3970 = vrot.slane %v3722, 4
        %v3971 = vrot.slane %v3718, 5
        %v3972 = vor.u32 %v3970, %v3971
        %v3973 = vsel %vm1395, %v3968, %v3972
        %v3974 = vshrl.u32 %v3451, 16
        %v3976 = vrot.slane %v3974, 4
        %v3977 = vrot.slane %v3726, 5
        %v3978 = vor.u32 %v3976, %v3977
        %v3979 = vsel %vm1395, %v3972, %v3978
        %v3980 = vrot.slane %v3731, 4
        %v3981 = vrot.slane %v3733, 5
        %v3982 = vor.u32 %v3980, %v3981
        %v3983 = vrot.slane %v3742, 4
        %v3984 = vrot.slane %v3738, 5
        %v3985 = vor.u32 %v3983, %v3984
        %v3986 = vsel %vm1395, %v3982, %v3985
        %v3987 = vrot.slane %v3750, 4
        %v3988 = vrot.slane %v3746, 5
        %v3989 = vor.u32 %v3987, %v3988
        %v3990 = vsel %vm1395, %v3985, %v3989
        %v3991 = vrot.slane %v3758, 4
        %v3992 = vrot.slane %v3754, 5
        %v3993 = vor.u32 %v3991, %v3992
        %v3994 = vsel %vm1395, %v3989, %v3993
        %v3995 = vshrl.u32 %v3452, 16
        %v3997 = vrot.slane %v3995, 4
        %v3998 = vrot.slane %v3762, 5
        %v3999 = vor.u32 %v3997, %v3998
        %v4000 = vsel %vm1395, %v3993, %v3999
        %v4001 = vrot.slane %v3767, 4
        %v4002 = vrot.slane %v3769, 5
        %v4003 = vor.u32 %v4001, %v4002
        %v4004 = vrot.slane %v3778, 4
        %v4005 = vrot.slane %v3774, 5
        %v4006 = vor.u32 %v4004, %v4005
        %v4007 = vsel %vm1395, %v4003, %v4006
        %v4008 = vrot.slane %v3786, 4
        %v4009 = vrot.slane %v3782, 5
        %v4010 = vor.u32 %v4008, %v4009
        %v4011 = vsel %vm1395, %v4006, %v4010
        %v4012 = vrot.slane %v3794, 4
        %v4013 = vrot.slane %v3790, 5
        %v4014 = vor.u32 %v4012, %v4013
        %v4015 = vsel %vm1395, %v4010, %v4014
        %v4016 = vshrl.u32 %v3453, 16
        %v4018 = vrot.slane %v4016, 4
        %v4019 = vrot.slane %v3798, 5
        %v4020 = vor.u32 %v4018, %v4019
        %v4021 = vsel %vm1395, %v4014, %v4020
        %v4038 = vrot.slane %v3650, 5
        %v4039 = vrot.slane %v3518, 5
        %v4040 = vsel %vm1496, %v4038, %v4039
        %v4041 = vrot.slane %v3527, 5
        %v4042 = vsel %vm1496, %v4039, %v4041
        %v4043 = vrot.slane %v3536, 5
        %v4044 = vsel %vm1496, %v4041, %v4043
        %v4045 = vrot.slane %v3654, 5
        %v4046 = vsel %vm1496, %v4043, %v4045
        %v4047 = vrot.slane %v3651, 5
        %v4048 = vrot.slane %v3553, 5
        %v4049 = vsel %vm1496, %v4047, %v4048
        %v4050 = vrot.slane %v3562, 5
        %v4051 = vsel %vm1496, %v4048, %v4050
        %v4052 = vrot.slane %v3571, 5
        %v4053 = vsel %vm1496, %v4050, %v4052
        %v4054 = vrot.slane %v3655, 5
        %v4055 = vsel %vm1496, %v4052, %v4054
        %v4056 = vrot.slane %v3652, 5
        %v4057 = vrot.slane %v3588, 5
        %v4058 = vsel %vm1496, %v4056, %v4057
        %v4059 = vrot.slane %v3597, 5
        %v4060 = vsel %vm1496, %v4057, %v4059
        %v4061 = vrot.slane %v3606, 5
        %v4062 = vsel %vm1496, %v4059, %v4061
        %v4063 = vrot.slane %v3656, 5
        %v4064 = vsel %vm1496, %v4061, %v4063
        %v4065 = vrot.slane %v3653, 5
        %v4066 = vrot.slane %v3623, 5
        %v4067 = vsel %vm1496, %v4065, %v4066
        %v4068 = vrot.slane %v3632, 5
        %v4069 = vsel %vm1496, %v4066, %v4068
        %v4070 = vrot.slane %v3641, 5
        %v4071 = vsel %vm1496, %v4068, %v4070
        %v4072 = vrot.slane %v3657, 5
        %v4073 = vsel %vm1496, %v4070, %v4072
        %v4090 = vor.u32 %v3953, %v3692
        %v4091 = vsel %vm1112, %v4090, %v1553
        %v4092 = vor.u32 %v3974, %v3728
        %v4093 = vsel %vm1112, %v4092, %v1553
        %v4094 = vor.u32 %v3995, %v3764
        %v4095 = vsel %vm1112, %v4094, %v1553
        %v4096 = vor.u32 %v4016, %v3800
        %v4097 = vsel %vm1112, %v4096, %v1553
        %v4102 = vsel %vm1281, %v3833, %v1566
        %v4103 = vsel %vm1281, %v3842, %v1566
        %v4104 = vsel %vm1281, %v3851, %v1566
        %v4105 = vsel %vm1281, %v3860, %v1566
        %v4110 = vld [vmem:[#allocation7] sm:$0xf]
        %v4111 = vld [vmem:[#allocation7 + $0x4] sm:$0xf]
        %v4112 = vld [vmem:[#allocation7 + $0x8] sm:$0xf]
        %v4113 = vld [vmem:[#allocation7 + $0xc] sm:$0xf]
        %v4114 = vld [vmem:[#allocation7 + $0x10] sm:$0xf]
        %v4115 = vld [vmem:[#allocation7 + $0x14] sm:$0xf]
        %v4116 = vld [vmem:[#allocation7 + $0x18] sm:$0xf]
        %v4117 = vld [vmem:[#allocation7 + $0x1c] sm:$0xf]
        %v4118 = vld [vmem:[#allocation7 + $0x20] sm:$0xf]
        %v4119 = vld [vmem:[#allocation7 + $0x24] sm:$0xf]
        %v4120 = vld [vmem:[#allocation7 + $0x28] sm:$0xf]
        %v4121 = vld [vmem:[#allocation7 + $0x2c] sm:$0xf]
        %v4122 = vld [vmem:[#allocation7 + $0x30] sm:$0xf]
        %v4123 = vld [vmem:[#allocation7 + $0x34] sm:$0xf]
        %v4124 = vld [vmem:[#allocation7 + $0x38] sm:$0xf]
        %v4125 = vld [vmem:[#allocation7 + $0x3c] sm:$0xf]
        %v4126 = vld [vmem:[#allocation7 + $0x40] sm:$0xf]
        %v4127 = vld [vmem:[#allocation7 + $0x44] sm:$0xf]
        %v4128 = vld [vmem:[#allocation7 + $0x48] sm:$0xf]
        %v4129 = vld [vmem:[#allocation7 + $0x4c] sm:$0xf]
        %v4130 = vld [vmem:[#allocation7 + $0x50] sm:$0xf]
        %v4131 = vld [vmem:[#allocation7 + $0x54] sm:$0xf]
        %v4132 = vld [vmem:[#allocation7 + $0x58] sm:$0xf]
        %v4133 = vld [vmem:[#allocation7 + $0x5c] sm:$0xf]
        %v4134 = vld [vmem:[#allocation7 + $0x60] sm:$0xf]
        %v4135 = vld [vmem:[#allocation7 + $0x64] sm:$0xf]
        %v4136 = vld [vmem:[#allocation7 + $0x68] sm:$0xf]
        %v4137 = vld [vmem:[#allocation7 + $0x6c] sm:$0xf]
        %v4138 = vld [vmem:[#allocation7 + $0x70] sm:$0xf]
        %v4139 = vld [vmem:[#allocation7 + $0x74] sm:$0xf]
        %v4140 = vld [vmem:[#allocation7 + $0x78] sm:$0xf]
        %v4141 = vld [vmem:[#allocation7 + $0x7c] sm:$0xf]
        %v4142 = vld [vmem:[#allocation7 + $0x80] sm:$0xf]
        %v4143 = vld [vmem:[#allocation7 + $0x84] sm:$0xf]
        %v4144 = vld [vmem:[#allocation7 + $0x88] sm:$0xf]
        %v4145 = vld [vmem:[#allocation7 + $0x8c] sm:$0xf]
        %v4146 = vld [vmem:[#allocation7 + $0x90] sm:$0xf]
        %v4147 = vld [vmem:[#allocation7 + $0x94] sm:$0xf]
        %v4148 = vld [vmem:[#allocation7 + $0x98] sm:$0xf]
        %v4149 = vld [vmem:[#allocation7 + $0x9c] sm:$0xf]
        %v4150 = vld [vmem:[#allocation7 + $0xa0] sm:$0xf]
        %v4151 = vld [vmem:[#allocation7 + $0xa4] sm:$0xf]
        %v4152 = vld [vmem:[#allocation7 + $0xa8] sm:$0xf]
        %v4153 = vld [vmem:[#allocation7 + $0xac] sm:$0xf]
        %v4154 = vld [vmem:[#allocation7 + $0xb0] sm:$0xf]
        %v4155 = vld [vmem:[#allocation7 + $0xb4] sm:$0xf]
        %v4156 = vld [vmem:[#allocation7 + $0xb8] sm:$0xf]
        %v4157 = vld [vmem:[#allocation7 + $0xbc] sm:$0xf]
        %v4158 = vld [vmem:[#allocation7 + $0xc0] sm:$0xf]
        %v4159 = vld [vmem:[#allocation7 + $0xc4] sm:$0xf]
        %v4160 = vld [vmem:[#allocation7 + $0xc8] sm:$0xf]
        %v4161 = vld [vmem:[#allocation7 + $0xcc] sm:$0xf]
        %v4162 = vld [vmem:[#allocation7 + $0xd0] sm:$0xf]
        %v4163 = vld [vmem:[#allocation7 + $0xd4] sm:$0xf]
        %v4164 = vld [vmem:[#allocation7 + $0xd8] sm:$0xf]
        %v4165 = vld [vmem:[#allocation7 + $0xdc] sm:$0xf]
        %v4166 = vld [vmem:[#allocation7 + $0xe0] sm:$0xf]
        %v4167 = vld [vmem:[#allocation7 + $0xe4] sm:$0xf]
        %v4168 = vld [vmem:[#allocation7 + $0xe8] sm:$0xf]
        %v4169 = vld [vmem:[#allocation7 + $0xec] sm:$0xf]
        %v4170 = vld [vmem:[#allocation7 + $0xf0] sm:$0xf]
        %v4171 = vld [vmem:[#allocation7 + $0xf4] sm:$0xf]
        %v4172 = vld [vmem:[#allocation7 + $0xf8] sm:$0xf]
        %v4173 = vld [vmem:[#allocation7 + $0xfc] sm:$0xf]
        %v4174 = vld [vmem:[#allocation7 + $0x100] sm:$0xf]
        %v4175 = vld [vmem:[#allocation7 + $0x104] sm:$0xf]
        %v4176 = vld [vmem:[#allocation7 + $0x108] sm:$0xf]
        %v4177 = vld [vmem:[#allocation7 + $0x10c] sm:$0xf]
        %v4178 = vld [vmem:[#allocation7 + $0x110] sm:$0xf]
        %v4179 = vld [vmem:[#allocation7 + $0x114] sm:$0xf]
        %v4180 = vld [vmem:[#allocation7 + $0x118] sm:$0xf]
        %v4181 = vld [vmem:[#allocation7 + $0x11c] sm:$0xf]
        %v4182 = vld [vmem:[#allocation7 + $0x120] sm:$0xf]
        %v4183 = vld [vmem:[#allocation7 + $0x124] sm:$0xf]
        %v4184 = vld [vmem:[#allocation7 + $0x128] sm:$0xf]
        %v4185 = vld [vmem:[#allocation7 + $0x12c] sm:$0xf]
        %v4186 = vld [vmem:[#allocation7 + $0x130] sm:$0xf]
        %v4187 = vld [vmem:[#allocation7 + $0x134] sm:$0xf]
        %v4188 = vld [vmem:[#allocation7 + $0x138] sm:$0xf]
        %v4189 = vld [vmem:[#allocation7 + $0x13c] sm:$0xf]
        %v4190 = vld [vmem:[#allocation7 + $0x140] sm:$0xf]
        %v4191 = vld [vmem:[#allocation7 + $0x144] sm:$0xf]
        %v4192 = vld [vmem:[#allocation7 + $0x148] sm:$0xf]
        %v4193 = vld [vmem:[#allocation7 + $0x14c] sm:$0xf]
        %v4194 = vld [vmem:[#allocation7 + $0x150] sm:$0xf]
        %v4195 = vld [vmem:[#allocation7 + $0x154] sm:$0xf]
        %v4196 = vld [vmem:[#allocation7 + $0x158] sm:$0xf]
        %v4197 = vld [vmem:[#allocation7 + $0x15c] sm:$0xf]
        %v4198 = vld [vmem:[#allocation7 + $0x160] sm:$0xf]
        %v4199 = vld [vmem:[#allocation7 + $0x164] sm:$0xf]
        %v4200 = vld [vmem:[#allocation7 + $0x168] sm:$0xf]
        %v4201 = vld [vmem:[#allocation7 + $0x16c] sm:$0xf]
        %v4202 = vld [vmem:[#allocation7 + $0x170] sm:$0xf]
        %v4203 = vld [vmem:[#allocation7 + $0x174] sm:$0xf]
        %v4204 = vld [vmem:[#allocation7 + $0x178] sm:$0xf]
        %v4205 = vld [vmem:[#allocation7 + $0x17c] sm:$0xf]
        %v4206 = vld [vmem:[#allocation7 + $0x180] sm:$0xf]
        %v4207 = vld [vmem:[#allocation7 + $0x184] sm:$0xf]
        %v4208 = vld [vmem:[#allocation7 + $0x188] sm:$0xf]
        %v4209 = vld [vmem:[#allocation7 + $0x18c] sm:$0xf]
        %v4210 = vld [vmem:[#allocation7 + $0x190] sm:$0xf]
        %v4211 = vld [vmem:[#allocation7 + $0x194] sm:$0xf]
        %v4212 = vld [vmem:[#allocation7 + $0x198] sm:$0xf]
        %v4213 = vld [vmem:[#allocation7 + $0x19c] sm:$0xf]
        %v4214 = vld [vmem:[#allocation7 + $0x1a0] sm:$0xf]
        %v4215 = vld [vmem:[#allocation7 + $0x1a4] sm:$0xf]
        %v4216 = vld [vmem:[#allocation7 + $0x1a8] sm:$0xf]
        %v4217 = vld [vmem:[#allocation7 + $0x1ac] sm:$0xf]
        %v4218 = vld [vmem:[#allocation7 + $0x1b0] sm:$0xf]
        %v4219 = vld [vmem:[#allocation7 + $0x1b4] sm:$0xf]
        %v4220 = vld [vmem:[#allocation7 + $0x1b8] sm:$0xf]
        %v4221 = vld [vmem:[#allocation7 + $0x1bc] sm:$0xf]
        %v4222 = vld [vmem:[#allocation7 + $0x1c0] sm:$0xf]
        %v4223 = vld [vmem:[#allocation7 + $0x1c4] sm:$0xf]
        %v4224 = vld [vmem:[#allocation7 + $0x1c8] sm:$0xf]
        %v4225 = vld [vmem:[#allocation7 + $0x1cc] sm:$0xf]
        %v4226 = vld [vmem:[#allocation7 + $0x1d0] sm:$0xf]
        %v4227 = vld [vmem:[#allocation7 + $0x1d4] sm:$0xf]
        %v4228 = vld [vmem:[#allocation7 + $0x1d8] sm:$0xf]
        %v4229 = vld [vmem:[#allocation7 + $0x1dc] sm:$0xf]
        %v4230 = vld [vmem:[#allocation7 + $0x1e0] sm:$0xf]
        %v4231 = vld [vmem:[#allocation7 + $0x1e4] sm:$0xf]
        %v4232 = vld [vmem:[#allocation7 + $0x1e8] sm:$0xf]
        %v4233 = vld [vmem:[#allocation7 + $0x1ec] sm:$0xf]
        %v4234 = vld [vmem:[#allocation7 + $0x1f0] sm:$0xf]
        %v4235 = vld [vmem:[#allocation7 + $0x1f4] sm:$0xf]
        %v4236 = vld [vmem:[#allocation7 + $0x1f8] sm:$0xf]
        %v4237 = vld [vmem:[#allocation7 + $0x1fc] sm:$0xf]
        %v4238 = vld [vmem:[#allocation7 + $0x200] sm:$0xf]
        %v4239 = vld [vmem:[#allocation7 + $0x204] sm:$0xf]
        %v4240 = vld [vmem:[#allocation7 + $0x208] sm:$0xf]
        %v4241 = vld [vmem:[#allocation7 + $0x20c] sm:$0xf]
        %v4242 = vld [vmem:[#allocation7 + $0x210] sm:$0xf]
        %v4243 = vld [vmem:[#allocation7 + $0x214] sm:$0xf]
        %v4244 = vld [vmem:[#allocation7 + $0x218] sm:$0xf]
        %v4245 = vld [vmem:[#allocation7 + $0x21c] sm:$0xf]
        %v4246 = vld [vmem:[#allocation7 + $0x220] sm:$0xf]
        %v4247 = vld [vmem:[#allocation7 + $0x224] sm:$0xf]
        %v4248 = vld [vmem:[#allocation7 + $0x228] sm:$0xf]
        %v4249 = vld [vmem:[#allocation7 + $0x22c] sm:$0xf]
        %v4250 = vld [vmem:[#allocation7 + $0x230] sm:$0xf]
        %v4251 = vld [vmem:[#allocation7 + $0x234] sm:$0xf]
        %v4252 = vld [vmem:[#allocation7 + $0x238] sm:$0xf]
        %v4253 = vld [vmem:[#allocation7 + $0x23c] sm:$0xf]
        %v4398 = vunpack.c.l.b16 %v4110
        %v4399 = vunpack.c.l.b16 %v4111
        %v4400 = vunpack.c.l.b16 %v4112
        %v4401 = vunpack.c.l.b16 %v4113
        %v4402 = vunpack.c.l.b16 %v4114
        %v4403 = vunpack.c.l.b16 %v4115
        %v4404 = vunpack.c.l.b16 %v4116
        %v4405 = vunpack.c.l.b16 %v4117
        %v4406 = vunpack.c.l.b16 %v4118
        %v4407 = vunpack.c.l.b16 %v4119
        %v4408 = vunpack.c.l.b16 %v4120
        %v4409 = vunpack.c.l.b16 %v4121
        %v4410 = vunpack.c.l.b16 %v4122
        %v4411 = vunpack.c.l.b16 %v4123
        %v4412 = vunpack.c.l.b16 %v4124
        %v4413 = vunpack.c.l.b16 %v4125
        %v4414 = vunpack.c.l.b16 %v4126
        %v4415 = vunpack.c.l.b16 %v4127
        %v4416 = vunpack.c.l.b16 %v4128
        %v4417 = vunpack.c.l.b16 %v4129
        %v4418 = vunpack.c.l.b16 %v4130
        %v4419 = vunpack.c.l.b16 %v4131
        %v4420 = vunpack.c.l.b16 %v4132
        %v4421 = vunpack.c.l.b16 %v4133
        %v4422 = vunpack.c.l.b16 %v4134
        %v4423 = vunpack.c.l.b16 %v4135
        %v4424 = vunpack.c.l.b16 %v4136
        %v4425 = vunpack.c.l.b16 %v4137
        %v4426 = vunpack.c.l.b16 %v4138
        %v4427 = vunpack.c.l.b16 %v4139
        %v4428 = vunpack.c.l.b16 %v4140
        %v4429 = vunpack.c.l.b16 %v4141
        %v4430 = vunpack.c.l.b16 %v4142
        %v4431 = vunpack.c.l.b16 %v4143
        %v4432 = vunpack.c.l.b16 %v4144
        %v4433 = vunpack.c.l.b16 %v4145
        %v4434 = vunpack.c.l.b16 %v4146
        %v4435 = vunpack.c.l.b16 %v4147
        %v4436 = vunpack.c.l.b16 %v4148
        %v4437 = vunpack.c.l.b16 %v4149
        %v4438 = vunpack.c.l.b16 %v4150
        %v4439 = vunpack.c.l.b16 %v4151
        %v4440 = vunpack.c.l.b16 %v4152
        %v4441 = vunpack.c.l.b16 %v4153
        %v4442 = vunpack.c.l.b16 %v4154
        %v4443 = vunpack.c.l.b16 %v4155
        %v4444 = vunpack.c.l.b16 %v4156
        %v4445 = vunpack.c.l.b16 %v4157
        %v4446 = vunpack.c.l.b16 %v4158
        %v4447 = vunpack.c.l.b16 %v4159
        %v4448 = vunpack.c.l.b16 %v4160
        %v4449 = vunpack.c.l.b16 %v4161
        %v4450 = vunpack.c.l.b16 %v4162
        %v4451 = vunpack.c.l.b16 %v4163
        %v4452 = vunpack.c.l.b16 %v4164
        %v4453 = vunpack.c.l.b16 %v4165
        %v4454 = vunpack.c.l.b16 %v4166
        %v4455 = vunpack.c.l.b16 %v4167
        %v4456 = vunpack.c.l.b16 %v4168
        %v4457 = vunpack.c.l.b16 %v4169
        %v4458 = vunpack.c.l.b16 %v4170
        %v4459 = vunpack.c.l.b16 %v4171
        %v4460 = vunpack.c.l.b16 %v4172
        %v4461 = vunpack.c.l.b16 %v4173
        %v4462 = vunpack.c.l.b16 %v4174
        %v4463 = vunpack.c.l.b16 %v4175
        %v4464 = vunpack.c.l.b16 %v4176
        %v4465 = vunpack.c.l.b16 %v4177
        %v4466 = vunpack.c.l.b16 %v4178
        %v4467 = vunpack.c.l.b16 %v4179
        %v4468 = vunpack.c.l.b16 %v4180
        %v4469 = vunpack.c.l.b16 %v4181
        %v4470 = vunpack.c.l.b16 %v4182
        %v4471 = vunpack.c.l.b16 %v4183
        %v4472 = vunpack.c.l.b16 %v4184
        %v4473 = vunpack.c.l.b16 %v4185
        %v4474 = vunpack.c.l.b16 %v4186
        %v4475 = vunpack.c.l.b16 %v4187
        %v4476 = vunpack.c.l.b16 %v4188
        %v4477 = vunpack.c.l.b16 %v4189
        %v4478 = vunpack.c.l.b16 %v4190
        %v4479 = vunpack.c.l.b16 %v4191
        %v4480 = vunpack.c.l.b16 %v4192
        %v4481 = vunpack.c.l.b16 %v4193
        %v4482 = vunpack.c.l.b16 %v4194
        %v4483 = vunpack.c.l.b16 %v4195
        %v4484 = vunpack.c.l.b16 %v4196
        %v4485 = vunpack.c.l.b16 %v4197
        %v4486 = vunpack.c.l.b16 %v4198
        %v4487 = vunpack.c.l.b16 %v4199
        %v4488 = vunpack.c.l.b16 %v4200
        %v4489 = vunpack.c.l.b16 %v4201
        %v4490 = vunpack.c.l.b16 %v4202
        %v4491 = vunpack.c.l.b16 %v4203
        %v4492 = vunpack.c.l.b16 %v4204
        %v4493 = vunpack.c.l.b16 %v4205
        %v4494 = vunpack.c.l.b16 %v4206
        %v4495 = vunpack.c.l.b16 %v4207
        %v4496 = vunpack.c.l.b16 %v4208
        %v4497 = vunpack.c.l.b16 %v4209
        %v4498 = vunpack.c.l.b16 %v4210
        %v4499 = vunpack.c.l.b16 %v4211
        %v4500 = vunpack.c.l.b16 %v4212
        %v4501 = vunpack.c.l.b16 %v4213
        %v4502 = vunpack.c.l.b16 %v4214
        %v4503 = vunpack.c.l.b16 %v4215
        %v4504 = vunpack.c.l.b16 %v4216
        %v4505 = vunpack.c.l.b16 %v4217
        %v4506 = vunpack.c.l.b16 %v4218
        %v4507 = vunpack.c.l.b16 %v4219
        %v4508 = vunpack.c.l.b16 %v4220
        %v4509 = vunpack.c.l.b16 %v4221
        %v4510 = vunpack.c.l.b16 %v4222
        %v4511 = vunpack.c.l.b16 %v4223
        %v4512 = vunpack.c.l.b16 %v4224
        %v4513 = vunpack.c.l.b16 %v4225
        %v4514 = vunpack.c.l.b16 %v4226
        %v4515 = vunpack.c.l.b16 %v4227
        %v4516 = vunpack.c.l.b16 %v4228
        %v4517 = vunpack.c.l.b16 %v4229
        %v4518 = vunpack.c.l.b16 %v4230
        %v4519 = vunpack.c.l.b16 %v4231
        %v4520 = vunpack.c.l.b16 %v4232
        %v4521 = vunpack.c.l.b16 %v4233
        %v4522 = vunpack.c.l.b16 %v4234
        %v4523 = vunpack.c.l.b16 %v4235
        %v4524 = vunpack.c.l.b16 %v4236
        %v4525 = vunpack.c.l.b16 %v4237
        %v4526 = vunpack.c.l.b16 %v4238
        %v4527 = vunpack.c.l.b16 %v4239
        %v4528 = vunpack.c.l.b16 %v4240
        %v4529 = vunpack.c.l.b16 %v4241
        %v4530 = vunpack.c.l.b16 %v4242
        %v4531 = vunpack.c.l.b16 %v4243
        %v4532 = vunpack.c.l.b16 %v4244
        %v4533 = vunpack.c.l.b16 %v4245
        %v4534 = vunpack.c.l.b16 %v4246
        %v4535 = vunpack.c.l.b16 %v4247
        %v4536 = vunpack.c.l.b16 %v4248
        %v4537 = vunpack.c.l.b16 %v4249
        %v4538 = vunpack.c.l.b16 %v4250
        %v4539 = vunpack.c.l.b16 %v4251
        %v4540 = vunpack.c.l.b16 %v4252
        %v4541 = vunpack.c.l.b16 %v4253
        %v4542 = vpack.c.b16 %v4399, %v4398
        %v4543 = vpack.c.b16 %v4401, %v4400
        %v4544 = vpack.c.b16 %v4403, %v4402
        %v4545 = vpack.c.b16 %v4405, %v4404
        %v4546 = vpack.c.b16 %v4407, %v4406
        %v4547 = vpack.c.b16 %v4409, %v4408
        %v4548 = vpack.c.b16 %v4411, %v4410
        %v4549 = vpack.c.b16 %v4413, %v4412
        %v4550 = vpack.c.b16 %v4415, %v4414
        %v4551 = vpack.c.b16 %v4417, %v4416
        %v4552 = vpack.c.b16 %v4419, %v4418
        %v4553 = vpack.c.b16 %v4421, %v4420
        %v4554 = vpack.c.b16 %v4423, %v4422
        %v4555 = vpack.c.b16 %v4425, %v4424
        %v4556 = vpack.c.b16 %v4427, %v4426
        %v4557 = vpack.c.b16 %v4429, %v4428
        %v4558 = vpack.c.b16 %v4431, %v4430
        %v4559 = vpack.c.b16 %v4433, %v4432
        %v4560 = vpack.c.b16 %v4435, %v4434
        %v4561 = vpack.c.b16 %v4437, %v4436
        %v4562 = vpack.c.b16 %v4439, %v4438
        %v4563 = vpack.c.b16 %v4441, %v4440
        %v4564 = vpack.c.b16 %v4443, %v4442
        %v4565 = vpack.c.b16 %v4445, %v4444
        %v4566 = vpack.c.b16 %v4447, %v4446
        %v4567 = vpack.c.b16 %v4449, %v4448
        %v4568 = vpack.c.b16 %v4451, %v4450
        %v4569 = vpack.c.b16 %v4453, %v4452
        %v4570 = vpack.c.b16 %v4455, %v4454
        %v4571 = vpack.c.b16 %v4457, %v4456
        %v4572 = vpack.c.b16 %v4459, %v4458
        %v4573 = vpack.c.b16 %v4461, %v4460
        %v4574 = vpack.c.b16 %v4463, %v4462
        %v4575 = vpack.c.b16 %v4465, %v4464
        %v4576 = vpack.c.b16 %v4467, %v4466
        %v4577 = vpack.c.b16 %v4469, %v4468
        %v4578 = vpack.c.b16 %v4471, %v4470
        %v4579 = vpack.c.b16 %v4473, %v4472
        %v4580 = vpack.c.b16 %v4475, %v4474
        %v4581 = vpack.c.b16 %v4477, %v4476
        %v4582 = vpack.c.b16 %v4479, %v4478
        %v4583 = vpack.c.b16 %v4481, %v4480
        %v4584 = vpack.c.b16 %v4483, %v4482
        %v4585 = vpack.c.b16 %v4485, %v4484
        %v4586 = vpack.c.b16 %v4487, %v4486
        %v4587 = vpack.c.b16 %v4489, %v4488
        %v4588 = vpack.c.b16 %v4491, %v4490
        %v4589 = vpack.c.b16 %v4493, %v4492
        %v4590 = vpack.c.b16 %v4495, %v4494
        %v4591 = vpack.c.b16 %v4497, %v4496
        %v4592 = vpack.c.b16 %v4499, %v4498
        %v4593 = vpack.c.b16 %v4501, %v4500
        %v4594 = vpack.c.b16 %v4503, %v4502
        %v4595 = vpack.c.b16 %v4505, %v4504
        %v4596 = vpack.c.b16 %v4507, %v4506
        %v4597 = vpack.c.b16 %v4509, %v4508
        %v4598 = vpack.c.b16 %v4511, %v4510
        %v4599 = vpack.c.b16 %v4513, %v4512
        %v4600 = vpack.c.b16 %v4515, %v4514
        %v4601 = vpack.c.b16 %v4517, %v4516
        %v4602 = vpack.c.b16 %v4519, %v4518
        %v4603 = vpack.c.b16 %v4521, %v4520
        %v4604 = vpack.c.b16 %v4523, %v4522
        %v4605 = vpack.c.b16 %v4525, %v4524
        %v4606 = vpack.c.b16 %v4527, %v4526
        %v4607 = vpack.c.b16 %v4529, %v4528
        %v4608 = vpack.c.b16 %v4531, %v4530
        %v4609 = vpack.c.b16 %v4533, %v4532
        %v4610 = vpack.c.b16 %v4535, %v4534
        %v4611 = vpack.c.b16 %v4537, %v4536
        %v4612 = vpack.c.b16 %v4539, %v4538
        %v4613 = vpack.c.b16 %v4541, %v4540
        %4686 = vmatprep.subr.bf16.mxu0 0
        %4687 = vmatpush1.bf16.msra.mxu0 %v4542
        %4688 = vmatprep.subr.bf16.mxu0 0
        %4689 = vmatpush1.bf16.msra.mxu0 %v4543
        %4690 = vmatprep.subr.bf16.mxu0 0
        %4691 = vmatpush1.bf16.msra.mxu0 %v4544
        %4692 = vmatprep.subr.bf16.mxu0 0
        %4693 = vmatpush1.bf16.msra.mxu0 %v4545
        %4694 = vmatprep.subr.bf16.mxu0 0
        %4695 = vmatpush1.bf16.msra.mxu0 %v4546
        %4696 = vmatprep.subr.bf16.mxu0 0
        %4697 = vmatpush1.bf16.msra.mxu0 %v4547
        %4698 = vmatprep.subr.bf16.mxu0 0
        %4699 = vmatpush1.bf16.msra.mxu0 %v4548
        %4700 = vmatprep.subr.bf16.mxu0 0
        %4701 = vmatpush1.bf16.msra.mxu0 %v4549
        %4702 = vmatprep.subr.bf16.mxu0 0
        %4703 = vmatpush1.bf16.msra.mxu0 %v4550
        %4704 = vmatprep.subr.bf16.mxu0 0
        %4705 = vmatpush1.bf16.msra.mxu0 %v4551
        %4706 = vmatprep.subr.bf16.mxu0 0
        %4707 = vmatpush1.bf16.msra.mxu0 %v4552
        %4708 = vmatprep.subr.bf16.mxu0 0
        %4709 = vmatpush1.bf16.msra.mxu0 %v4553
        %4710 = vmatprep.subr.bf16.mxu0 0
        %4711 = vmatpush1.bf16.msra.mxu0 %v4554
        %4712 = vmatprep.subr.bf16.mxu0 0
        %4713 = vmatpush1.bf16.msra.mxu0 %v4555
        %4714 = vmatprep.subr.bf16.mxu0 0
        %4715 = vmatpush1.bf16.msra.mxu0 %v4556
        %4716 = vmatprep.subr.bf16.mxu0 0
        %4717 = vmatpush1.bf16.msra.mxu0 %v4557
        %4718 = vmatprep.mubr.bf16.mxu0 %v3669
        %4719 = vmatmul.mubr.bf16.gmra.mrb[0].mxu0 %v3274
        %v4720 = vpop.f32.mrb[0].mxu0
        %v4721 = vadd.f32 0.0, %v4720
        %v4722 = vpop.f32.mrb[0].mxu0
        %v4723 = vpop.f32.mrb[0].mxu0
        %v4724 = vadd.f32 0.0, %v4723
        %v4725 = vpop.f32.mrb[0].mxu0
        %4726 = vmatprep.mubr.bf16.mxu0 %v3677
        %4727 = vmatmul.mubr.bf16.gmra.mrb[0].mxu0 %v3130
        %v4728 = vpop.f32.mrb[0].mxu0
        %v4729 = vadd.f32 0.0, %v4728
        %v4730 = vpop.f32.mrb[0].mxu0
        %v4731 = vpop.f32.mrb[0].mxu0
        %v4732 = vadd.f32 0.0, %v4731
        %v4733 = vpop.f32.mrb[0].mxu0
        %4734 = vmatprep.mubr.bf16.mxu0 %v3685
        %4735 = vmatmul.mubr.bf16.gmra.mrb[0].mxu0 %v3139
        %v4736 = vpop.f32.mrb[0].mxu0
        %v4737 = vadd.f32 0.0, %v4736
        %v4738 = vpop.f32.mrb[0].mxu0
        %v4739 = vpop.f32.mrb[0].mxu0
        %v4740 = vadd.f32 0.0, %v4739
        %v4741 = vpop.f32.mrb[0].mxu0
        %4742 = vmatprep.mubr.bf16.mxu0 %v3693
        %4743 = vmatmul.mubr.bf16.gmra.mrb[0].mxu0 %v3148
        %v4744 = vpop.f32.mrb[0].mxu0
        %v4745 = vadd.f32 0.0, %v4744
        %v4746 = vpop.f32.mrb[0].mxu0
        %v4747 = vpop.f32.mrb[0].mxu0
        %v4748 = vadd.f32 0.0, %v4747
        %v4749 = vpop.f32.mrb[0].mxu0
        %4750 = vmatprep.mubr.bf16.mxu0 %v3705
        %4751 = vmatmul.mubr.bf16.gmra.mrb[0].mxu0 %v3275
        %v4752 = vpop.f32.mrb[0].mxu0
        %v4753 = vadd.f32 0.0, %v4752
        %v4754 = vpop.f32.mrb[0].mxu0
        %v4755 = vpop.f32.mrb[0].mxu0
        %v4756 = vadd.f32 0.0, %v4755
        %v4757 = vpop.f32.mrb[0].mxu0
        %4758 = vmatprep.mubr.bf16.mxu0 %v3713
        %4759 = vmatmul.mubr.bf16.gmra.mrb[0].mxu0 %v3165
        %v4760 = vpop.f32.mrb[0].mxu0
        %v4761 = vadd.f32 0.0, %v4760
        %v4762 = vpop.f32.mrb[0].mxu0
        %v4763 = vpop.f32.mrb[0].mxu0
        %v4764 = vadd.f32 0.0, %v4763
        %v4765 = vpop.f32.mrb[0].mxu0
        %4766 = vmatprep.mubr.bf16.mxu0 %v3721
        %4767 = vmatmul.mubr.bf16.gmra.mrb[0].mxu0 %v3174
        %v4768 = vpop.f32.mrb[0].mxu0
        %v4769 = vadd.f32 0.0, %v4768
        %v4770 = vpop.f32.mrb[0].mxu0
        %v4771 = vpop.f32.mrb[0].mxu0
        %v4772 = vadd.f32 0.0, %v4771
        %v4773 = vpop.f32.mrb[0].mxu0
        %4774 = vmatprep.mubr.bf16.mxu0 %v3729
        %4775 = vmatmul.mubr.bf16.gmra.mrb[0].mxu0 %v3183
        %v4776 = vpop.f32.mrb[0].mxu0
        %v4777 = vadd.f32 0.0, %v4776
        %v4778 = vpop.f32.mrb[0].mxu0
        %v4779 = vpop.f32.mrb[0].mxu0
        %v4780 = vadd.f32 0.0, %v4779
        %v4781 = vpop.f32.mrb[0].mxu0
        %4782 = vmatprep.mubr.bf16.mxu0 %v3741
        %4783 = vmatmul.mubr.bf16.gmra.mrb[0].mxu0 %v3276
        %v4784 = vpop.f32.mrb[0].mxu0
        %v4785 = vadd.f32 0.0, %v4784
        %v4786 = vpop.f32.mrb[0].mxu0
        %v4787 = vpop.f32.mrb[0].mxu0
        %v4788 = vadd.f32 0.0, %v4787
        %v4789 = vpop.f32.mrb[0].mxu0
        %4790 = vmatprep.mubr.bf16.mxu0 %v3749
        %4791 = vmatmul.mubr.bf16.gmra.mrb[0].mxu0 %v3200
        %v4792 = vpop.f32.mrb[0].mxu0
        %v4793 = vadd.f32 0.0, %v4792
        %v4794 = vpop.f32.mrb[0].mxu0
        %v4795 = vpop.f32.mrb[0].mxu0
        %v4796 = vadd.f32 0.0, %v4795
        %v4797 = vpop.f32.mrb[0].mxu0
        %4798 = vmatprep.mubr.bf16.mxu0 %v3757
        %4799 = vmatmul.mubr.bf16.gmra.mrb[0].mxu0 %v3209
        %v4800 = vpop.f32.mrb[0].mxu0
        %v4801 = vadd.f32 0.0, %v4800
        %v4802 = vpop.f32.mrb[0].mxu0
        %v4803 = vpop.f32.mrb[0].mxu0
        %v4804 = vadd.f32 0.0, %v4803
        %v4805 = vpop.f32.mrb[0].mxu0
        %4806 = vmatprep.mubr.bf16.mxu0 %v3765
        %4807 = vmatmul.mubr.bf16.gmra.mrb[0].mxu0 %v3218
        %v4808 = vpop.f32.mrb[0].mxu0
        %v4809 = vadd.f32 0.0, %v4808
        %v4810 = vpop.f32.mrb[0].mxu0
        %v4811 = vpop.f32.mrb[0].mxu0
        %v4812 = vadd.f32 0.0, %v4811
        %v4813 = vpop.f32.mrb[0].mxu0
        %4814 = vmatprep.mubr.bf16.mxu0 %v3777
        %4815 = vmatmul.mubr.bf16.gmra.mrb[0].mxu0 %v3277
        %v4816 = vpop.f32.mrb[0].mxu0
        %v4817 = vadd.f32 0.0, %v4816
        %v4818 = vpop.f32.mrb[0].mxu0
        %v4819 = vpop.f32.mrb[0].mxu0
        %v4820 = vadd.f32 0.0, %v4819
        %v4821 = vpop.f32.mrb[0].mxu0
        %4822 = vmatprep.mubr.bf16.mxu0 %v3785
        %4823 = vmatmul.mubr.bf16.gmra.mrb[0].mxu0 %v3235
        %v4824 = vpop.f32.mrb[0].mxu0
        %v4825 = vadd.f32 0.0, %v4824
        %v4826 = vpop.f32.mrb[0].mxu0
        %v4827 = vpop.f32.mrb[0].mxu0
        %v4828 = vadd.f32 0.0, %v4827
        %v4829 = vpop.f32.mrb[0].mxu0
        %4830 = vmatprep.mubr.bf16.mxu0 %v3793
        %4831 = vmatmul.mubr.bf16.gmra.mrb[0].mxu0 %v3244
        %v4832 = vpop.f32.mrb[0].mxu0
        %v4833 = vadd.f32 0.0, %v4832
        %v4834 = vpop.f32.mrb[0].mxu0
        %v4835 = vpop.f32.mrb[0].mxu0
        %v4836 = vadd.f32 0.0, %v4835
        %v4837 = vpop.f32.mrb[0].mxu0
        %4838 = vmatprep.mubr.bf16.mxu0 %v3801
        %4839 = vmatmul.mubr.bf16.gmra.mrb[0].mxu0 %v3253
        %v4840 = vpop.f32.mrb[0].mxu0
        %v4841 = vadd.f32 0.0, %v4840
        %v4842 = vpop.f32.mrb[0].mxu0
        %v4843 = vpop.f32.mrb[0].mxu0
        %v4844 = vadd.f32 0.0, %v4843
        %v4845 = vpop.f32.mrb[0].mxu0
        %4846 = vdwg.mxu0
        %4847 = vmatprep.subr.bf16.mxu0 0
        %4848 = vmatpush1.bf16.msra.mxu0 %v4558
        %4849 = vmatprep.subr.bf16.mxu0 0
        %4850 = vmatpush1.bf16.msra.mxu0 %v4559
        %4851 = vmatprep.subr.bf16.mxu0 0
        %4852 = vmatpush1.bf16.msra.mxu0 %v4560
        %4853 = vmatprep.subr.bf16.mxu0 0
        %4854 = vmatpush1.bf16.msra.mxu0 %v4561
        %4855 = vmatprep.subr.bf16.mxu0 0
        %4856 = vmatpush1.bf16.msra.mxu0 %v4562
        %4857 = vmatprep.subr.bf16.mxu0 0
        %4858 = vmatpush1.bf16.msra.mxu0 %v4563
        %4859 = vmatprep.subr.bf16.mxu0 0
        %4860 = vmatpush1.bf16.msra.mxu0 %v4564
        %4861 = vmatprep.subr.bf16.mxu0 0
        %4862 = vmatpush1.bf16.msra.mxu0 %v4565
        %4863 = vmatprep.subr.bf16.mxu0 0
        %4864 = vmatpush1.bf16.msra.mxu0 %v4566
        %4865 = vmatprep.subr.bf16.mxu0 0
        %4866 = vmatpush1.bf16.msra.mxu0 %v4567
        %4867 = vmatprep.subr.bf16.mxu0 0
        %4868 = vmatpush1.bf16.msra.mxu0 %v4568
        %4869 = vmatprep.subr.bf16.mxu0 0
        %4870 = vmatpush1.bf16.msra.mxu0 %v4569
        %4871 = vmatprep.subr.bf16.mxu0 0
        %4872 = vmatpush1.bf16.msra.mxu0 %v4570
        %4873 = vmatprep.subr.bf16.mxu0 0
        %4874 = vmatpush1.bf16.msra.mxu0 %v4571
        %4875 = vmatprep.subr.bf16.mxu0 0
        %4876 = vmatpush1.bf16.msra.mxu0 %v4572
        %4877 = vmatprep.subr.bf16.mxu0 0
        %4878 = vmatpush1.bf16.msra.mxu0 %v4573
        %4879 = vmatprep.mubr.bf16.mxu0 %v3888
        %4880 = vmatmul.mubr.bf16.gmra.mrb[0].mxu0 %v3828
        %v4881 = vpop.f32.mrb[0].mxu0
        %v4882 = vadd.f32 %v4721, %v4881
        %v4883 = vpop.f32.mrb[0].mxu0
        %v4884 = vpop.f32.mrb[0].mxu0
        %v4885 = vadd.f32 %v4724, %v4884
        %v4886 = vpop.f32.mrb[0].mxu0
        %4887 = vmatprep.mubr.bf16.mxu0 %v3890
        %4888 = vmatmul.mubr.bf16.gmra.mrb[0].mxu0 %v3830
        %v4889 = vpop.f32.mrb[0].mxu0
        %v4890 = vadd.f32 %v4729, %v4889
        %v4891 = vpop.f32.mrb[0].mxu0
        %v4892 = vpop.f32.mrb[0].mxu0
        %v4893 = vadd.f32 %v4732, %v4892
        %v4894 = vpop.f32.mrb[0].mxu0
        %4895 = vmatprep.mubr.bf16.mxu0 %v3892
        %4896 = vmatmul.mubr.bf16.gmra.mrb[0].mxu0 %v3832
        %v4897 = vpop.f32.mrb[0].mxu0
        %v4898 = vadd.f32 %v4737, %v4897
        %v4899 = vpop.f32.mrb[0].mxu0
        %v4900 = vpop.f32.mrb[0].mxu0
        %v4901 = vadd.f32 %v4740, %v4900
        %v4902 = vpop.f32.mrb[0].mxu0
        %4903 = vmatprep.mubr.bf16.mxu0 %v3894
        %4904 = vmatmul.mubr.bf16.gmra.mrb[0].mxu0 %v3834
        %v4905 = vpop.f32.mrb[0].mxu0
        %v4906 = vadd.f32 %v4745, %v4905
        %v4907 = vpop.f32.mrb[0].mxu0
        %v4908 = vpop.f32.mrb[0].mxu0
        %v4909 = vadd.f32 %v4748, %v4908
        %v4910 = vpop.f32.mrb[0].mxu0
        %4911 = vmatprep.mubr.bf16.mxu0 %v3897
        %4912 = vmatmul.mubr.bf16.gmra.mrb[0].mxu0 %v3837
        %v4913 = vpop.f32.mrb[0].mxu0
        %v4914 = vadd.f32 %v4753, %v4913
        %v4915 = vpop.f32.mrb[0].mxu0
        %v4916 = vpop.f32.mrb[0].mxu0
        %v4917 = vadd.f32 %v4756, %v4916
        %v4918 = vpop.f32.mrb[0].mxu0
        %4919 = vmatprep.mubr.bf16.mxu0 %v3899
        %4920 = vmatmul.mubr.bf16.gmra.mrb[0].mxu0 %v3839
        %v4921 = vpop.f32.mrb[0].mxu0
        %v4922 = vadd.f32 %v4761, %v4921
        %v4923 = vpop.f32.mrb[0].mxu0
        %v4924 = vpop.f32.mrb[0].mxu0
        %v4925 = vadd.f32 %v4764, %v4924
        %v4926 = vpop.f32.mrb[0].mxu0
        %4927 = vmatprep.mubr.bf16.mxu0 %v3901
        %4928 = vmatmul.mubr.bf16.gmra.mrb[0].mxu0 %v3841
        %v4929 = vpop.f32.mrb[0].mxu0
        %v4930 = vadd.f32 %v4769, %v4929
        %v4931 = vpop.f32.mrb[0].mxu0
        %v4932 = vpop.f32.mrb[0].mxu0
        %v4933 = vadd.f32 %v4772, %v4932
        %v4934 = vpop.f32.mrb[0].mxu0
        %4935 = vmatprep.mubr.bf16.mxu0 %v3903
        %4936 = vmatmul.mubr.bf16.gmra.mrb[0].mxu0 %v3843
        %v4937 = vpop.f32.mrb[0].mxu0
        %v4938 = vadd.f32 %v4777, %v4937
        %v4939 = vpop.f32.mrb[0].mxu0
        %v4940 = vpop.f32.mrb[0].mxu0
        %v4941 = vadd.f32 %v4780, %v4940
        %v4942 = vpop.f32.mrb[0].mxu0
        %4943 = vmatprep.mubr.bf16.mxu0 %v3906
        %4944 = vmatmul.mubr.bf16.gmra.mrb[0].mxu0 %v3846
        %v4945 = vpop.f32.mrb[0].mxu0
        %v4946 = vadd.f32 %v4785, %v4945
        %v4947 = vpop.f32.mrb[0].mxu0
        %v4948 = vpop.f32.mrb[0].mxu0
        %v4949 = vadd.f32 %v4788, %v4948
        %v4950 = vpop.f32.mrb[0].mxu0
        %4951 = vmatprep.mubr.bf16.mxu0 %v3908
        %4952 = vmatmul.mubr.bf16.gmra.mrb[0].mxu0 %v3848
        %v4953 = vpop.f32.mrb[0].mxu0
        %v4954 = vadd.f32 %v4793, %v4953
        %v4955 = vpop.f32.mrb[0].mxu0
        %v4956 = vpop.f32.mrb[0].mxu0
        %v4957 = vadd.f32 %v4796, %v4956
        %v4958 = vpop.f32.mrb[0].mxu0
        %4959 = vmatprep.mubr.bf16.mxu0 %v3910
        %4960 = vmatmul.mubr.bf16.gmra.mrb[0].mxu0 %v3850
        %v4961 = vpop.f32.mrb[0].mxu0
        %v4962 = vadd.f32 %v4801, %v4961
        %v4963 = vpop.f32.mrb[0].mxu0
        %v4964 = vpop.f32.mrb[0].mxu0
        %v4965 = vadd.f32 %v4804, %v4964
        %v4966 = vpop.f32.mrb[0].mxu0
        %4967 = vmatprep.mubr.bf16.mxu0 %v3912
        %4968 = vmatmul.mubr.bf16.gmra.mrb[0].mxu0 %v3852
        %v4969 = vpop.f32.mrb[0].mxu0
        %v4970 = vadd.f32 %v4809, %v4969
        %v4971 = vpop.f32.mrb[0].mxu0
        %v4972 = vpop.f32.mrb[0].mxu0
        %v4973 = vadd.f32 %v4812, %v4972
        %v4974 = vpop.f32.mrb[0].mxu0
        %4975 = vmatprep.mubr.bf16.mxu0 %v3915
        %4976 = vmatmul.mubr.bf16.gmra.mrb[0].mxu0 %v3855
        %v4977 = vpop.f32.mrb[0].mxu0
        %v4978 = vadd.f32 %v4817, %v4977
        %v4979 = vpop.f32.mrb[0].mxu0
        %v4980 = vpop.f32.mrb[0].mxu0
        %v4981 = vadd.f32 %v4820, %v4980
        %v4982 = vpop.f32.mrb[0].mxu0
        %4983 = vmatprep.mubr.bf16.mxu0 %v3917
        %4984 = vmatmul.mubr.bf16.gmra.mrb[0].mxu0 %v3857
        %v4985 = vpop.f32.mrb[0].mxu0
        %v4986 = vadd.f32 %v4825, %v4985
        %v4987 = vpop.f32.mrb[0].mxu0
        %v4988 = vpop.f32.mrb[0].mxu0
        %v4989 = vadd.f32 %v4828, %v4988
        %v4990 = vpop.f32.mrb[0].mxu0
        %4991 = vmatprep.mubr.bf16.mxu0 %v3919
        %4992 = vmatmul.mubr.bf16.gmra.mrb[0].mxu0 %v3859
        %v4993 = vpop.f32.mrb[0].mxu0
        %v4994 = vadd.f32 %v4833, %v4993
        %v4995 = vpop.f32.mrb[0].mxu0
        %v4996 = vpop.f32.mrb[0].mxu0
        %v4997 = vadd.f32 %v4836, %v4996
        %v4998 = vpop.f32.mrb[0].mxu0
        %4999 = vmatprep.mubr.bf16.mxu0 %v3921
        %5000 = vmatmul.mubr.bf16.gmra.mrb[0].mxu0 %v3861
        %v5001 = vpop.f32.mrb[0].mxu0
        %v5002 = vadd.f32 %v4841, %v5001
        %v5003 = vpop.f32.mrb[0].mxu0
        %v5004 = vpop.f32.mrb[0].mxu0
        %v5005 = vadd.f32 %v4844, %v5004
        %v5006 = vpop.f32.mrb[0].mxu0
        %5007 = vdwg.mxu0
        %5008 = vmatprep.subr.bf16.mxu0 0
        %5009 = vmatpush1.bf16.msra.mxu0 %v4574
        %5010 = vmatprep.subr.bf16.mxu0 0
        %5011 = vmatpush1.bf16.msra.mxu0 %v4575
        %5012 = vmatprep.subr.bf16.mxu0 0
        %5013 = vmatpush1.bf16.msra.mxu0 %v4576
        %5014 = vmatprep.subr.bf16.mxu0 0
        %5015 = vmatpush1.bf16.msra.mxu0 %v4577
        %5016 = vmatprep.subr.bf16.mxu0 0
        %5017 = vmatpush1.bf16.msra.mxu0 %v4578
        %5018 = vmatprep.subr.bf16.mxu0 0
        %5019 = vmatpush1.bf16.msra.mxu0 %v4579
        %5020 = vmatprep.subr.bf16.mxu0 0
        %5021 = vmatpush1.bf16.msra.mxu0 %v4580
        %5022 = vmatprep.subr.bf16.mxu0 0
        %5023 = vmatpush1.bf16.msra.mxu0 %v4581
        %5024 = vmatprep.subr.bf16.mxu0 0
        %5025 = vmatpush1.bf16.msra.mxu0 %v4582
        %5026 = vmatprep.subr.bf16.mxu0 0
        %5027 = vmatpush1.bf16.msra.mxu0 %v4583
        %5028 = vmatprep.subr.bf16.mxu0 0
        %5029 = vmatpush1.bf16.msra.mxu0 %v4584
        %5030 = vmatprep.subr.bf16.mxu0 0
        %5031 = vmatpush1.bf16.msra.mxu0 %v4585
        %5032 = vmatprep.subr.bf16.mxu0 0
        %5033 = vmatpush1.bf16.msra.mxu0 %v4586
        %5034 = vmatprep.subr.bf16.mxu0 0
        %5035 = vmatpush1.bf16.msra.mxu0 %v4587
        %5036 = vmatprep.subr.bf16.mxu0 0
        %5037 = vmatpush1.bf16.msra.mxu0 %v4588
        %5038 = vmatprep.subr.bf16.mxu0 0
        %5039 = vmatpush1.bf16.msra.mxu0 %v4589
        %5040 = vmatprep.mubr.bf16.mxu0 %v4040
        %5041 = vmatmul.mubr.bf16.gmra.mrb[0].mxu0 %v3944
        %v5042 = vpop.f32.mrb[0].mxu0
        %v5043 = vadd.f32 %v4882, %v5042
        %v5044 = vpop.f32.mrb[0].mxu0
        %v5045 = vpop.f32.mrb[0].mxu0
        %v5046 = vadd.f32 %v4885, %v5045
        %v5047 = vpop.f32.mrb[0].mxu0
        %5048 = vmatprep.mubr.bf16.mxu0 %v4042
        %5049 = vmatmul.mubr.bf16.gmra.mrb[0].mxu0 %v3948
        %v5050 = vpop.f32.mrb[0].mxu0
        %v5051 = vadd.f32 %v4890, %v5050
        %v5052 = vpop.f32.mrb[0].mxu0
        %v5053 = vpop.f32.mrb[0].mxu0
        %v5054 = vadd.f32 %v4893, %v5053
        %v5055 = vpop.f32.mrb[0].mxu0
        %5056 = vmatprep.mubr.bf16.mxu0 %v4044
        %5057 = vmatmul.mubr.bf16.gmra.mrb[0].mxu0 %v3952
        %v5058 = vpop.f32.mrb[0].mxu0
        %v5059 = vadd.f32 %v4898, %v5058
        %v5060 = vpop.f32.mrb[0].mxu0
        %v5061 = vpop.f32.mrb[0].mxu0
        %v5062 = vadd.f32 %v4901, %v5061
        %v5063 = vpop.f32.mrb[0].mxu0
        %5064 = vmatprep.mubr.bf16.mxu0 %v4046
        %5065 = vmatmul.mubr.bf16.gmra.mrb[0].mxu0 %v3958
        %v5066 = vpop.f32.mrb[0].mxu0
        %v5067 = vadd.f32 %v4906, %v5066
        %v5068 = vpop.f32.mrb[0].mxu0
        %v5069 = vpop.f32.mrb[0].mxu0
        %v5070 = vadd.f32 %v4909, %v5069
        %v5071 = vpop.f32.mrb[0].mxu0
        %5072 = vmatprep.mubr.bf16.mxu0 %v4049
        %5073 = vmatmul.mubr.bf16.gmra.mrb[0].mxu0 %v3965
        %v5074 = vpop.f32.mrb[0].mxu0
        %v5075 = vadd.f32 %v4914, %v5074
        %v5076 = vpop.f32.mrb[0].mxu0
        %v5077 = vpop.f32.mrb[0].mxu0
        %v5078 = vadd.f32 %v4917, %v5077
        %v5079 = vpop.f32.mrb[0].mxu0
        %5080 = vmatprep.mubr.bf16.mxu0 %v4051
        %5081 = vmatmul.mubr.bf16.gmra.mrb[0].mxu0 %v3969
        %v5082 = vpop.f32.mrb[0].mxu0
        %v5083 = vadd.f32 %v4922, %v5082
        %v5084 = vpop.f32.mrb[0].mxu0
        %v5085 = vpop.f32.mrb[0].mxu0
        %v5086 = vadd.f32 %v4925, %v5085
        %v5087 = vpop.f32.mrb[0].mxu0
        %5088 = vmatprep.mubr.bf16.mxu0 %v4053
        %5089 = vmatmul.mubr.bf16.gmra.mrb[0].mxu0 %v3973
        %v5090 = vpop.f32.mrb[0].mxu0
        %v5091 = vadd.f32 %v4930, %v5090
        %v5092 = vpop.f32.mrb[0].mxu0
        %v5093 = vpop.f32.mrb[0].mxu0
        %v5094 = vadd.f32 %v4933, %v5093
        %v5095 = vpop.f32.mrb[0].mxu0
        %5096 = vmatprep.mubr.bf16.mxu0 %v4055
        %5097 = vmatmul.mubr.bf16.gmra.mrb[0].mxu0 %v3979
        %v5098 = vpop.f32.mrb[0].mxu0
        %v5099 = vadd.f32 %v4938, %v5098
        %v5100 = vpop.f32.mrb[0].mxu0
        %v5101 = vpop.f32.mrb[0].mxu0
        %v5102 = vadd.f32 %v4941, %v5101
        %v5103 = vpop.f32.mrb[0].mxu0
        %5104 = vmatprep.mubr.bf16.mxu0 %v4058
        %5105 = vmatmul.mubr.bf16.gmra.mrb[0].mxu0 %v3986
        %v5106 = vpop.f32.mrb[0].mxu0
        %v5107 = vadd.f32 %v4946, %v5106
        %v5108 = vpop.f32.mrb[0].mxu0
        %v5109 = vpop.f32.mrb[0].mxu0
        %v5110 = vadd.f32 %v4949, %v5109
        %v5111 = vpop.f32.mrb[0].mxu0
        %5112 = vmatprep.mubr.bf16.mxu0 %v4060
        %5113 = vmatmul.mubr.bf16.gmra.mrb[0].mxu0 %v3990
        %v5114 = vpop.f32.mrb[0].mxu0
        %v5115 = vadd.f32 %v4954, %v5114
        %v5116 = vpop.f32.mrb[0].mxu0
        %v5117 = vpop.f32.mrb[0].mxu0
        %v5118 = vadd.f32 %v4957, %v5117
        %v5119 = vpop.f32.mrb[0].mxu0
        %5120 = vmatprep.mubr.bf16.mxu0 %v4062
        %5121 = vmatmul.mubr.bf16.gmra.mrb[0].mxu0 %v3994
        %v5122 = vpop.f32.mrb[0].mxu0
        %v5123 = vadd.f32 %v4962, %v5122
        %v5124 = vpop.f32.mrb[0].mxu0
        %v5125 = vpop.f32.mrb[0].mxu0
        %v5126 = vadd.f32 %v4965, %v5125
        %v5127 = vpop.f32.mrb[0].mxu0
        %5128 = vmatprep.mubr.bf16.mxu0 %v4064
        %5129 = vmatmul.mubr.bf16.gmra.mrb[0].mxu0 %v4000
        %v5130 = vpop.f32.mrb[0].mxu0
        %v5131 = vadd.f32 %v4970, %v5130
        %v5132 = vpop.f32.mrb[0].mxu0
        %v5133 = vpop.f32.mrb[0].mxu0
        %v5134 = vadd.f32 %v4973, %v5133
        %v5135 = vpop.f32.mrb[0].mxu0
        %5136 = vmatprep.mubr.bf16.mxu0 %v4067
        %5137 = vmatmul.mubr.bf16.gmra.mrb[0].mxu0 %v4007
        %v5138 = vpop.f32.mrb[0].mxu0
        %v5139 = vadd.f32 %v4978, %v5138
        %v5140 = vpop.f32.mrb[0].mxu0
        %v5141 = vpop.f32.mrb[0].mxu0
        %v5142 = vadd.f32 %v4981, %v5141
        %v5143 = vpop.f32.mrb[0].mxu0
        %5144 = vmatprep.mubr.bf16.mxu0 %v4069
        %5145 = vmatmul.mubr.bf16.gmra.mrb[0].mxu0 %v4011
        %v5146 = vpop.f32.mrb[0].mxu0
        %v5147 = vadd.f32 %v4986, %v5146
        %v5148 = vpop.f32.mrb[0].mxu0
        %v5149 = vpop.f32.mrb[0].mxu0
        %v5150 = vadd.f32 %v4989, %v5149
        %v5151 = vpop.f32.mrb[0].mxu0
        %5152 = vmatprep.mubr.bf16.mxu0 %v4071
        %5153 = vmatmul.mubr.bf16.gmra.mrb[0].mxu0 %v4015
        %v5154 = vpop.f32.mrb[0].mxu0
        %v5155 = vadd.f32 %v4994, %v5154
        %v5156 = vpop.f32.mrb[0].mxu0
        %v5157 = vpop.f32.mrb[0].mxu0
        %v5158 = vadd.f32 %v4997, %v5157
        %v5159 = vpop.f32.mrb[0].mxu0
        %5160 = vmatprep.mubr.bf16.mxu0 %v4073
        %5161 = vmatmul.mubr.bf16.gmra.mrb[0].mxu0 %v4021
        %v5162 = vpop.f32.mrb[0].mxu0
        %v5163 = vadd.f32 %v5002, %v5162
        %v5164 = vpop.f32.mrb[0].mxu0
        %v5165 = vpop.f32.mrb[0].mxu0
        %v5166 = vadd.f32 %v5005, %v5165
        %v5167 = vpop.f32.mrb[0].mxu0
        %5168 = vdwg.mxu0
        %5169 = vmatprep.subr.bf16.mxu0 0
        %5170 = vmatpush1.bf16.msra.mxu0 %v4590
        %5171 = vmatprep.subr.bf16.mxu0 0
        %5172 = vmatpush1.bf16.msra.mxu0 %v4591
        %5173 = vmatprep.subr.bf16.mxu0 0
        %5174 = vmatpush1.bf16.msra.mxu0 %v4592
        %5175 = vmatprep.subr.bf16.mxu0 0
        %5176 = vmatpush1.bf16.msra.mxu0 %v4593
        %5177 = vmatprep.subr.bf16.mxu0 0
        %5178 = vmatpush1.bf16.msra.mxu0 %v4594
        %5179 = vmatprep.subr.bf16.mxu0 0
        %5180 = vmatpush1.bf16.msra.mxu0 %v4595
        %5181 = vmatprep.subr.bf16.mxu0 0
        %5182 = vmatpush1.bf16.msra.mxu0 %v4596
        %5183 = vmatprep.subr.bf16.mxu0 0
        %5184 = vmatpush1.bf16.msra.mxu0 %v4597
        %5185 = vmatprep.subr.bf16.mxu0 0
        %5186 = vmatpush1.bf16.msra.mxu0 %v4598
        %5187 = vmatprep.subr.bf16.mxu0 0
        %5188 = vmatpush1.bf16.msra.mxu0 %v4599
        %5189 = vmatprep.subr.bf16.mxu0 0
        %5190 = vmatpush1.bf16.msra.mxu0 %v4600
        %5191 = vmatprep.subr.bf16.mxu0 0
        %5192 = vmatpush1.bf16.msra.mxu0 %v4601
        %5193 = vmatprep.subr.bf16.mxu0 0
        %5194 = vmatpush1.bf16.msra.mxu0 %v4602
        %5195 = vmatprep.subr.bf16.mxu0 0
        %5196 = vmatpush1.bf16.msra.mxu0 %v4603
        %5197 = vmatprep.subr.bf16.mxu0 0
        %5198 = vmatpush1.bf16.msra.mxu0 %v4604
        %5199 = vmatprep.subr.bf16.mxu0 0
        %5200 = vmatpush1.bf16.msra.mxu0 %v4605
        %5201 = vmatprep.mubr.bf16.mxu0 %v3677
        %5202 = vmatmul.mubr.bf16.gmra.mrb[0].mxu0 %v3130
        %v5203 = vpop.f32.mrb[0].mxu0
        %v5204 = vadd.f32 %v5043, %v5203
        %v5205 = vpop.f32.mrb[0].mxu0
        %v5206 = vpop.f32.mrb[0].mxu0
        %v5207 = vadd.f32 %v5046, %v5206
        %v5208 = vpop.f32.mrb[0].mxu0
        %5209 = vmatprep.mubr.bf16.mxu0 %v3685
        %5210 = vmatmul.mubr.bf16.gmra.mrb[0].mxu0 %v3139
        %v5211 = vpop.f32.mrb[0].mxu0
        %v5212 = vadd.f32 %v5051, %v5211
        %v5213 = vpop.f32.mrb[0].mxu0
        %v5214 = vpop.f32.mrb[0].mxu0
        %v5215 = vadd.f32 %v5054, %v5214
        %v5216 = vpop.f32.mrb[0].mxu0
        %5217 = vmatprep.mubr.bf16.mxu0 %v3693
        %5218 = vmatmul.mubr.bf16.gmra.mrb[0].mxu0 %v3148
        %v5219 = vpop.f32.mrb[0].mxu0
        %v5220 = vadd.f32 %v5059, %v5219
        %v5221 = vpop.f32.mrb[0].mxu0
        %v5222 = vpop.f32.mrb[0].mxu0
        %v5223 = vadd.f32 %v5062, %v5222
        %v5224 = vpop.f32.mrb[0].mxu0
        %5225 = vmatprep.mubr.bf16.mxu0 %v4091
        %5226 = vmatmul.mubr.bf16.gmra.mrb[0].mxu0 %v3278
        %v5227 = vpop.f32.mrb[0].mxu0
        %v5228 = vadd.f32 %v5067, %v5227
        %v5229 = vpop.f32.mrb[0].mxu0
        %v5230 = vpop.f32.mrb[0].mxu0
        %v5231 = vadd.f32 %v5070, %v5230
        %v5232 = vpop.f32.mrb[0].mxu0
        %5233 = vmatprep.mubr.bf16.mxu0 %v3713
        %5234 = vmatmul.mubr.bf16.gmra.mrb[0].mxu0 %v3165
        %v5235 = vpop.f32.mrb[0].mxu0
        %v5236 = vadd.f32 %v5075, %v5235
        %v5237 = vpop.f32.mrb[0].mxu0
        %v5238 = vpop.f32.mrb[0].mxu0
        %v5239 = vadd.f32 %v5078, %v5238
        %v5240 = vpop.f32.mrb[0].mxu0
        %5241 = vmatprep.mubr.bf16.mxu0 %v3721
        %5242 = vmatmul.mubr.bf16.gmra.mrb[0].mxu0 %v3174
        %v5243 = vpop.f32.mrb[0].mxu0
        %v5244 = vadd.f32 %v5083, %v5243
        %v5245 = vpop.f32.mrb[0].mxu0
        %v5246 = vpop.f32.mrb[0].mxu0
        %v5247 = vadd.f32 %v5086, %v5246
        %v5248 = vpop.f32.mrb[0].mxu0
        %5249 = vmatprep.mubr.bf16.mxu0 %v3729
        %5250 = vmatmul.mubr.bf16.gmra.mrb[0].mxu0 %v3183
        %v5251 = vpop.f32.mrb[0].mxu0
        %v5252 = vadd.f32 %v5091, %v5251
        %v5253 = vpop.f32.mrb[0].mxu0
        %v5254 = vpop.f32.mrb[0].mxu0
        %v5255 = vadd.f32 %v5094, %v5254
        %v5256 = vpop.f32.mrb[0].mxu0
        %5257 = vmatprep.mubr.bf16.mxu0 %v4093
        %5258 = vmatmul.mubr.bf16.gmra.mrb[0].mxu0 %v3279
        %v5259 = vpop.f32.mrb[0].mxu0
        %v5260 = vadd.f32 %v5099, %v5259
        %v5261 = vpop.f32.mrb[0].mxu0
        %v5262 = vpop.f32.mrb[0].mxu0
        %v5263 = vadd.f32 %v5102, %v5262
        %v5264 = vpop.f32.mrb[0].mxu0
        %5265 = vmatprep.mubr.bf16.mxu0 %v3749
        %5266 = vmatmul.mubr.bf16.gmra.mrb[0].mxu0 %v3200
        %v5267 = vpop.f32.mrb[0].mxu0
        %v5268 = vadd.f32 %v5107, %v5267
        %v5269 = vpop.f32.mrb[0].mxu0
        %v5270 = vpop.f32.mrb[0].mxu0
        %v5271 = vadd.f32 %v5110, %v5270
        %v5272 = vpop.f32.mrb[0].mxu0
        %5273 = vmatprep.mubr.bf16.mxu0 %v3757
        %5274 = vmatmul.mubr.bf16.gmra.mrb[0].mxu0 %v3209
        %v5275 = vpop.f32.mrb[0].mxu0
        %v5276 = vadd.f32 %v5115, %v5275
        %v5277 = vpop.f32.mrb[0].mxu0
        %v5278 = vpop.f32.mrb[0].mxu0
        %v5279 = vadd.f32 %v5118, %v5278
        %v5280 = vpop.f32.mrb[0].mxu0
        %5281 = vmatprep.mubr.bf16.mxu0 %v3765
        %5282 = vmatmul.mubr.bf16.gmra.mrb[0].mxu0 %v3218
        %v5283 = vpop.f32.mrb[0].mxu0
        %v5284 = vadd.f32 %v5123, %v5283
        %v5285 = vpop.f32.mrb[0].mxu0
        %v5286 = vpop.f32.mrb[0].mxu0
        %v5287 = vadd.f32 %v5126, %v5286
        %v5288 = vpop.f32.mrb[0].mxu0
        %5289 = vmatprep.mubr.bf16.mxu0 %v4095
        %5290 = vmatmul.mubr.bf16.gmra.mrb[0].mxu0 %v3280
        %v5291 = vpop.f32.mrb[0].mxu0
        %v5292 = vadd.f32 %v5131, %v5291
        %v5293 = vpop.f32.mrb[0].mxu0
        %v5294 = vpop.f32.mrb[0].mxu0
        %v5295 = vadd.f32 %v5134, %v5294
        %v5296 = vpop.f32.mrb[0].mxu0
        %5297 = vmatprep.mubr.bf16.mxu0 %v3785
        %5298 = vmatmul.mubr.bf16.gmra.mrb[0].mxu0 %v3235
        %v5299 = vpop.f32.mrb[0].mxu0
        %v5300 = vadd.f32 %v5139, %v5299
        %v5301 = vpop.f32.mrb[0].mxu0
        %v5302 = vpop.f32.mrb[0].mxu0
        %v5303 = vadd.f32 %v5142, %v5302
        %v5304 = vpop.f32.mrb[0].mxu0
        %5305 = vmatprep.mubr.bf16.mxu0 %v3793
        %5306 = vmatmul.mubr.bf16.gmra.mrb[0].mxu0 %v3244
        %v5307 = vpop.f32.mrb[0].mxu0
        %v5308 = vadd.f32 %v5147, %v5307
        %v5309 = vpop.f32.mrb[0].mxu0
        %v5310 = vpop.f32.mrb[0].mxu0
        %v5311 = vadd.f32 %v5150, %v5310
        %v5312 = vpop.f32.mrb[0].mxu0
        %5313 = vmatprep.mubr.bf16.mxu0 %v3801
        %5314 = vmatmul.mubr.bf16.gmra.mrb[0].mxu0 %v3253
        %v5315 = vpop.f32.mrb[0].mxu0
        %v5316 = vadd.f32 %v5155, %v5315
        %v5317 = vpop.f32.mrb[0].mxu0
        %v5318 = vpop.f32.mrb[0].mxu0
        %v5319 = vadd.f32 %v5158, %v5318
        %v5320 = vpop.f32.mrb[0].mxu0
        %5321 = vmatprep.mubr.bf16.mxu0 %v4097
        %5322 = vmatmul.mubr.bf16.gmra.mrb[0].mxu0 %v3281
        %v5323 = vpop.f32.mrb[0].mxu0
        %v5324 = vadd.f32 %v5163, %v5323
        %v5325 = vpop.f32.mrb[0].mxu0
        %v5326 = vpop.f32.mrb[0].mxu0
        %v5327 = vadd.f32 %v5166, %v5326
        %v5328 = vpop.f32.mrb[0].mxu0
        %5329 = vdwg.mxu0
        %5330 = vmatprep.subr.bf16.mxu0 0
        %5331 = vmatpush1.bf16.msra.mxu0 %v4606
        %5332 = vmatprep.subr.bf16.mxu0 0
        %5333 = vmatpush1.bf16.msra.mxu0 %v4607
        %5334 = vmatprep.subr.bf16.mxu0 0
        %5335 = vmatpush1.bf16.msra.mxu0 %v4608
        %5336 = vmatprep.subr.bf16.mxu0 0
        %5337 = vmatpush1.bf16.msra.mxu0 %v4609
        %5338 = vmatprep.subr.bf16.mxu0 0
        %5339 = vmatpush1.bf16.msra.mxu0 %v4610
        %5340 = vmatprep.subr.bf16.mxu0 0
        %5341 = vmatpush1.bf16.msra.mxu0 %v4611
        %5342 = vmatprep.subr.bf16.mxu0 0
        %5343 = vmatpush1.bf16.msra.mxu0 %v4612
        %5344 = vmatprep.subr.bf16.mxu0 0
        %5345 = vmatpush1.bf16.msra.mxu0 %v4613
        %5346 = vmatprep.subr.bf16.mxu0 0
        %5347 = vmatpush1.bf16.msra.mxu0 0
        %5348 = vmatprep.subr.bf16.mxu0 0
        %5349 = vmatpush1.bf16.msra.mxu0 0
        %5350 = vmatprep.subr.bf16.mxu0 0
        %5351 = vmatpush1.bf16.msra.mxu0 0
        %5352 = vmatprep.subr.bf16.mxu0 0
        %5353 = vmatpush1.bf16.msra.mxu0 0
        %5354 = vmatprep.subr.bf16.mxu0 0
        %5355 = vmatpush1.bf16.msra.mxu0 0
        %5356 = vmatprep.subr.bf16.mxu0 0
        %5357 = vmatpush1.bf16.msra.mxu0 0
        %5358 = vmatprep.subr.bf16.mxu0 0
        %5359 = vmatpush1.bf16.msra.mxu0 0
        %5360 = vmatprep.subr.bf16.mxu0 0
        %5361 = vmatpush1.bf16.msra.mxu0 0
        %5362 = vmatprep.mubr.bf16.mxu0 0
        %5363 = vmatmul.mubr.bf16.gmra.mrb[0].mxu0 %v3830
        %v5364 = vpop.f32.mrb[0].mxu0
        %v5365 = vadd.f32 %v5204, %v5364
        %v5366 = vpop.f32.mrb[0].mxu0
        %v5367 = vpop.f32.mrb[0].mxu0
        %v5368 = vadd.f32 %v5207, %v5367
        %v5369 = vpop.f32.mrb[0].mxu0
        %5370 = vmatprep.mubr.bf16.mxu0 0
        %5371 = vmatmul.mubr.bf16.gmra.mrb[0].mxu0 %v3832
        %v5372 = vpop.f32.mrb[0].mxu0
        %v5373 = vadd.f32 %v5212, %v5372
        %v5374 = vpop.f32.mrb[0].mxu0
        %v5375 = vpop.f32.mrb[0].mxu0
        %v5376 = vadd.f32 %v5215, %v5375
        %v5377 = vpop.f32.mrb[0].mxu0
        %5378 = vmatprep.mubr.bf16.mxu0 0
        %5379 = vmatmul.mubr.bf16.gmra.mrb[0].mxu0 %v3834
        %v5380 = vpop.f32.mrb[0].mxu0
        %v5381 = vadd.f32 %v5220, %v5380
        %v5382 = vpop.f32.mrb[0].mxu0
        %v5383 = vpop.f32.mrb[0].mxu0
        %v5384 = vadd.f32 %v5223, %v5383
        %v5385 = vpop.f32.mrb[0].mxu0
        %5386 = vmatprep.mubr.bf16.mxu0 0
        %5387 = vmatmul.mubr.bf16.gmra.mrb[0].mxu0 %v4102
        %v5388 = vpop.f32.mrb[0].mxu0
        %v5389 = vadd.f32 %v5228, %v5388
        %v5390 = vpop.f32.mrb[0].mxu0
        %v5391 = vpop.f32.mrb[0].mxu0
        %v5392 = vadd.f32 %v5231, %v5391
        %v5393 = vpop.f32.mrb[0].mxu0
        %5394 = vmatprep.mubr.bf16.mxu0 0
        %5395 = vmatmul.mubr.bf16.gmra.mrb[0].mxu0 %v3839
        %v5396 = vpop.f32.mrb[0].mxu0
        %v5397 = vadd.f32 %v5236, %v5396
        %v5398 = vpop.f32.mrb[0].mxu0
        %v5399 = vpop.f32.mrb[0].mxu0
        %v5400 = vadd.f32 %v5239, %v5399
        %v5401 = vpop.f32.mrb[0].mxu0
        %5402 = vmatprep.mubr.bf16.mxu0 0
        %5403 = vmatmul.mubr.bf16.gmra.mrb[0].mxu0 %v3841
        %v5404 = vpop.f32.mrb[0].mxu0
        %v5405 = vadd.f32 %v5244, %v5404
        %v5406 = vpop.f32.mrb[0].mxu0
        %v5407 = vpop.f32.mrb[0].mxu0
        %v5408 = vadd.f32 %v5247, %v5407
        %v5409 = vpop.f32.mrb[0].mxu0
        %5410 = vmatprep.mubr.bf16.mxu0 0
        %5411 = vmatmul.mubr.bf16.gmra.mrb[0].mxu0 %v3843
        %v5412 = vpop.f32.mrb[0].mxu0
        %v5413 = vadd.f32 %v5252, %v5412
        %v5414 = vpop.f32.mrb[0].mxu0
        %v5415 = vpop.f32.mrb[0].mxu0
        %v5416 = vadd.f32 %v5255, %v5415
        %v5417 = vpop.f32.mrb[0].mxu0
        %5418 = vmatprep.mubr.bf16.mxu0 0
        %5419 = vmatmul.mubr.bf16.gmra.mrb[0].mxu0 %v4103
        %v5420 = vpop.f32.mrb[0].mxu0
        %v5421 = vadd.f32 %v5260, %v5420
        %v5422 = vpop.f32.mrb[0].mxu0
        %v5423 = vpop.f32.mrb[0].mxu0
        %v5424 = vadd.f32 %v5263, %v5423
        %v5425 = vpop.f32.mrb[0].mxu0
        %5426 = vmatprep.mubr.bf16.mxu0 0
        %5427 = vmatmul.mubr.bf16.gmra.mrb[0].mxu0 %v3848
        %v5428 = vpop.f32.mrb[0].mxu0
        %v5429 = vadd.f32 %v5268, %v5428
        %v5430 = vpop.f32.mrb[0].mxu0
        %v5431 = vpop.f32.mrb[0].mxu0
        %v5432 = vadd.f32 %v5271, %v5431
        %v5433 = vpop.f32.mrb[0].mxu0
        %5434 = vmatprep.mubr.bf16.mxu0 0
        %5435 = vmatmul.mubr.bf16.gmra.mrb[0].mxu0 %v3850
        %v5436 = vpop.f32.mrb[0].mxu0
        %v5437 = vadd.f32 %v5276, %v5436
        %v5438 = vpop.f32.mrb[0].mxu0
        %v5439 = vpop.f32.mrb[0].mxu0
        %v5440 = vadd.f32 %v5279, %v5439
        %v5441 = vpop.f32.mrb[0].mxu0
        %5442 = vmatprep.mubr.bf16.mxu0 0
        %5443 = vmatmul.mubr.bf16.gmra.mrb[0].mxu0 %v3852
        %v5444 = vpop.f32.mrb[0].mxu0
        %v5445 = vadd.f32 %v5284, %v5444
        %v5446 = vpop.f32.mrb[0].mxu0
        %v5447 = vpop.f32.mrb[0].mxu0
        %v5448 = vadd.f32 %v5287, %v5447
        %v5449 = vpop.f32.mrb[0].mxu0
        %5450 = vmatprep.mubr.bf16.mxu0 0
        %5451 = vmatmul.mubr.bf16.gmra.mrb[0].mxu0 %v4104
        %v5452 = vpop.f32.mrb[0].mxu0
        %v5453 = vadd.f32 %v5292, %v5452
        %v5454 = vpop.f32.mrb[0].mxu0
        %v5455 = vpop.f32.mrb[0].mxu0
        %v5456 = vadd.f32 %v5295, %v5455
        %v5457 = vpop.f32.mrb[0].mxu0
        %5458 = vmatprep.mubr.bf16.mxu0 0
        %5459 = vmatmul.mubr.bf16.gmra.mrb[0].mxu0 %v3857
        %v5460 = vpop.f32.mrb[0].mxu0
        %v5461 = vadd.f32 %v5300, %v5460
        %v5462 = vpop.f32.mrb[0].mxu0
        %v5463 = vpop.f32.mrb[0].mxu0
        %v5464 = vadd.f32 %v5303, %v5463
        %v5465 = vpop.f32.mrb[0].mxu0
        %5466 = vmatprep.mubr.bf16.mxu0 0
        %5467 = vmatmul.mubr.bf16.gmra.mrb[0].mxu0 %v3859
        %v5468 = vpop.f32.mrb[0].mxu0
        %v5469 = vadd.f32 %v5308, %v5468
        %v5470 = vpop.f32.mrb[0].mxu0
        %v5471 = vpop.f32.mrb[0].mxu0
        %v5472 = vadd.f32 %v5311, %v5471
        %v5473 = vpop.f32.mrb[0].mxu0
        %5474 = vmatprep.mubr.bf16.mxu0 0
        %5475 = vmatmul.mubr.bf16.gmra.mrb[0].mxu0 %v3861
        %v5476 = vpop.f32.mrb[0].mxu0
        %v5477 = vadd.f32 %v5316, %v5476
        %v5478 = vpop.f32.mrb[0].mxu0
        %v5479 = vpop.f32.mrb[0].mxu0
        %v5480 = vadd.f32 %v5319, %v5479
        %v5481 = vpop.f32.mrb[0].mxu0
        %5482 = vmatprep.mubr.bf16.mxu0 0
        %5483 = vmatmul.mubr.bf16.gmra.mrb[0].mxu0 %v4105
        %v5484 = vpop.f32.mrb[0].mxu0
        %v5485 = vadd.f32 %v5324, %v5484
        %v5486 = vpop.f32.mrb[0].mxu0
        %v5487 = vpop.f32.mrb[0].mxu0
        %v5488 = vadd.f32 %v5327, %v5487
        %v5489 = vpop.f32.mrb[0].mxu0
        %5490 = vdwg.mxu0
        %v5492 = vlaneseq
        %v5493 = vshrl.u32 %v5492, 7
        %v5494 = vsub.s32 0, %v5493
        %v5495 = vrot.slane %v3064, %v5494
        %v5497 = vmul.f32 %v5365, %v5495
        %v5498 = vmul.f32 %v5368, %v5495
        %v5499 = vmul.f32 %v5373, %v5495
        %v5500 = vmul.f32 %v5376, %v5495
        %v5501 = vmul.f32 %v5381, %v5495
        %v5502 = vmul.f32 %v5384, %v5495
        %v5503 = vmul.f32 %v5389, %v5495
        %v5504 = vmul.f32 %v5392, %v5495
        %v5505 = vmul.f32 %v5397, %v5495
        %v5506 = vmul.f32 %v5400, %v5495
        %v5507 = vmul.f32 %v5405, %v5495
        %v5508 = vmul.f32 %v5408, %v5495
        %v5509 = vmul.f32 %v5413, %v5495
        %v5510 = vmul.f32 %v5416, %v5495
        %v5511 = vmul.f32 %v5421, %v5495
        %v5512 = vmul.f32 %v5424, %v5495
        %v5513 = vmul.f32 %v5429, %v5495
        %v5514 = vmul.f32 %v5432, %v5495
        %v5515 = vmul.f32 %v5437, %v5495
        %v5516 = vmul.f32 %v5440, %v5495
        %v5517 = vmul.f32 %v5445, %v5495
        %v5518 = vmul.f32 %v5448, %v5495
        %v5519 = vmul.f32 %v5453, %v5495
        %v5520 = vmul.f32 %v5456, %v5495
        %v5521 = vmul.f32 %v5461, %v5495
        %v5522 = vmul.f32 %v5464, %v5495
        %v5523 = vmul.f32 %v5469, %v5495
        %v5524 = vmul.f32 %v5472, %v5495
        %v5525 = vmul.f32 %v5477, %v5495
        %v5526 = vmul.f32 %v5480, %v5495
        %v5527 = vmul.f32 %v5485, %v5495
        %v5528 = vmul.f32 %v5488, %v5495
        %v5530 = vlaneseq
        %v5531 = vshrl.u32 %v5530, 7
        %v5532 = vsub.s32 0, %v5531
        %v5533 = vrot.slane %v3065, %v5532
        %v5535 = vadd.f32 %v5497, %v5533
        %v5536 = vadd.f32 %v5498, %v5533
        %v5537 = vadd.f32 %v5499, %v5533
        %v5538 = vadd.f32 %v5500, %v5533
        %v5539 = vadd.f32 %v5501, %v5533
        %v5540 = vadd.f32 %v5502, %v5533
        %v5541 = vadd.f32 %v5503, %v5533
        %v5542 = vadd.f32 %v5504, %v5533
        %v5543 = vadd.f32 %v5505, %v5533
        %v5544 = vadd.f32 %v5506, %v5533
        %v5545 = vadd.f32 %v5507, %v5533
        %v5546 = vadd.f32 %v5508, %v5533
        %v5547 = vadd.f32 %v5509, %v5533
        %v5548 = vadd.f32 %v5510, %v5533
        %v5549 = vadd.f32 %v5511, %v5533
        %v5550 = vadd.f32 %v5512, %v5533
        %v5551 = vadd.f32 %v5513, %v5533
        %v5552 = vadd.f32 %v5514, %v5533
        %v5553 = vadd.f32 %v5515, %v5533
        %v5554 = vadd.f32 %v5516, %v5533
        %v5555 = vadd.f32 %v5517, %v5533
        %v5556 = vadd.f32 %v5518, %v5533
        %v5557 = vadd.f32 %v5519, %v5533
        %v5558 = vadd.f32 %v5520, %v5533
        %v5559 = vadd.f32 %v5521, %v5533
        %v5560 = vadd.f32 %v5522, %v5533
        %v5561 = vadd.f32 %v5523, %v5533
        %v5562 = vadd.f32 %v5524, %v5533
        %v5563 = vadd.f32 %v5525, %v5533
        %v5564 = vadd.f32 %v5526, %v5533
        %v5565 = vadd.f32 %v5527, %v5533
        %v5566 = vadd.f32 %v5528, %v5533
        %v5567 = vmax.f32 %v5535, 0.0
        %v5568 = vmax.f32 %v5536, 0.0
        %v5569 = vmax.f32 %v5537, 0.0
        %v5570 = vmax.f32 %v5538, 0.0
        %v5571 = vmax.f32 %v5539, 0.0
        %v5572 = vmax.f32 %v5540, 0.0
        %v5573 = vmax.f32 %v5541, 0.0
        %v5574 = vmax.f32 %v5542, 0.0
        %v5575 = vmax.f32 %v5543, 0.0
        %v5576 = vmax.f32 %v5544, 0.0
        %v5577 = vmax.f32 %v5545, 0.0
        %v5578 = vmax.f32 %v5546, 0.0
        %v5579 = vmax.f32 %v5547, 0.0
        %v5580 = vmax.f32 %v5548, 0.0
        %v5581 = vmax.f32 %v5549, 0.0
        %v5582 = vmax.f32 %v5550, 0.0
        %v5583 = vmax.f32 %v5551, 0.0
        %v5584 = vmax.f32 %v5552, 0.0
        %v5585 = vmax.f32 %v5553, 0.0
        %v5586 = vmax.f32 %v5554, 0.0
        %v5587 = vmax.f32 %v5555, 0.0
        %v5588 = vmax.f32 %v5556, 0.0
        %v5589 = vmax.f32 %v5557, 0.0
        %v5590 = vmax.f32 %v5558, 0.0
        %v5591 = vmax.f32 %v5559, 0.0
        %v5592 = vmax.f32 %v5560, 0.0
        %v5593 = vmax.f32 %v5561, 0.0
        %v5594 = vmax.f32 %v5562, 0.0
        %v5595 = vmax.f32 %v5563, 0.0
        %v5596 = vmax.f32 %v5564, 0.0
        %v5597 = vmax.f32 %v5565, 0.0
        %v5598 = vmax.f32 %v5566, 0.0
        %v5599 = vadd.f32 %v5567, %v451
        %v5600 = vadd.f32 %v5568, %v452
        %v5601 = vadd.f32 %v5569, %v453
        %v5602 = vadd.f32 %v5570, %v454
        %v5603 = vadd.f32 %v5571, %v455
        %v5604 = vadd.f32 %v5572, %v456
        %v5605 = vadd.f32 %v5573, %v457
        %v5606 = vadd.f32 %v5574, %v458
        %v5607 = vadd.f32 %v5575, %v459
        %v5608 = vadd.f32 %v5576, %v460
        %v5609 = vadd.f32 %v5577, %v461
        %v5610 = vadd.f32 %v5578, %v462
        %v5611 = vadd.f32 %v5579, %v463
        %v5612 = vadd.f32 %v5580, %v464
        %v5613 = vadd.f32 %v5581, %v465
        %v5614 = vadd.f32 %v5582, %v466
        %v5615 = vadd.f32 %v5583, %v467
        %v5616 = vadd.f32 %v5584, %v468
        %v5617 = vadd.f32 %v5585, %v469
        %v5618 = vadd.f32 %v5586, %v470
        %v5619 = vadd.f32 %v5587, %v471
        %v5620 = vadd.f32 %v5588, %v472
        %v5621 = vadd.f32 %v5589, %v473
        %v5622 = vadd.f32 %v5590, %v474
        %v5623 = vadd.f32 %v5591, %v475
        %v5624 = vadd.f32 %v5592, %v476
        %v5625 = vadd.f32 %v5593, %v477
        %v5626 = vadd.f32 %v5594, %v478
        %v5627 = vadd.f32 %v5595, %v479
        %v5628 = vadd.f32 %v5596, %v480
        %v5629 = vadd.f32 %v5597, %v481
        %v5630 = vadd.f32 %v5598, %v482
        %5631 = vst [vmem:[%s326] sm:$0xff] %v5599
        %5632 = vst [vmem:[%s326 + $0x8] sm:$0xff] %v5600
        %5633 = vst [vmem:[%s326 + $0x10] sm:$0xff] %v5601
        %5634 = vst [vmem:[%s326 + $0x18] sm:$0xff] %v5602
        %5635 = vst [vmem:[%s326 + $0x20] sm:$0xff] %v5603
        %5636 = vst [vmem:[%s326 + $0x28] sm:$0xff] %v5604
        %5637 = vst [vmem:[%s326 + $0x30] sm:$0xff] %v5605
        %5638 = vst [vmem:[%s326 + $0x38] sm:$0xff] %v5606
        %5639 = vst [vmem:[%s326 + $0x40] sm:$0xff] %v5607
        %5640 = vst [vmem:[%s326 + $0x48] sm:$0xff] %v5608
        %5641 = vst [vmem:[%s326 + $0x50] sm:$0xff] %v5609
        %5642 = vst [vmem:[%s326 + $0x58] sm:$0xff] %v5610
        %5643 = vst [vmem:[%s326 + $0x60] sm:$0xff] %v5611
        %5644 = vst [vmem:[%s326 + $0x68] sm:$0xff] %v5612
        %5645 = vst [vmem:[%s326 + $0x70] sm:$0xff] %v5613
        %5646 = vst [vmem:[%s326 + $0x78] sm:$0xff] %v5614
        %5647 = vst [vmem:[%s326 + $0x80] sm:$0xff] %v5615
        %5648 = vst [vmem:[%s326 + $0x88] sm:$0xff] %v5616
        %5649 = vst [vmem:[%s326 + $0x90] sm:$0xff] %v5617
        %5650 = vst [vmem:[%s326 + $0x98] sm:$0xff] %v5618
        %5651 = vst [vmem:[%s326 + $0xa0] sm:$0xff] %v5619
        %5652 = vst [vmem:[%s326 + $0xa8] sm:$0xff] %v5620
        %5653 = vst [vmem:[%s326 + $0xb0] sm:$0xff] %v5621
        %5654 = vst [vmem:[%s326 + $0xb8] sm:$0xff] %v5622
        %5655 = vst [vmem:[%s326 + $0xc0] sm:$0xff] %v5623
        %5656 = vst [vmem:[%s326 + $0xc8] sm:$0xff] %v5624
        %5657 = vst [vmem:[%s326 + $0xd0] sm:$0xff] %v5625
        %5658 = vst [vmem:[%s326 + $0xd8] sm:$0xff] %v5626
        %5659 = vst [vmem:[%s326 + $0xe0] sm:$0xff] %v5627
        %5660 = vst [vmem:[%s326 + $0xe8] sm:$0xff] %v5628
        %5661 = vst [vmem:[%s326 + $0xf0] sm:$0xff] %v5629
        %5662 = vst [vmem:[%s326 + $0xf8] sm:$0xff] %v5630
        %s5663 = sand.u32 %s185, 1
        %s5664 = scalar_lea.sflag [#allocation4], %s5663
        %s5665 = sand.u32 %s185, 1
        %s5666 = smul.addr %s5665, 256
        %s5667 = scalar_lea.vmem [#allocation8], %s5666
        // Predicated region
        $region61: #{conv_res_block.1} parent=47 // pred_check
          %p5668 = pneg %p195
        $region62: #{conv_res_block.1} parent=47 // pred_check_branch
          %5670 = sbr.rel (%p5668) target = $region64
        $region63: #{conv_res_block.1} parent=47 // pred_region
          %s5671 = smul.u32 4, %s25
          %s5673 = ssub.s32 4096, 4096
          %5674 = vsyncadd %s5664, %s5673
          %s5675 = smul.addr %s5671, 8
          %s5676 = smul.addr %s5675, 128
          %s5677 = scalar_lea.hbm %s7, %s5676
          %s5678 = sshll.u32 %s5667, 4
          %s5679 = int_to_ptr.vmem [resolvable:$true] %s5678
          %5684 = dma.vmem_to_hbm [thread:$0]  %s5679, 4096, %s5677, %s5664, 128, 128, 8
        $region64: #{conv_res_block.1} parent=47 // pred_fallthru
          _
      $region48: #{conv_res_block.1} parent=5 // pred_fallthru
        _
      %p5685 = scmp.le.s32.totalorder 2, %s20
      // Predicated region
      $region65: #{conv_res_block.1} parent=5 // pred_check
        %p5686 = pneg %p5685
      $region66: #{conv_res_block.1} parent=5 // pred_check_branch
        %5688 = sbr.rel (%p5686) target = $region68
      $region67: #{conv_res_block.1} parent=5 // pred_region
        %s5689 = ssub.s32 %s20, 2
        // Predicated region
        $region69: #{conv_res_block.1} parent=67 // pred_check
          %p5690 = pneg %p201
        $region70: #{conv_res_block.1} parent=67 // pred_check_branch
          %5692 = sbr.rel (%p5690) target = $region72
        $region71: #{conv_res_block.1} parent=67 // pred_region
          %s5693 = sand.u32 %s186, 1
          %s5694 = scalar_lea.sflag [#allocation4], %s5693
          %s5695 = sand.u32 %s186, 1
          %s5696 = smul.addr %s5695, 256
          %s5697 = scalar_lea.vmem [#allocation8], %s5696
          %5698 = dma.done %s5694, 4096
        $region72: #{conv_res_block.1} parent=67 // pred_fallthru
          _
      $region68: #{conv_res_block.1} parent=5 // pred_fallthru
        _
    $region6: #{conv_res_block.1} parent=1 // loop_footer
      %s24 = sadd.s32 1, %s20
    $region7: #{conv_res_block.1} parent=1 // loop_footer_branch
      %19 = sbr.rel target = $region3
    $region8: #{conv_res_block.1} parent=1 // loop_exit
      _
    %5699 = vsyncpa [#allocation3], 1
    %s5700 = scalar_lea.sflag [#allocation3], 1
    %5701 = vsyncpa %s5700, 1
    %5702 = vsyncpa [#allocation6], 1
    %5703 = vsyncpa [#allocation4], 1
    %s5704 = scalar_lea.sflag [#allocation4], 1
    %5705 = vsyncpa %s5704, 1

</llo_original>
